<compile_context>
chip_gen: v7x
topology: tpu7x:2x2x1
jax: 0.10.0
libtpu: 0.0.40
codegen_flags: <defaults>
</compile_context>

<pallas_src>
import functools

import jax
import jax.numpy as jnp
from jax import lax
from jax.experimental import pallas as pl
from jax.experimental.pallas import tpu as pltpu


def _pc_inference_kernel(steps, gamma, sizes,
                         obs_ref, wp_ref, wqqp_ref, bp_ref, cp_ref,
                         x_out_ref, e_out_ref):
    in_f, hidden, classes = sizes
    B, D = obs_ref.shape
    o1 = in_f                      # start of x1 segment
    o2 = in_f + hidden             # start of x2 segment
    o3 = in_f + hidden + classes   # end of valid lanes

    lane = lax.broadcasted_iota(jnp.int32, (B, D), 1)
    seg1 = (lane >= o1) & (lane < o2)                              # x1 lanes
    seg2 = (lane >= o2) & (lane < o3)                              # x2 lanes
    upd_mask = ((lane >= o1) & (lane < o3)).astype(jnp.float32)    # update x1,x2 (x0 pinned)
    err_mask = (lane < o2).astype(jnp.float32)                     # e0,e1 (e_top stays 0)

    wp = wp_ref[...]       # bf16 block-diag propagate slab:            v @ wp
    wqqp = wqqp_ref[...]   # bf16 [wq | wq@wp] slab (D, 2D):  t @ wq  and  t @ (wq@wp)
    # Hoisted broadcasts (JAX does not CSE broadcast_in_dim inside the loop).
    bias = jnp.broadcast_to(bp_ref[...], (B, D))                   # f32 [b1 | b2 | 0 | 0]
    cvec = jnp.broadcast_to(cp_ref[...], (B, D))                   # f32 bias @ wp

    lo = wp.dtype  # bfloat16

    # ---- _init_xs (obs given, y=None): bottom-up x_l = tanh(propagate_l(x_{l-1})) ----
    x = obs_ref[...]                                               # [obs | 0 | 0 | 0]
    p = jnp.dot(x.astype(lo), wp, preferred_element_type=jnp.float32)
    x = jnp.where(seg1, jnp.tanh(p), x)                            # x1 = tanh(x0 @ W1)
    p = jnp.dot(x.astype(lo), wp, preferred_element_type=jnp.float32)
    x = jnp.where(seg2, jnp.tanh(p), x)                            # x2 = tanh(x1 @ W2)
    t = jnp.tanh(x)                                                # carried tanh(x)

    # Original step 0's update_x is a no-op (e == 0), so the loop below fuses
    # "update_e of step i" with "update_x of step i+1" and runs steps-1 times.
    def body(_, carry):
        x, t = carry
        # Both matmuls depend only on (x, t): issue back-to-back into the MXU.
        a = jnp.dot(x.astype(lo), wp, preferred_element_type=jnp.float32)      # x @ wp
        bq = jnp.dot(t.astype(lo), wqqp, preferred_element_type=jnp.float32)   # [t@wq | t@wq@wp]
        # ---- update_e of previous step (all non-top layers) ----
        pred = bq[:, :D] + bias
        e = err_mask * (x - pred)
        # ---- update_x (layer 0 pinned); prop == e @ wp exactly (wp rows >= o2 are zero) ----
        prop = a - bq[:, D:] - cvec
        x = x + gamma * upd_mask * (prop * (1.0 - t * t) - e)
        t = jnp.tanh(x)                                            # reused next iter for d_actv
        # TODO(synk): temperature-scaled torch.randn_like noise in update_x/update_e
        # is omitted (no RNG parity with PyTorch); only deterministic PC dynamics kept.
        return (x, t)

    x, t = lax.fori_loop(0, steps - 1, body, (x, t), unroll=True)

    # ---- trailing update_e of the final step ----
    bq = jnp.dot(t.astype(lo), wqqp, preferred_element_type=jnp.float32)
    e = err_mask * (x - (bq[:, :D] + bias))

    x_out_ref[...] = x
    e_out_ref[...] = e


def pack_fc_classifier_params(params):
    """Build the lane-packed weight slabs ONCE per parameter set.

    Hoisted out of the per-call forward path (perf review): the scatter ops and
    the wq@wp product run only when parameters change, not per forward call.
    """
    w1 = jnp.asarray(params["w1"], jnp.float32)   # (in_f, hidden):  propagate x0 @ w1 -> x1
    b1 = jnp.asarray(params["b1"], jnp.float32)   # (in_f,):   bias of layer-1 prediction of layer 0
    w2 = jnp.asarray(params["w2"], jnp.float32)   # (hidden, classes)
    b2 = jnp.asarray(params["b2"], jnp.float32)   # (hidden,)
    in_f, hidden = w1.shape
    _, classes = w2.shape
    total = in_f + hidden + classes
    d_pad = ((total + 127) // 128) * 128
    o1, o2, o3 = in_f, in_f + hidden, total

    # propagate slab:  v_packed @ wp  -> [0 | v0@W1 | v1@W2 | 0]
    wp = jnp.zeros((d_pad, d_pad), jnp.float32)
    wp = wp.at[:in_f, o1:o2].set(w1)
    wp = wp.at[o1:o2, o2:o3].set(w2)
    # predict slab:    t_packed @ wq  -> [t1@W1.T | t2@W2.T | 0 | 0]
    wq = jnp.zeros((d_pad, d_pad), jnp.float32)
    wq = wq.at[o1:o2, :in_f].set(w1.T)
    wq = wq.at[o2:o3, o1:o2].set(w2.T)
    # fused [wq | wq@wp] slab: one (D, 2D) RHS per step covers pred and prop.
    wqqp = jnp.concatenate([wq, wq @ wp], axis=1)
    # bias slab and its propagate image bias @ wp
    bp = jnp.zeros((1, d_pad), jnp.float32)
    bp = bp.at[0, :in_f].set(b1)
    bp = bp.at[0, o1:o2].set(b2)
    cp = bp @ wp

    return {
        "wp": wp.astype(jnp.bfloat16),        # bf16 matmul operands, f32 accumulation
        "wqqp": wqqp.astype(jnp.bfloat16),
        "bp": bp,                             # added post-matmul in f32
        "cp": cp,
        "dims": (in_f, hidden, classes),
        "d_pad": d_pad,
    }


def fc_classifier_forward(obs, packed, steps=20, gamma=0.1):
    """Mirror of FCClassifier.forward(obs) -> (out, state). `packed` from pack_fc_classifier_params."""
    in_f, hidden, classes = packed["dims"]
    d_pad = packed["d_pad"]
    o1, o2, o3 = in_f, in_f + hidden, in_f + hidden + classes

    obs = obs.astype(jnp.float32)
    B = obs.shape[0]
    obs_packed = jnp.zeros((B, d_pad), jnp.float32).at[:, :in_f].set(obs)

    D = d_pad
    # Advisory cost hint for XLA scheduling around this latency-bound call.
    flops = 2 * B * D * D * (3 * steps + 1)
    transcendentals = B * D * (steps + 2)
    bytes_accessed = (obs_packed.size * 4
                      + packed["wp"].size * 2 + packed["wqqp"].size * 2
                      + packed["bp"].size * 4 + packed["cp"].size * 4
                      + 2 * B * D * 4)

    vmem = pl.BlockSpec(memory_space=pltpu.MemorySpace.VMEM)
    kernel = functools.partial(_pc_inference_kernel, steps, gamma,
                               (in_f, hidden, classes))
    # Grid-less single block: total VMEM footprint ~200 KiB, so no tiling/pipelining
    # needed on any generation; B is amortized for free inside the single block.
    x_packed, e_packed = pl.pallas_call(
        kernel,
        out_shape=(jax.ShapeDtypeStruct((B, d_pad), jnp.float32),
                   jax.ShapeDtypeStruct((B, d_pad), jnp.float32)),
        in_specs=[vmem] * 5,
        out_specs=(vmem, vmem),
        cost_estimate=pl.CostEstimate(flops=flops,
                                      transcendentals=transcendentals,
                                      bytes_accessed=bytes_accessed),
    )(obs_packed, packed["wp"], packed["wqqp"], packed["bp"], packed["cp"])

    # ---- unpack; x0 is the pinned obs, top-layer error is identically zero ----
    x1 = x_packed[:, o1:o2]
    x2 = x_packed[:, o2:o3]
    e0 = e_packed[:, :o1]
    e1 = e_packed[:, o1:o2]
    state = [
        {"x": obs, "e": e0},
        {"x": x1, "e": e1},
        {"x": x2, "e": jnp.zeros((B, classes), jnp.float32)},
    ]
    out = x2  # get_output(state) == state[-1]['x']
    return out, state


if __name__ == "__main__":
    # Small config: FCClassifier(in_features=64, num_classes=16, hidden_sizes=[32])
    B, in_features, hidden, num_classes = 8, 64, 32, 16
    key = jax.random.PRNGKey(0)
    k_obs, k_w1, k_w2 = jax.random.split(key, 3)

    obs = jax.random.normal(k_obs, (B, in_features), dtype=jnp.float32)
    params = {
        # W_l: (features_below, features_this); deterministic synthetic init.
        "w1": jax.random.normal(k_w1, (in_features, hidden), dtype=jnp.float32)
        * (1.0 / jnp.sqrt(float(hidden))),
        "b1": jnp.zeros((in_features,), jnp.float32),
        "w2": jax.random.normal(k_w2, (hidden, num_classes), dtype=jnp.float32)
        * (1.0 / jnp.sqrt(float(num_classes))),
        "b2": jnp.zeros((hidden,), jnp.float32),
    }

    packed = pack_fc_classifier_params(params)   # hoisted: built once per parameter set
    out, state = fc_classifier_forward(obs, packed, steps=20, gamma=0.1)
    jax.block_until_ready(out)
    for s in state:
        jax.block_until_ready(s["x"])
        jax.block_until_ready(s["e"])
    print("KERNEL_OK")
</pallas_src>

<mosaic_0001>
module attributes {stable_mosaic.version = 11 : i64} {
  func.func @_pc_inference_kernel(%arg0: memref<8x128xf32, #tpu.memory_space<vmem>>, %arg1: memref<128x128xbf16, #tpu.memory_space<vmem>>, %arg2: memref<128x256xbf16, #tpu.memory_space<vmem>>, %arg3: memref<1x128xf32, #tpu.memory_space<vmem>>, %arg4: memref<1x128xf32, #tpu.memory_space<vmem>>, %arg5: memref<8x128xf32, #tpu.memory_space<vmem>>, %arg6: memref<8x128xf32, #tpu.memory_space<vmem>>) attributes {dimension_semantics = [], scalar_prefetch = 0 : i64, scratch_operands = 0 : i64, tpu.core_type = #tpu.core_type<tc>} {
    %0 = tpu.iota {dimensions = array<i32: 1>} : vector<8x128xi32>
    %c64_i32 = arith.constant 64 : i32
    %1 = vector.broadcast %c64_i32 : i32 to vector<8x128xi32>
    %2 = arith.cmpi sge, %0, %1 : vector<8x128xi32>
    %c96_i32 = arith.constant 96 : i32
    %3 = vector.broadcast %c96_i32 : i32 to vector<8x128xi32>
    %4 = arith.cmpi slt, %0, %3 : vector<8x128xi32>
    %5 = arith.andi %2, %4 : vector<8x128xi1>
    %c96_i32_0 = arith.constant 96 : i32
    %6 = vector.broadcast %c96_i32_0 : i32 to vector<8x128xi32>
    %7 = arith.cmpi sge, %0, %6 : vector<8x128xi32>
    %c112_i32 = arith.constant 112 : i32
    %8 = vector.broadcast %c112_i32 : i32 to vector<8x128xi32>
    %9 = arith.cmpi slt, %0, %8 : vector<8x128xi32>
    %10 = arith.andi %7, %9 : vector<8x128xi1>
    %c64_i32_1 = arith.constant 64 : i32
    %11 = vector.broadcast %c64_i32_1 : i32 to vector<8x128xi32>
    %12 = arith.cmpi sge, %0, %11 : vector<8x128xi32>
    %c112_i32_2 = arith.constant 112 : i32
    %13 = vector.broadcast %c112_i32_2 : i32 to vector<8x128xi32>
    %14 = arith.cmpi slt, %0, %13 : vector<8x128xi32>
    %15 = arith.andi %12, %14 : vector<8x128xi1>
    %16 = arith.extui %15 : vector<8x128xi1> to vector<8x128xi32>
    %17 = arith.sitofp %16 : vector<8x128xi32> to vector<8x128xf32>
    %c96_i32_3 = arith.constant 96 : i32
    %18 = vector.broadcast %c96_i32_3 : i32 to vector<8x128xi32>
    %19 = arith.cmpi slt, %0, %18 : vector<8x128xi32>
    %20 = arith.extui %19 : vector<8x128xi1> to vector<8x128xi32>
    %21 = arith.sitofp %20 : vector<8x128xi32> to vector<8x128xf32>
    %c0 = arith.constant 0 : index
    %c0_4 = arith.constant 0 : index
    %22 = vector.load %arg1[%c0, %c0_4] : memref<128x128xbf16, #tpu.memory_space<vmem>>, vector<128x128xbf16>
    %c0_5 = arith.constant 0 : index
    %c0_6 = arith.constant 0 : index
    %23 = vector.load %arg2[%c0_5, %c0_6] : memref<128x256xbf16, #tpu.memory_space<vmem>>, vector<128x256xbf16>
    %c0_7 = arith.constant 0 : index
    %c0_8 = arith.constant 0 : index
    %24 = vector.load %arg3[%c0_7, %c0_8] : memref<1x128xf32, #tpu.memory_space<vmem>>, vector<1x128xf32>
    %25 = vector.shape_cast %24 : vector<1x128xf32> to vector<1x128xf32>
    %26 = vector.broadcast %25 : vector<1x128xf32> to vector<8x128xf32>
    %c0_9 = arith.constant 0 : index
    %c0_10 = arith.constant 0 : index
    %27 = vector.load %arg4[%c0_9, %c0_10] : memref<1x128xf32, #tpu.memory_space<vmem>>, vector<1x128xf32>
    %28 = vector.shape_cast %27 : vector<1x128xf32> to vector<1x128xf32>
    %29 = vector.broadcast %28 : vector<1x128xf32> to vector<8x128xf32>
    %c0_11 = arith.constant 0 : index
    %c0_12 = arith.constant 0 : index
    %30 = vector.load %arg0[%c0_11, %c0_12] : memref<8x128xf32, #tpu.memory_space<vmem>>, vector<8x128xf32>
    %31 = arith.truncf %30 : vector<8x128xf32> to vector<8x128xbf16>
    %cst = arith.constant dense<0.000000e+00> : vector<8x128xf32>
    %32 = tpu.matmul %31, %22, %cst {dimension_numbers = #tpu.dot_dimension_numbers<[1], [0], [0], [1], [0, 0, 1, 1], [], []>} : vector<8x128xbf16>, vector<128x128xbf16>, vector<8x128xf32> -> vector<8x128xf32>
    %33 = math.tanh %32 : vector<8x128xf32>
    %34 = arith.select %5, %33, %30 : vector<8x128xi1>, vector<8x128xf32>
    %35 = arith.truncf %34 : vector<8x128xf32> to vector<8x128xbf16>
    %cst_13 = arith.constant dense<0.000000e+00> : vector<8x128xf32>
    %36 = tpu.matmul %35, %22, %cst_13 {dimension_numbers = #tpu.dot_dimension_numbers<[1], [0], [0], [1], [0, 0, 1, 1], [], []>} : vector<8x128xbf16>, vector<128x128xbf16>, vector<8x128xf32> -> vector<8x128xf32>
    %37 = math.tanh %36 : vector<8x128xf32>
    %38 = arith.select %10, %37, %34 : vector<8x128xi1>, vector<8x128xf32>
    %39 = math.tanh %38 : vector<8x128xf32>
    %c0_i32 = arith.constant 0 : i32
    %40 = arith.truncf %38 : vector<8x128xf32> to vector<8x128xbf16>
    %cst_14 = arith.constant dense<0.000000e+00> : vector<8x128xf32>
    %41 = tpu.matmul %40, %22, %cst_14 {dimension_numbers = #tpu.dot_dimension_numbers<[1], [0], [0], [1], [0, 0, 1, 1], [], []>} : vector<8x128xbf16>, vector<128x128xbf16>, vector<8x128xf32> -> vector<8x128xf32>
    %42 = arith.truncf %39 : vector<8x128xf32> to vector<8x128xbf16>
    %cst_15 = arith.constant dense<0.000000e+00> : vector<8x256xf32>
    %43 = tpu.matmul %42, %23, %cst_15 {dimension_numbers = #tpu.dot_dimension_numbers<[1], [0], [0], [1], [0, 0, 1, 1], [], []>} : vector<8x128xbf16>, vector<128x256xbf16>, vector<8x256xf32> -> vector<8x256xf32>
    %44 = vector.extract_strided_slice %43 {offsets = [0, 0], sizes = [8, 128], strides = [1, 1]} : vector<8x256xf32> to vector<8x128xf32>
    %45 = arith.addf %44, %26 : vector<8x128xf32>
    %46 = arith.subf %38, %45 : vector<8x128xf32>
    %47 = arith.mulf %21, %46 : vector<8x128xf32>
    %48 = vector.extract_strided_slice %43 {offsets = [0, 128], sizes = [8, 128], strides = [1, 1]} : vector<8x256xf32> to vector<8x128xf32>
    %49 = arith.subf %41, %48 : vector<8x128xf32>
    %50 = arith.subf %49, %29 : vector<8x128xf32>
    %cst_16 = arith.constant 1.000000e-01 : f32
    %51 = vector.broadcast %cst_16 : f32 to vector<8x128xf32>
    %52 = arith.mulf %51, %17 : vector<8x128xf32>
    %53 = arith.mulf %39, %39 : vector<8x128xf32>
    %cst_17 = arith.constant 1.000000e+00 : f32
    %54 = vector.broadcast %cst_17 : f32 to vector<8x128xf32>
    %55 = arith.subf %54, %53 : vector<8x128xf32>
    %56 = arith.mulf %50, %55 : vector<8x128xf32>
    %57 = arith.subf %56, %47 : vector<8x128xf32>
    %58 = arith.mulf %52, %57 : vector<8x128xf32>
    %59 = arith.addf %38, %58 : vector<8x128xf32>
    %60 = math.tanh %59 : vector<8x128xf32>
    %c1_i32 = arith.constant 1 : i32
    %61 = arith.truncf %59 : vector<8x128xf32> to vector<8x128xbf16>
    %cst_18 = arith.constant dense<0.000000e+00> : vector<8x128xf32>
    %62 = tpu.matmul %61, %22, %cst_18 {dimension_numbers = #tpu.dot_dimension_numbers<[1], [0], [0], [1], [0, 0, 1, 1], [], []>} : vector<8x128xbf16>, vector<128x128xbf16>, vector<8x128xf32> -> vector<8x128xf32>
    %63 = arith.truncf %60 : vector<8x128xf32> to vector<8x128xbf16>
    %cst_19 = arith.constant dense<0.000000e+00> : vector<8x256xf32>
    %64 = tpu.matmul %63, %23, %cst_19 {dimension_numbers = #tpu.dot_dimension_numbers<[1], [0], [0], [1], [0, 0, 1, 1], [], []>} : vector<8x128xbf16>, vector<128x256xbf16>, vector<8x256xf32> -> vector<8x256xf32>
    %65 = vector.extract_strided_slice %64 {offsets = [0, 0], sizes = [8, 128], strides = [1, 1]} : vector<8x256xf32> to vector<8x128xf32>
    %66 = arith.addf %65, %26 : vector<8x128xf32>
    %67 = arith.subf %59, %66 : vector<8x128xf32>
    %68 = arith.mulf %21, %67 : vector<8x128xf32>
    %69 = vector.extract_strided_slice %64 {offsets = [0, 128], sizes = [8, 128], strides = [1, 1]} : vector<8x256xf32> to vector<8x128xf32>
    %70 = arith.subf %62, %69 : vector<8x128xf32>
    %71 = arith.subf %70, %29 : vector<8x128xf32>
    %cst_20 = arith.constant 1.000000e-01 : f32
    %72 = vector.broadcast %cst_20 : f32 to vector<8x128xf32>
    %73 = arith.mulf %72, %17 : vector<8x128xf32>
    %74 = arith.mulf %60, %60 : vector<8x128xf32>
    %cst_21 = arith.constant 1.000000e+00 : f32
    %75 = vector.broadcast %cst_21 : f32 to vector<8x128xf32>
    %76 = arith.subf %75, %74 : vector<8x128xf32>
    %77 = arith.mulf %71, %76 : vector<8x128xf32>
    %78 = arith.subf %77, %68 : vector<8x128xf32>
    %79 = arith.mulf %73, %78 : vector<8x128xf32>
    %80 = arith.addf %59, %79 : vector<8x128xf32>
    %81 = math.tanh %80 : vector<8x128xf32>
    %c2_i32 = arith.constant 2 : i32
    %82 = arith.truncf %80 : vector<8x128xf32> to vector<8x128xbf16>
    %cst_22 = arith.constant dense<0.000000e+00> : vector<8x128xf32>
    %83 = tpu.matmul %82, %22, %cst_22 {dimension_numbers = #tpu.dot_dimension_numbers<[1], [0], [0], [1], [0, 0, 1, 1], [], []>} : vector<8x128xbf16>, vector<128x128xbf16>, vector<8x128xf32> -> vector<8x128xf32>
    %84 = arith.truncf %81 : vector<8x128xf32> to vector<8x128xbf16>
    %cst_23 = arith.constant dense<0.000000e+00> : vector<8x256xf32>
    %85 = tpu.matmul %84, %23, %cst_23 {dimension_numbers = #tpu.dot_dimension_numbers<[1], [0], [0], [1], [0, 0, 1, 1], [], []>} : vector<8x128xbf16>, vector<128x256xbf16>, vector<8x256xf32> -> vector<8x256xf32>
    %86 = vector.extract_strided_slice %85 {offsets = [0, 0], sizes = [8, 128], strides = [1, 1]} : vector<8x256xf32> to vector<8x128xf32>
    %87 = arith.addf %86, %26 : vector<8x128xf32>
    %88 = arith.subf %80, %87 : vector<8x128xf32>
    %89 = arith.mulf %21, %88 : vector<8x128xf32>
    %90 = vector.extract_strided_slice %85 {offsets = [0, 128], sizes = [8, 128], strides = [1, 1]} : vector<8x256xf32> to vector<8x128xf32>
    %91 = arith.subf %83, %90 : vector<8x128xf32>
    %92 = arith.subf %91, %29 : vector<8x128xf32>
    %cst_24 = arith.constant 1.000000e-01 : f32
    %93 = vector.broadcast %cst_24 : f32 to vector<8x128xf32>
    %94 = arith.mulf %93, %17 : vector<8x128xf32>
    %95 = arith.mulf %81, %81 : vector<8x128xf32>
    %cst_25 = arith.constant 1.000000e+00 : f32
    %96 = vector.broadcast %cst_25 : f32 to vector<8x128xf32>
    %97 = arith.subf %96, %95 : vector<8x128xf32>
    %98 = arith.mulf %92, %97 : vector<8x128xf32>
    %99 = arith.subf %98, %89 : vector<8x128xf32>
    %100 = arith.mulf %94, %99 : vector<8x128xf32>
    %101 = arith.addf %80, %100 : vector<8x128xf32>
    %102 = math.tanh %101 : vector<8x128xf32>
    %c3_i32 = arith.constant 3 : i32
    %103 = arith.truncf %101 : vector<8x128xf32> to vector<8x128xbf16>
    %cst_26 = arith.constant dense<0.000000e+00> : vector<8x128xf32>
    %104 = tpu.matmul %103, %22, %cst_26 {dimension_numbers = #tpu.dot_dimension_numbers<[1], [0], [0], [1], [0, 0, 1, 1], [], []>} : vector<8x128xbf16>, vector<128x128xbf16>, vector<8x128xf32> -> vector<8x128xf32>
    %105 = arith.truncf %102 : vector<8x128xf32> to vector<8x128xbf16>
    %cst_27 = arith.constant dense<0.000000e+00> : vector<8x256xf32>
    %106 = tpu.matmul %105, %23, %cst_27 {dimension_numbers = #tpu.dot_dimension_numbers<[1], [0], [0], [1], [0, 0, 1, 1], [], []>} : vector<8x128xbf16>, vector<128x256xbf16>, vector<8x256xf32> -> vector<8x256xf32>
    %107 = vector.extract_strided_slice %106 {offsets = [0, 0], sizes = [8, 128], strides = [1, 1]} : vector<8x256xf32> to vector<8x128xf32>
    %108 = arith.addf %107, %26 : vector<8x128xf32>
    %109 = arith.subf %101, %108 : vector<8x128xf32>
    %110 = arith.mulf %21, %109 : vector<8x128xf32>
    %111 = vector.extract_strided_slice %106 {offsets = [0, 128], sizes = [8, 128], strides = [1, 1]} : vector<8x256xf32> to vector<8x128xf32>
    %112 = arith.subf %104, %111 : vector<8x128xf32>
    %113 = arith.subf %112, %29 : vector<8x128xf32>
    %cst_28 = arith.constant 1.000000e-01 : f32
    %114 = vector.broadcast %cst_28 : f32 to vector<8x128xf32>
    %115 = arith.mulf %114, %17 : vector<8x128xf32>
    %116 = arith.mulf %102, %102 : vector<8x128xf32>
    %cst_29 = arith.constant 1.000000e+00 : f32
    %117 = vector.broadcast %cst_29 : f32 to vector<8x128xf32>
    %118 = arith.subf %117, %116 : vector<8x128xf32>
    %119 = arith.mulf %113, %118 : vector<8x128xf32>
    %120 = arith.subf %119, %110 : vector<8x128xf32>
    %121 = arith.mulf %115, %120 : vector<8x128xf32>
    %122 = arith.addf %101, %121 : vector<8x128xf32>
    %123 = math.tanh %122 : vector<8x128xf32>
    %c4_i32 = arith.constant 4 : i32
    %124 = arith.truncf %122 : vector<8x128xf32> to vector<8x128xbf16>
    %cst_30 = arith.constant dense<0.000000e+00> : vector<8x128xf32>
    %125 = tpu.matmul %124, %22, %cst_30 {dimension_numbers = #tpu.dot_dimension_numbers<[1], [0], [0], [1], [0, 0, 1, 1], [], []>} : vector<8x128xbf16>, vector<128x128xbf16>, vector<8x128xf32> -> vector<8x128xf32>
    %126 = arith.truncf %123 : vector<8x128xf32> to vector<8x128xbf16>
    %cst_31 = arith.constant dense<0.000000e+00> : vector<8x256xf32>
    %127 = tpu.matmul %126, %23, %cst_31 {dimension_numbers = #tpu.dot_dimension_numbers<[1], [0], [0], [1], [0, 0, 1, 1], [], []>} : vector<8x128xbf16>, vector<128x256xbf16>, vector<8x256xf32> -> vector<8x256xf32>
    %128 = vector.extract_strided_slice %127 {offsets = [0, 0], sizes = [8, 128], strides = [1, 1]} : vector<8x256xf32> to vector<8x128xf32>
    %129 = arith.addf %128, %26 : vector<8x128xf32>
    %130 = arith.subf %122, %129 : vector<8x128xf32>
    %131 = arith.mulf %21, %130 : vector<8x128xf32>
    %132 = vector.extract_strided_slice %127 {offsets = [0, 128], sizes = [8, 128], strides = [1, 1]} : vector<8x256xf32> to vector<8x128xf32>
    %133 = arith.subf %125, %132 : vector<8x128xf32>
    %134 = arith.subf %133, %29 : vector<8x128xf32>
    %cst_32 = arith.constant 1.000000e-01 : f32
    %135 = vector.broadcast %cst_32 : f32 to vector<8x128xf32>
    %136 = arith.mulf %135, %17 : vector<8x128xf32>
    %137 = arith.mulf %123, %123 : vector<8x128xf32>
    %cst_33 = arith.constant 1.000000e+00 : f32
    %138 = vector.broadcast %cst_33 : f32 to vector<8x128xf32>
    %139 = arith.subf %138, %137 : vector<8x128xf32>
    %140 = arith.mulf %134, %139 : vector<8x128xf32>
    %141 = arith.subf %140, %131 : vector<8x128xf32>
    %142 = arith.mulf %136, %141 : vector<8x128xf32>
    %143 = arith.addf %122, %142 : vector<8x128xf32>
    %144 = math.tanh %143 : vector<8x128xf32>
    %c5_i32 = arith.constant 5 : i32
    %145 = arith.truncf %143 : vector<8x128xf32> to vector<8x128xbf16>
    %cst_34 = arith.constant dense<0.000000e+00> : vector<8x128xf32>
    %146 = tpu.matmul %145, %22, %cst_34 {dimension_numbers = #tpu.dot_dimension_numbers<[1], [0], [0], [1], [0, 0, 1, 1], [], []>} : vector<8x128xbf16>, vector<128x128xbf16>, vector<8x128xf32> -> vector<8x128xf32>
    %147 = arith.truncf %144 : vector<8x128xf32> to vector<8x128xbf16>
    %cst_35 = arith.constant dense<0.000000e+00> : vector<8x256xf32>
    %148 = tpu.matmul %147, %23, %cst_35 {dimension_numbers = #tpu.dot_dimension_numbers<[1], [0], [0], [1], [0, 0, 1, 1], [], []>} : vector<8x128xbf16>, vector<128x256xbf16>, vector<8x256xf32> -> vector<8x256xf32>
    %149 = vector.extract_strided_slice %148 {offsets = [0, 0], sizes = [8, 128], strides = [1, 1]} : vector<8x256xf32> to vector<8x128xf32>
    %150 = arith.addf %149, %26 : vector<8x128xf32>
    %151 = arith.subf %143, %150 : vector<8x128xf32>
    %152 = arith.mulf %21, %151 : vector<8x128xf32>
    %153 = vector.extract_strided_slice %148 {offsets = [0, 128], sizes = [8, 128], strides = [1, 1]} : vector<8x256xf32> to vector<8x128xf32>
    %154 = arith.subf %146, %153 : vector<8x128xf32>
    %155 = arith.subf %154, %29 : vector<8x128xf32>
    %cst_36 = arith.constant 1.000000e-01 : f32
    %156 = vector.broadcast %cst_36 : f32 to vector<8x128xf32>
    %157 = arith.mulf %156, %17 : vector<8x128xf32>
    %158 = arith.mulf %144, %144 : vector<8x128xf32>
    %cst_37 = arith.constant 1.000000e+00 : f32
    %159 = vector.broadcast %cst_37 : f32 to vector<8x128xf32>
    %160 = arith.subf %159, %158 : vector<8x128xf32>
    %161 = arith.mulf %155, %160 : vector<8x128xf32>
    %162 = arith.subf %161, %152 : vector<8x128xf32>
    %163 = arith.mulf %157, %162 : vector<8x128xf32>
    %164 = arith.addf %143, %163 : vector<8x128xf32>
    %165 = math.tanh %164 : vector<8x128xf32>
    %c6_i32 = arith.constant 6 : i32
    %166 = arith.truncf %164 : vector<8x128xf32> to vector<8x128xbf16>
    %cst_38 = arith.constant dense<0.000000e+00> : vector<8x128xf32>
    %167 = tpu.matmul %166, %22, %cst_38 {dimension_numbers = #tpu.dot_dimension_numbers<[1], [0], [0], [1], [0, 0, 1, 1], [], []>} : vector<8x128xbf16>, vector<128x128xbf16>, vector<8x128xf32> -> vector<8x128xf32>
    %168 = arith.truncf %165 : vector<8x128xf32> to vector<8x128xbf16>
    %cst_39 = arith.constant dense<0.000000e+00> : vector<8x256xf32>
    %169 = tpu.matmul %168, %23, %cst_39 {dimension_numbers = #tpu.dot_dimension_numbers<[1], [0], [0], [1], [0, 0, 1, 1], [], []>} : vector<8x128xbf16>, vector<128x256xbf16>, vector<8x256xf32> -> vector<8x256xf32>
    %170 = vector.extract_strided_slice %169 {offsets = [0, 0], sizes = [8, 128], strides = [1, 1]} : vector<8x256xf32> to vector<8x128xf32>
    %171 = arith.addf %170, %26 : vector<8x128xf32>
    %172 = arith.subf %164, %171 : vector<8x128xf32>
    %173 = arith.mulf %21, %172 : vector<8x128xf32>
    %174 = vector.extract_strided_slice %169 {offsets = [0, 128], sizes = [8, 128], strides = [1, 1]} : vector<8x256xf32> to vector<8x128xf32>
    %175 = arith.subf %167, %174 : vector<8x128xf32>
    %176 = arith.subf %175, %29 : vector<8x128xf32>
    %cst_40 = arith.constant 1.000000e-01 : f32
    %177 = vector.broadcast %cst_40 : f32 to vector<8x128xf32>
    %178 = arith.mulf %177, %17 : vector<8x128xf32>
    %179 = arith.mulf %165, %165 : vector<8x128xf32>
    %cst_41 = arith.constant 1.000000e+00 : f32
    %180 = vector.broadcast %cst_41 : f32 to vector<8x128xf32>
    %181 = arith.subf %180, %179 : vector<8x128xf32>
    %182 = arith.mulf %176, %181 : vector<8x128xf32>
    %183 = arith.subf %182, %173 : vector<8x128xf32>
    %184 = arith.mulf %178, %183 : vector<8x128xf32>
    %185 = arith.addf %164, %184 : vector<8x128xf32>
    %186 = math.tanh %185 : vector<8x128xf32>
    %c7_i32 = arith.constant 7 : i32
    %187 = arith.truncf %185 : vector<8x128xf32> to vector<8x128xbf16>
    %cst_42 = arith.constant dense<0.000000e+00> : vector<8x128xf32>
    %188 = tpu.matmul %187, %22, %cst_42 {dimension_numbers = #tpu.dot_dimension_numbers<[1], [0], [0], [1], [0, 0, 1, 1], [], []>} : vector<8x128xbf16>, vector<128x128xbf16>, vector<8x128xf32> -> vector<8x128xf32>
    %189 = arith.truncf %186 : vector<8x128xf32> to vector<8x128xbf16>
    %cst_43 = arith.constant dense<0.000000e+00> : vector<8x256xf32>
    %190 = tpu.matmul %189, %23, %cst_43 {dimension_numbers = #tpu.dot_dimension_numbers<[1], [0], [0], [1], [0, 0, 1, 1], [], []>} : vector<8x128xbf16>, vector<128x256xbf16>, vector<8x256xf32> -> vector<8x256xf32>
    %191 = vector.extract_strided_slice %190 {offsets = [0, 0], sizes = [8, 128], strides = [1, 1]} : vector<8x256xf32> to vector<8x128xf32>
    %192 = arith.addf %191, %26 : vector<8x128xf32>
    %193 = arith.subf %185, %192 : vector<8x128xf32>
    %194 = arith.mulf %21, %193 : vector<8x128xf32>
    %195 = vector.extract_strided_slice %190 {offsets = [0, 128], sizes = [8, 128], strides = [1, 1]} : vector<8x256xf32> to vector<8x128xf32>
    %196 = arith.subf %188, %195 : vector<8x128xf32>
    %197 = arith.subf %196, %29 : vector<8x128xf32>
    %cst_44 = arith.constant 1.000000e-01 : f32
    %198 = vector.broadcast %cst_44 : f32 to vector<8x128xf32>
    %199 = arith.mulf %198, %17 : vector<8x128xf32>
    %200 = arith.mulf %186, %186 : vector<8x128xf32>
    %cst_45 = arith.constant 1.000000e+00 : f32
    %201 = vector.broadcast %cst_45 : f32 to vector<8x128xf32>
    %202 = arith.subf %201, %200 : vector<8x128xf32>
    %203 = arith.mulf %197, %202 : vector<8x128xf32>
    %204 = arith.subf %203, %194 : vector<8x128xf32>
    %205 = arith.mulf %199, %204 : vector<8x128xf32>
    %206 = arith.addf %185, %205 : vector<8x128xf32>
    %207 = math.tanh %206 : vector<8x128xf32>
    %c8_i32 = arith.constant 8 : i32
    %208 = arith.truncf %206 : vector<8x128xf32> to vector<8x128xbf16>
    %cst_46 = arith.constant dense<0.000000e+00> : vector<8x128xf32>
    %209 = tpu.matmul %208, %22, %cst_46 {dimension_numbers = #tpu.dot_dimension_numbers<[1], [0], [0], [1], [0, 0, 1, 1], [], []>} : vector<8x128xbf16>, vector<128x128xbf16>, vector<8x128xf32> -> vector<8x128xf32>
    %210 = arith.truncf %207 : vector<8x128xf32> to vector<8x128xbf16>
    %cst_47 = arith.constant dense<0.000000e+00> : vector<8x256xf32>
    %211 = tpu.matmul %210, %23, %cst_47 {dimension_numbers = #tpu.dot_dimension_numbers<[1], [0], [0], [1], [0, 0, 1, 1], [], []>} : vector<8x128xbf16>, vector<128x256xbf16>, vector<8x256xf32> -> vector<8x256xf32>
    %212 = vector.extract_strided_slice %211 {offsets = [0, 0], sizes = [8, 128], strides = [1, 1]} : vector<8x256xf32> to vector<8x128xf32>
    %213 = arith.addf %212, %26 : vector<8x128xf32>
    %214 = arith.subf %206, %213 : vector<8x128xf32>
    %215 = arith.mulf %21, %214 : vector<8x128xf32>
    %216 = vector.extract_strided_slice %211 {offsets = [0, 128], sizes = [8, 128], strides = [1, 1]} : vector<8x256xf32> to vector<8x128xf32>
    %217 = arith.subf %209, %216 : vector<8x128xf32>
    %218 = arith.subf %217, %29 : vector<8x128xf32>
    %cst_48 = arith.constant 1.000000e-01 : f32
    %219 = vector.broadcast %cst_48 : f32 to vector<8x128xf32>
    %220 = arith.mulf %219, %17 : vector<8x128xf32>
    %221 = arith.mulf %207, %207 : vector<8x128xf32>
    %cst_49 = arith.constant 1.000000e+00 : f32
    %222 = vector.broadcast %cst_49 : f32 to vector<8x128xf32>
    %223 = arith.subf %222, %221 : vector<8x128xf32>
    %224 = arith.mulf %218, %223 : vector<8x128xf32>
    %225 = arith.subf %224, %215 : vector<8x128xf32>
    %226 = arith.mulf %220, %225 : vector<8x128xf32>
    %227 = arith.addf %206, %226 : vector<8x128xf32>
    %228 = math.tanh %227 : vector<8x128xf32>
    %c9_i32 = arith.constant 9 : i32
    %229 = arith.truncf %227 : vector<8x128xf32> to vector<8x128xbf16>
    %cst_50 = arith.constant dense<0.000000e+00> : vector<8x128xf32>
    %230 = tpu.matmul %229, %22, %cst_50 {dimension_numbers = #tpu.dot_dimension_numbers<[1], [0], [0], [1], [0, 0, 1, 1], [], []>} : vector<8x128xbf16>, vector<128x128xbf16>, vector<8x128xf32> -> vector<8x128xf32>
    %231 = arith.truncf %228 : vector<8x128xf32> to vector<8x128xbf16>
    %cst_51 = arith.constant dense<0.000000e+00> : vector<8x256xf32>
    %232 = tpu.matmul %231, %23, %cst_51 {dimension_numbers = #tpu.dot_dimension_numbers<[1], [0], [0], [1], [0, 0, 1, 1], [], []>} : vector<8x128xbf16>, vector<128x256xbf16>, vector<8x256xf32> -> vector<8x256xf32>
    %233 = vector.extract_strided_slice %232 {offsets = [0, 0], sizes = [8, 128], strides = [1, 1]} : vector<8x256xf32> to vector<8x128xf32>
    %234 = arith.addf %233, %26 : vector<8x128xf32>
    %235 = arith.subf %227, %234 : vector<8x128xf32>
    %236 = arith.mulf %21, %235 : vector<8x128xf32>
    %237 = vector.extract_strided_slice %232 {offsets = [0, 128], sizes = [8, 128], strides = [1, 1]} : vector<8x256xf32> to vector<8x128xf32>
    %238 = arith.subf %230, %237 : vector<8x128xf32>
    %239 = arith.subf %238, %29 : vector<8x128xf32>
    %cst_52 = arith.constant 1.000000e-01 : f32
    %240 = vector.broadcast %cst_52 : f32 to vector<8x128xf32>
    %241 = arith.mulf %240, %17 : vector<8x128xf32>
    %242 = arith.mulf %228, %228 : vector<8x128xf32>
    %cst_53 = arith.constant 1.000000e+00 : f32
    %243 = vector.broadcast %cst_53 : f32 to vector<8x128xf32>
    %244 = arith.subf %243, %242 : vector<8x128xf32>
    %245 = arith.mulf %239, %244 : vector<8x128xf32>
    %246 = arith.subf %245, %236 : vector<8x128xf32>
    %247 = arith.mulf %241, %246 : vector<8x128xf32>
    %248 = arith.addf %227, %247 : vector<8x128xf32>
    %249 = math.tanh %248 : vector<8x128xf32>
    %c10_i32 = arith.constant 10 : i32
    %250 = arith.truncf %248 : vector<8x128xf32> to vector<8x128xbf16>
    %cst_54 = arith.constant dense<0.000000e+00> : vector<8x128xf32>
    %251 = tpu.matmul %250, %22, %cst_54 {dimension_numbers = #tpu.dot_dimension_numbers<[1], [0], [0], [1], [0, 0, 1, 1], [], []>} : vector<8x128xbf16>, vector<128x128xbf16>, vector<8x128xf32> -> vector<8x128xf32>
    %252 = arith.truncf %249 : vector<8x128xf32> to vector<8x128xbf16>
    %cst_55 = arith.constant dense<0.000000e+00> : vector<8x256xf32>
    %253 = tpu.matmul %252, %23, %cst_55 {dimension_numbers = #tpu.dot_dimension_numbers<[1], [0], [0], [1], [0, 0, 1, 1], [], []>} : vector<8x128xbf16>, vector<128x256xbf16>, vector<8x256xf32> -> vector<8x256xf32>
    %254 = vector.extract_strided_slice %253 {offsets = [0, 0], sizes = [8, 128], strides = [1, 1]} : vector<8x256xf32> to vector<8x128xf32>
    %255 = arith.addf %254, %26 : vector<8x128xf32>
    %256 = arith.subf %248, %255 : vector<8x128xf32>
    %257 = arith.mulf %21, %256 : vector<8x128xf32>
    %258 = vector.extract_strided_slice %253 {offsets = [0, 128], sizes = [8, 128], strides = [1, 1]} : vector<8x256xf32> to vector<8x128xf32>
    %259 = arith.subf %251, %258 : vector<8x128xf32>
    %260 = arith.subf %259, %29 : vector<8x128xf32>
    %cst_56 = arith.constant 1.000000e-01 : f32
    %261 = vector.broadcast %cst_56 : f32 to vector<8x128xf32>
    %262 = arith.mulf %261, %17 : vector<8x128xf32>
    %263 = arith.mulf %249, %249 : vector<8x128xf32>
    %cst_57 = arith.constant 1.000000e+00 : f32
    %264 = vector.broadcast %cst_57 : f32 to vector<8x128xf32>
    %265 = arith.subf %264, %263 : vector<8x128xf32>
    %266 = arith.mulf %260, %265 : vector<8x128xf32>
    %267 = arith.subf %266, %257 : vector<8x128xf32>
    %268 = arith.mulf %262, %267 : vector<8x128xf32>
    %269 = arith.addf %248, %268 : vector<8x128xf32>
    %270 = math.tanh %269 : vector<8x128xf32>
    %c11_i32 = arith.constant 11 : i32
    %271 = arith.truncf %269 : vector<8x128xf32> to vector<8x128xbf16>
    %cst_58 = arith.constant dense<0.000000e+00> : vector<8x128xf32>
    %272 = tpu.matmul %271, %22, %cst_58 {dimension_numbers = #tpu.dot_dimension_numbers<[1], [0], [0], [1], [0, 0, 1, 1], [], []>} : vector<8x128xbf16>, vector<128x128xbf16>, vector<8x128xf32> -> vector<8x128xf32>
    %273 = arith.truncf %270 : vector<8x128xf32> to vector<8x128xbf16>
    %cst_59 = arith.constant dense<0.000000e+00> : vector<8x256xf32>
    %274 = tpu.matmul %273, %23, %cst_59 {dimension_numbers = #tpu.dot_dimension_numbers<[1], [0], [0], [1], [0, 0, 1, 1], [], []>} : vector<8x128xbf16>, vector<128x256xbf16>, vector<8x256xf32> -> vector<8x256xf32>
    %275 = vector.extract_strided_slice %274 {offsets = [0, 0], sizes = [8, 128], strides = [1, 1]} : vector<8x256xf32> to vector<8x128xf32>
    %276 = arith.addf %275, %26 : vector<8x128xf32>
    %277 = arith.subf %269, %276 : vector<8x128xf32>
    %278 = arith.mulf %21, %277 : vector<8x128xf32>
    %279 = vector.extract_strided_slice %274 {offsets = [0, 128], sizes = [8, 128], strides = [1, 1]} : vector<8x256xf32> to vector<8x128xf32>
    %280 = arith.subf %272, %279 : vector<8x128xf32>
    %281 = arith.subf %280, %29 : vector<8x128xf32>
    %cst_60 = arith.constant 1.000000e-01 : f32
    %282 = vector.broadcast %cst_60 : f32 to vector<8x128xf32>
    %283 = arith.mulf %282, %17 : vector<8x128xf32>
    %284 = arith.mulf %270, %270 : vector<8x128xf32>
    %cst_61 = arith.constant 1.000000e+00 : f32
    %285 = vector.broadcast %cst_61 : f32 to vector<8x128xf32>
    %286 = arith.subf %285, %284 : vector<8x128xf32>
    %287 = arith.mulf %281, %286 : vector<8x128xf32>
    %288 = arith.subf %287, %278 : vector<8x128xf32>
    %289 = arith.mulf %283, %288 : vector<8x128xf32>
    %290 = arith.addf %269, %289 : vector<8x128xf32>
    %291 = math.tanh %290 : vector<8x128xf32>
    %c12_i32 = arith.constant 12 : i32
    %292 = arith.truncf %290 : vector<8x128xf32> to vector<8x128xbf16>
    %cst_62 = arith.constant dense<0.000000e+00> : vector<8x128xf32>
    %293 = tpu.matmul %292, %22, %cst_62 {dimension_numbers = #tpu.dot_dimension_numbers<[1], [0], [0], [1], [0, 0, 1, 1], [], []>} : vector<8x128xbf16>, vector<128x128xbf16>, vector<8x128xf32> -> vector<8x128xf32>
    %294 = arith.truncf %291 : vector<8x128xf32> to vector<8x128xbf16>
    %cst_63 = arith.constant dense<0.000000e+00> : vector<8x256xf32>
    %295 = tpu.matmul %294, %23, %cst_63 {dimension_numbers = #tpu.dot_dimension_numbers<[1], [0], [0], [1], [0, 0, 1, 1], [], []>} : vector<8x128xbf16>, vector<128x256xbf16>, vector<8x256xf32> -> vector<8x256xf32>
    %296 = vector.extract_strided_slice %295 {offsets = [0, 0], sizes = [8, 128], strides = [1, 1]} : vector<8x256xf32> to vector<8x128xf32>
    %297 = arith.addf %296, %26 : vector<8x128xf32>
    %298 = arith.subf %290, %297 : vector<8x128xf32>
    %299 = arith.mulf %21, %298 : vector<8x128xf32>
    %300 = vector.extract_strided_slice %295 {offsets = [0, 128], sizes = [8, 128], strides = [1, 1]} : vector<8x256xf32> to vector<8x128xf32>
    %301 = arith.subf %293, %300 : vector<8x128xf32>
    %302 = arith.subf %301, %29 : vector<8x128xf32>
    %cst_64 = arith.constant 1.000000e-01 : f32
    %303 = vector.broadcast %cst_64 : f32 to vector<8x128xf32>
    %304 = arith.mulf %303, %17 : vector<8x128xf32>
    %305 = arith.mulf %291, %291 : vector<8x128xf32>
    %cst_65 = arith.constant 1.000000e+00 : f32
    %306 = vector.broadcast %cst_65 : f32 to vector<8x128xf32>
    %307 = arith.subf %306, %305 : vector<8x128xf32>
    %308 = arith.mulf %302, %307 : vector<8x128xf32>
    %309 = arith.subf %308, %299 : vector<8x128xf32>
    %310 = arith.mulf %304, %309 : vector<8x128xf32>
    %311 = arith.addf %290, %310 : vector<8x128xf32>
    %312 = math.tanh %311 : vector<8x128xf32>
    %c13_i32 = arith.constant 13 : i32
    %313 = arith.truncf %311 : vector<8x128xf32> to vector<8x128xbf16>
    %cst_66 = arith.constant dense<0.000000e+00> : vector<8x128xf32>
    %314 = tpu.matmul %313, %22, %cst_66 {dimension_numbers = #tpu.dot_dimension_numbers<[1], [0], [0], [1], [0, 0, 1, 1], [], []>} : vector<8x128xbf16>, vector<128x128xbf16>, vector<8x128xf32> -> vector<8x128xf32>
    %315 = arith.truncf %312 : vector<8x128xf32> to vector<8x128xbf16>
    %cst_67 = arith.constant dense<0.000000e+00> : vector<8x256xf32>
    %316 = tpu.matmul %315, %23, %cst_67 {dimension_numbers = #tpu.dot_dimension_numbers<[1], [0], [0], [1], [0, 0, 1, 1], [], []>} : vector<8x128xbf16>, vector<128x256xbf16>, vector<8x256xf32> -> vector<8x256xf32>
    %317 = vector.extract_strided_slice %316 {offsets = [0, 0], sizes = [8, 128], strides = [1, 1]} : vector<8x256xf32> to vector<8x128xf32>
    %318 = arith.addf %317, %26 : vector<8x128xf32>
    %319 = arith.subf %311, %318 : vector<8x128xf32>
    %320 = arith.mulf %21, %319 : vector<8x128xf32>
    %321 = vector.extract_strided_slice %316 {offsets = [0, 128], sizes = [8, 128], strides = [1, 1]} : vector<8x256xf32> to vector<8x128xf32>
    %322 = arith.subf %314, %321 : vector<8x128xf32>
    %323 = arith.subf %322, %29 : vector<8x128xf32>
    %cst_68 = arith.constant 1.000000e-01 : f32
    %324 = vector.broadcast %cst_68 : f32 to vector<8x128xf32>
    %325 = arith.mulf %324, %17 : vector<8x128xf32>
    %326 = arith.mulf %312, %312 : vector<8x128xf32>
    %cst_69 = arith.constant 1.000000e+00 : f32
    %327 = vector.broadcast %cst_69 : f32 to vector<8x128xf32>
    %328 = arith.subf %327, %326 : vector<8x128xf32>
    %329 = arith.mulf %323, %328 : vector<8x128xf32>
    %330 = arith.subf %329, %320 : vector<8x128xf32>
    %331 = arith.mulf %325, %330 : vector<8x128xf32>
    %332 = arith.addf %311, %331 : vector<8x128xf32>
    %333 = math.tanh %332 : vector<8x128xf32>
    %c14_i32 = arith.constant 14 : i32
    %334 = arith.truncf %332 : vector<8x128xf32> to vector<8x128xbf16>
    %cst_70 = arith.constant dense<0.000000e+00> : vector<8x128xf32>
    %335 = tpu.matmul %334, %22, %cst_70 {dimension_numbers = #tpu.dot_dimension_numbers<[1], [0], [0], [1], [0, 0, 1, 1], [], []>} : vector<8x128xbf16>, vector<128x128xbf16>, vector<8x128xf32> -> vector<8x128xf32>
    %336 = arith.truncf %333 : vector<8x128xf32> to vector<8x128xbf16>
    %cst_71 = arith.constant dense<0.000000e+00> : vector<8x256xf32>
    %337 = tpu.matmul %336, %23, %cst_71 {dimension_numbers = #tpu.dot_dimension_numbers<[1], [0], [0], [1], [0, 0, 1, 1], [], []>} : vector<8x128xbf16>, vector<128x256xbf16>, vector<8x256xf32> -> vector<8x256xf32>
    %338 = vector.extract_strided_slice %337 {offsets = [0, 0], sizes = [8, 128], strides = [1, 1]} : vector<8x256xf32> to vector<8x128xf32>
    %339 = arith.addf %338, %26 : vector<8x128xf32>
    %340 = arith.subf %332, %339 : vector<8x128xf32>
    %341 = arith.mulf %21, %340 : vector<8x128xf32>
    %342 = vector.extract_strided_slice %337 {offsets = [0, 128], sizes = [8, 128], strides = [1, 1]} : vector<8x256xf32> to vector<8x128xf32>
    %343 = arith.subf %335, %342 : vector<8x128xf32>
    %344 = arith.subf %343, %29 : vector<8x128xf32>
    %cst_72 = arith.constant 1.000000e-01 : f32
    %345 = vector.broadcast %cst_72 : f32 to vector<8x128xf32>
    %346 = arith.mulf %345, %17 : vector<8x128xf32>
    %347 = arith.mulf %333, %333 : vector<8x128xf32>
    %cst_73 = arith.constant 1.000000e+00 : f32
    %348 = vector.broadcast %cst_73 : f32 to vector<8x128xf32>
    %349 = arith.subf %348, %347 : vector<8x128xf32>
    %350 = arith.mulf %344, %349 : vector<8x128xf32>
    %351 = arith.subf %350, %341 : vector<8x128xf32>
    %352 = arith.mulf %346, %351 : vector<8x128xf32>
    %353 = arith.addf %332, %352 : vector<8x128xf32>
    %354 = math.tanh %353 : vector<8x128xf32>
    %c15_i32 = arith.constant 15 : i32
    %355 = arith.truncf %353 : vector<8x128xf32> to vector<8x128xbf16>
    %cst_74 = arith.constant dense<0.000000e+00> : vector<8x128xf32>
    %356 = tpu.matmul %355, %22, %cst_74 {dimension_numbers = #tpu.dot_dimension_numbers<[1], [0], [0], [1], [0, 0, 1, 1], [], []>} : vector<8x128xbf16>, vector<128x128xbf16>, vector<8x128xf32> -> vector<8x128xf32>
    %357 = arith.truncf %354 : vector<8x128xf32> to vector<8x128xbf16>
    %cst_75 = arith.constant dense<0.000000e+00> : vector<8x256xf32>
    %358 = tpu.matmul %357, %23, %cst_75 {dimension_numbers = #tpu.dot_dimension_numbers<[1], [0], [0], [1], [0, 0, 1, 1], [], []>} : vector<8x128xbf16>, vector<128x256xbf16>, vector<8x256xf32> -> vector<8x256xf32>
    %359 = vector.extract_strided_slice %358 {offsets = [0, 0], sizes = [8, 128], strides = [1, 1]} : vector<8x256xf32> to vector<8x128xf32>
    %360 = arith.addf %359, %26 : vector<8x128xf32>
    %361 = arith.subf %353, %360 : vector<8x128xf32>
    %362 = arith.mulf %21, %361 : vector<8x128xf32>
    %363 = vector.extract_strided_slice %358 {offsets = [0, 128], sizes = [8, 128], strides = [1, 1]} : vector<8x256xf32> to vector<8x128xf32>
    %364 = arith.subf %356, %363 : vector<8x128xf32>
    %365 = arith.subf %364, %29 : vector<8x128xf32>
    %cst_76 = arith.constant 1.000000e-01 : f32
    %366 = vector.broadcast %cst_76 : f32 to vector<8x128xf32>
    %367 = arith.mulf %366, %17 : vector<8x128xf32>
    %368 = arith.mulf %354, %354 : vector<8x128xf32>
    %cst_77 = arith.constant 1.000000e+00 : f32
    %369 = vector.broadcast %cst_77 : f32 to vector<8x128xf32>
    %370 = arith.subf %369, %368 : vector<8x128xf32>
    %371 = arith.mulf %365, %370 : vector<8x128xf32>
    %372 = arith.subf %371, %362 : vector<8x128xf32>
    %373 = arith.mulf %367, %372 : vector<8x128xf32>
    %374 = arith.addf %353, %373 : vector<8x128xf32>
    %375 = math.tanh %374 : vector<8x128xf32>
    %c16_i32 = arith.constant 16 : i32
    %376 = arith.truncf %374 : vector<8x128xf32> to vector<8x128xbf16>
    %cst_78 = arith.constant dense<0.000000e+00> : vector<8x128xf32>
    %377 = tpu.matmul %376, %22, %cst_78 {dimension_numbers = #tpu.dot_dimension_numbers<[1], [0], [0], [1], [0, 0, 1, 1], [], []>} : vector<8x128xbf16>, vector<128x128xbf16>, vector<8x128xf32> -> vector<8x128xf32>
    %378 = arith.truncf %375 : vector<8x128xf32> to vector<8x128xbf16>
    %cst_79 = arith.constant dense<0.000000e+00> : vector<8x256xf32>
    %379 = tpu.matmul %378, %23, %cst_79 {dimension_numbers = #tpu.dot_dimension_numbers<[1], [0], [0], [1], [0, 0, 1, 1], [], []>} : vector<8x128xbf16>, vector<128x256xbf16>, vector<8x256xf32> -> vector<8x256xf32>
    %380 = vector.extract_strided_slice %379 {offsets = [0, 0], sizes = [8, 128], strides = [1, 1]} : vector<8x256xf32> to vector<8x128xf32>
    %381 = arith.addf %380, %26 : vector<8x128xf32>
    %382 = arith.subf %374, %381 : vector<8x128xf32>
    %383 = arith.mulf %21, %382 : vector<8x128xf32>
    %384 = vector.extract_strided_slice %379 {offsets = [0, 128], sizes = [8, 128], strides = [1, 1]} : vector<8x256xf32> to vector<8x128xf32>
    %385 = arith.subf %377, %384 : vector<8x128xf32>
    %386 = arith.subf %385, %29 : vector<8x128xf32>
    %cst_80 = arith.constant 1.000000e-01 : f32
    %387 = vector.broadcast %cst_80 : f32 to vector<8x128xf32>
    %388 = arith.mulf %387, %17 : vector<8x128xf32>
    %389 = arith.mulf %375, %375 : vector<8x128xf32>
    %cst_81 = arith.constant 1.000000e+00 : f32
    %390 = vector.broadcast %cst_81 : f32 to vector<8x128xf32>
    %391 = arith.subf %390, %389 : vector<8x128xf32>
    %392 = arith.mulf %386, %391 : vector<8x128xf32>
    %393 = arith.subf %392, %383 : vector<8x128xf32>
    %394 = arith.mulf %388, %393 : vector<8x128xf32>
    %395 = arith.addf %374, %394 : vector<8x128xf32>
    %396 = math.tanh %395 : vector<8x128xf32>
    %c17_i32 = arith.constant 17 : i32
    %397 = arith.truncf %395 : vector<8x128xf32> to vector<8x128xbf16>
    %cst_82 = arith.constant dense<0.000000e+00> : vector<8x128xf32>
    %398 = tpu.matmul %397, %22, %cst_82 {dimension_numbers = #tpu.dot_dimension_numbers<[1], [0], [0], [1], [0, 0, 1, 1], [], []>} : vector<8x128xbf16>, vector<128x128xbf16>, vector<8x128xf32> -> vector<8x128xf32>
    %399 = arith.truncf %396 : vector<8x128xf32> to vector<8x128xbf16>
    %cst_83 = arith.constant dense<0.000000e+00> : vector<8x256xf32>
    %400 = tpu.matmul %399, %23, %cst_83 {dimension_numbers = #tpu.dot_dimension_numbers<[1], [0], [0], [1], [0, 0, 1, 1], [], []>} : vector<8x128xbf16>, vector<128x256xbf16>, vector<8x256xf32> -> vector<8x256xf32>
    %401 = vector.extract_strided_slice %400 {offsets = [0, 0], sizes = [8, 128], strides = [1, 1]} : vector<8x256xf32> to vector<8x128xf32>
    %402 = arith.addf %401, %26 : vector<8x128xf32>
    %403 = arith.subf %395, %402 : vector<8x128xf32>
    %404 = arith.mulf %21, %403 : vector<8x128xf32>
    %405 = vector.extract_strided_slice %400 {offsets = [0, 128], sizes = [8, 128], strides = [1, 1]} : vector<8x256xf32> to vector<8x128xf32>
    %406 = arith.subf %398, %405 : vector<8x128xf32>
    %407 = arith.subf %406, %29 : vector<8x128xf32>
    %cst_84 = arith.constant 1.000000e-01 : f32
    %408 = vector.broadcast %cst_84 : f32 to vector<8x128xf32>
    %409 = arith.mulf %408, %17 : vector<8x128xf32>
    %410 = arith.mulf %396, %396 : vector<8x128xf32>
    %cst_85 = arith.constant 1.000000e+00 : f32
    %411 = vector.broadcast %cst_85 : f32 to vector<8x128xf32>
    %412 = arith.subf %411, %410 : vector<8x128xf32>
    %413 = arith.mulf %407, %412 : vector<8x128xf32>
    %414 = arith.subf %413, %404 : vector<8x128xf32>
    %415 = arith.mulf %409, %414 : vector<8x128xf32>
    %416 = arith.addf %395, %415 : vector<8x128xf32>
    %417 = math.tanh %416 : vector<8x128xf32>
    %c18_i32 = arith.constant 18 : i32
    %418 = arith.truncf %416 : vector<8x128xf32> to vector<8x128xbf16>
    %cst_86 = arith.constant dense<0.000000e+00> : vector<8x128xf32>
    %419 = tpu.matmul %418, %22, %cst_86 {dimension_numbers = #tpu.dot_dimension_numbers<[1], [0], [0], [1], [0, 0, 1, 1], [], []>} : vector<8x128xbf16>, vector<128x128xbf16>, vector<8x128xf32> -> vector<8x128xf32>
    %420 = arith.truncf %417 : vector<8x128xf32> to vector<8x128xbf16>
    %cst_87 = arith.constant dense<0.000000e+00> : vector<8x256xf32>
    %421 = tpu.matmul %420, %23, %cst_87 {dimension_numbers = #tpu.dot_dimension_numbers<[1], [0], [0], [1], [0, 0, 1, 1], [], []>} : vector<8x128xbf16>, vector<128x256xbf16>, vector<8x256xf32> -> vector<8x256xf32>
    %422 = vector.extract_strided_slice %421 {offsets = [0, 0], sizes = [8, 128], strides = [1, 1]} : vector<8x256xf32> to vector<8x128xf32>
    %423 = arith.addf %422, %26 : vector<8x128xf32>
    %424 = arith.subf %416, %423 : vector<8x128xf32>
    %425 = arith.mulf %21, %424 : vector<8x128xf32>
    %426 = vector.extract_strided_slice %421 {offsets = [0, 128], sizes = [8, 128], strides = [1, 1]} : vector<8x256xf32> to vector<8x128xf32>
    %427 = arith.subf %419, %426 : vector<8x128xf32>
    %428 = arith.subf %427, %29 : vector<8x128xf32>
    %cst_88 = arith.constant 1.000000e-01 : f32
    %429 = vector.broadcast %cst_88 : f32 to vector<8x128xf32>
    %430 = arith.mulf %429, %17 : vector<8x128xf32>
    %431 = arith.mulf %417, %417 : vector<8x128xf32>
    %cst_89 = arith.constant 1.000000e+00 : f32
    %432 = vector.broadcast %cst_89 : f32 to vector<8x128xf32>
    %433 = arith.subf %432, %431 : vector<8x128xf32>
    %434 = arith.mulf %428, %433 : vector<8x128xf32>
    %435 = arith.subf %434, %425 : vector<8x128xf32>
    %436 = arith.mulf %430, %435 : vector<8x128xf32>
    %437 = arith.addf %416, %436 : vector<8x128xf32>
    %438 = math.tanh %437 : vector<8x128xf32>
    %439 = arith.truncf %438 : vector<8x128xf32> to vector<8x128xbf16>
    %cst_90 = arith.constant dense<0.000000e+00> : vector<8x256xf32>
    %440 = tpu.matmul %439, %23, %cst_90 {dimension_numbers = #tpu.dot_dimension_numbers<[1], [0], [0], [1], [0, 0, 1, 1], [], []>} : vector<8x128xbf16>, vector<128x256xbf16>, vector<8x256xf32> -> vector<8x256xf32>
    %441 = vector.extract_strided_slice %440 {offsets = [0, 0], sizes = [8, 128], strides = [1, 1]} : vector<8x256xf32> to vector<8x128xf32>
    %442 = arith.addf %441, %26 : vector<8x128xf32>
    %443 = arith.subf %437, %442 : vector<8x128xf32>
    %444 = arith.mulf %21, %443 : vector<8x128xf32>
    %c0_91 = arith.constant 0 : index
    %c0_92 = arith.constant 0 : index
    %445 = vector.load %arg5[%c0_91, %c0_92] : memref<8x128xf32, #tpu.memory_space<vmem>>, vector<8x128xf32>
    tpu.vector_store %arg5[%c0_91, %c0_92], %437 {strides = array<i32>} : memref<8x128xf32, #tpu.memory_space<vmem>>, vector<8x128xf32>,
    %c0_93 = arith.constant 0 : index
    %c0_94 = arith.constant 0 : index
    %446 = vector.load %arg6[%c0_93, %c0_94] : memref<8x128xf32, #tpu.memory_space<vmem>>, vector<8x128xf32>
    tpu.vector_store %arg6[%c0_93, %c0_94], %444 {strides = array<i32>} : memref<8x128xf32, #tpu.memory_space<vmem>>, vector<8x128xf32>,
    return
  }
}

</mosaic_0001>

<llo_original>
// kernel: tpu_custom_call.1
$region0: #{tpu_custom_call.1}
  #allocation0 [shape = 'u32[]', space=smem, size = 0x4, offset = 0x4, fixed_abs, tag = 'smem constant byte address 0x4 - core index']
  #allocation1 [shape = 'u32[144,128]{1,0:T(1,128)}', space=vmem, size = 0x12000, scoped, tag = 'internal scratch']
  %s0 = inlined_call_operand.hbm [shape: f32[8,128], index: 0, kind: input, shape index: {}]
  %s1 = inlined_call_operand.hbm [shape: bf16[128,128], index: 1, kind: input, shape index: {}]
  %s2 = inlined_call_operand.hbm [shape: bf16[128,256], index: 2, kind: input, shape index: {}]
  %s3 = inlined_call_operand.vmem [shape: f32[1,128], index: 3, kind: input, shape index: {}]
  %s4 = inlined_call_operand.vmem [shape: f32[1,128], index: 4, kind: input, shape index: {}]
  %s5 = inlined_call_operand.hbm [shape: f32[8,128], index: 5, kind: output, shape index: {0}]
  %s6 = inlined_call_operand.hbm [shape: f32[8,128], index: 6, kind: output, shape index: {1}]
  %7 = xla_tuple %s5, %s6
  %s8 = sld [smem:[#allocation0]]
  $region50: #{tpu_custom_call.1} parent=0
    _
  %s10 = ssub.s32 1, %s8
  %s11 = scalar_select 0, %s10, %s8
  $region1: #{tpu_custom_call.1} parent=0
    #allocation2 [shape = 'u8[4096]{0}', space=vmem, size = 0x1000, scoped, tag = 'input window, operand 0, single buffered']
    #allocation3 [shape = 's32[1]{0}', space=sflag, size = 0x4, scoped, tag = 'scoped memory for tpu_custom_call.1']
    #allocation4 [shape = 's32[1]{0}', space=sflag, size = 0x4, scoped, tag = 'scoped memory for tpu_custom_call.1']
    #allocation5 [shape = 'u8[32768]{0}', space=vmem, size = 0x8000, scoped, tag = 'input window, operand 1, single buffered']
    #allocation6 [shape = 's32[1]{0}', space=sflag, size = 0x4, scoped, tag = 'scoped memory for tpu_custom_call.1']
    #allocation7 [shape = 'u8[65536]{0}', space=vmem, size = 0x10000, scoped, tag = 'input window, operand 2, single buffered']
    #allocation8 [shape = 'u8[4096]{0}', space=vmem, size = 0x1000, scoped, tag = 'output window, operand 0, single buffered']
    #allocation9 [shape = 'u8[4096]{0}', space=vmem, size = 0x1000, scoped, tag = 'output window, operand 1, single buffered']
    #allocation10 [shape = 's32[1]{0}', space=sflag, size = 0x4, scoped, tag = 'scoped memory for tpu_custom_call.1']
    %12 = vsyncpa [#allocation3], 0
    %13 = vsyncpa [#allocation6], 0
    %14 = vsyncpa [#allocation4], 0
    %15 = vsyncpa [#allocation10], 0
    // Predicated region
    $region2: #{tpu_custom_call.1} parent=1 // pred_check
      _
    $region3: #{tpu_custom_call.1} parent=1 // pred_check_branch
      %17 = sbr.rel (0) target = $region5
    $region4: #{tpu_custom_call.1} parent=1 // pred_region
      %s19 = ssub.s32 128, 128
      %20 = vsyncadd [#allocation3], %s19
      %s22 = sshll.u32 [#allocation2], 4
      %s23 = int_to_ptr.vmem [resolvable:$true] %s22
      %25 = dma.hbm_to_vmem [thread:$0]  %s0, 128, %s23, [#allocation3]
    $region5: #{tpu_custom_call.1} parent=1 // pred_fallthru
      _
    // Predicated region
    $region6: #{tpu_custom_call.1} parent=1 // pred_check
      _
    $region7: #{tpu_custom_call.1} parent=1 // pred_check_branch
      %27 = sbr.rel (0) target = $region9
    $region8: #{tpu_custom_call.1} parent=1 // pred_region
      %s29 = ssub.s32 1024, 1024
      %30 = vsyncadd [#allocation6], %s29
      %s31 = sshll.u32 [#allocation5], 4
      %s32 = int_to_ptr.vmem [resolvable:$true] %s31
      %37 = dma.hbm_to_vmem [thread:$0]  %s1, 1024, %s32, [#allocation6], 64, 64, 4
    $region9: #{tpu_custom_call.1} parent=1 // pred_fallthru
      _
    // Predicated region
    $region10: #{tpu_custom_call.1} parent=1 // pred_check
      _
    $region11: #{tpu_custom_call.1} parent=1 // pred_check_branch
      %39 = sbr.rel (0) target = $region13
    $region12: #{tpu_custom_call.1} parent=1 // pred_region
      %s41 = ssub.s32 2048, 2048
      %42 = vsyncadd [#allocation6], %s41
      %s43 = sshll.u32 [#allocation7], 4
      %s44 = int_to_ptr.vmem [resolvable:$true] %s43
      %49 = dma.hbm_to_vmem [thread:$0]  %s2, 2048, %s44, [#allocation6], 128, 128, 8
    $region13: #{tpu_custom_call.1} parent=1 // pred_fallthru
      _
    // Predicated region
    $region14: #{tpu_custom_call.1} parent=1 // pred_check
      _
    $region15: #{tpu_custom_call.1} parent=1 // pred_check_branch
      %51 = sbr.rel (0) target = $region17
    $region16: #{tpu_custom_call.1} parent=1 // pred_region
      _
    $region17: #{tpu_custom_call.1} parent=1 // pred_fallthru
      _
    // Predicated region
    $region18: #{tpu_custom_call.1} parent=1 // pred_check
      _
    $region19: #{tpu_custom_call.1} parent=1 // pred_check_branch
      %53 = sbr.rel (0) target = $region21
    $region20: #{tpu_custom_call.1} parent=1 // pred_region
      _
    $region21: #{tpu_custom_call.1} parent=1 // pred_fallthru
      _
    // Predicated region
    $region22: #{tpu_custom_call.1} parent=1 // pred_check
      _
    $region23: #{tpu_custom_call.1} parent=1 // pred_check_branch
      %55 = sbr.rel (0) target = $region25
    $region24: #{tpu_custom_call.1} parent=1 // pred_region
      %56 = dma.done [#allocation3], 128
    $region25: #{tpu_custom_call.1} parent=1 // pred_fallthru
      _
    // Predicated region
    $region26: #{tpu_custom_call.1} parent=1 // pred_check
      _
    $region27: #{tpu_custom_call.1} parent=1 // pred_check_branch
      %58 = sbr.rel (0) target = $region29
    $region28: #{tpu_custom_call.1} parent=1 // pred_region
      %59 = dma.done [#allocation6], 1024
    $region29: #{tpu_custom_call.1} parent=1 // pred_fallthru
      _
    // Predicated region
    $region30: #{tpu_custom_call.1} parent=1 // pred_check
      _
    $region31: #{tpu_custom_call.1} parent=1 // pred_check_branch
      %61 = sbr.rel (0) target = $region33
    $region32: #{tpu_custom_call.1} parent=1 // pred_region
      %62 = dma.done [#allocation6], 2048
    $region33: #{tpu_custom_call.1} parent=1 // pred_fallthru
      _
    %v64 = vlaneseq
    %v65 = vand.u32 %v64, 127
    %vm66 = vcmp.ge.s32.totalorder %v65, 64
    %vm67 = vcmp.lt.s32.totalorder %v65, 96
    %vm68 = vmand %vm66, %vm67
    %vm69 = vcmp.ge.s32.totalorder %v65, 96
    %vm70 = vcmp.lt.s32.totalorder %v65, 112
    %vm71 = vmand %vm69, %vm70
    %vm72 = vmand %vm66, %vm70
    %v73 = vsel %vm72, 1, 0
    %v74 = vcvt.s32.f32 %v73
    %v75 = vsel %vm67, 1, 0
    %v76 = vcvt.s32.f32 %v75
    %v77 = vld [vmem:[#allocation5] sm:$0xf]
    %v78 = vld [vmem:[#allocation5 + $0x4] sm:$0xf]
    %v79 = vld [vmem:[#allocation5 + $0x8] sm:$0xf]
    %v80 = vld [vmem:[#allocation5 + $0xc] sm:$0xf]
    %v81 = vld [vmem:[#allocation5 + $0x10] sm:$0xf]
    %v82 = vld [vmem:[#allocation5 + $0x14] sm:$0xf]
    %v83 = vld [vmem:[#allocation5 + $0x18] sm:$0xf]
    %v84 = vld [vmem:[#allocation5 + $0x1c] sm:$0xf]
    %v85 = vld [vmem:[#allocation5 + $0x20] sm:$0xf]
    %v86 = vld [vmem:[#allocation5 + $0x24] sm:$0xf]
    %v87 = vld [vmem:[#allocation5 + $0x28] sm:$0xf]
    %v88 = vld [vmem:[#allocation5 + $0x2c] sm:$0xf]
    %v89 = vld [vmem:[#allocation5 + $0x30] sm:$0xf]
    %v90 = vld [vmem:[#allocation5 + $0x34] sm:$0xf]
    %v91 = vld [vmem:[#allocation5 + $0x38] sm:$0xf]
    %v92 = vld [vmem:[#allocation5 + $0x3c] sm:$0xf]
    %v93 = vld [vmem:[#allocation7] sm:$0xff]
    %v94 = vld [vmem:[#allocation7 + $0x8] sm:$0xff]
    %v95 = vld [vmem:[#allocation7 + $0x10] sm:$0xff]
    %v96 = vld [vmem:[#allocation7 + $0x18] sm:$0xff]
    %v97 = vld [vmem:[#allocation7 + $0x20] sm:$0xff]
    %v98 = vld [vmem:[#allocation7 + $0x28] sm:$0xff]
    %v99 = vld [vmem:[#allocation7 + $0x30] sm:$0xff]
    %v100 = vld [vmem:[#allocation7 + $0x38] sm:$0xff]
    %v101 = vld [vmem:[#allocation7 + $0x40] sm:$0xff]
    %v102 = vld [vmem:[#allocation7 + $0x48] sm:$0xff]
    %v103 = vld [vmem:[#allocation7 + $0x50] sm:$0xff]
    %v104 = vld [vmem:[#allocation7 + $0x58] sm:$0xff]
    %v105 = vld [vmem:[#allocation7 + $0x60] sm:$0xff]
    %v106 = vld [vmem:[#allocation7 + $0x68] sm:$0xff]
    %v107 = vld [vmem:[#allocation7 + $0x70] sm:$0xff]
    %v108 = vld [vmem:[#allocation7 + $0x78] sm:$0xff]
    %v109 = vld [vmem:[%s3] sm:$0x1]
    %v111 = vlaneseq
    %v112 = vshrl.u32 %v111, 7
    %v113 = vsub.s32 0, %v112
    %v114 = vrot.slane %v109, %v113
    %v116 = vld [vmem:[%s4] sm:$0x1]
    %v118 = vlaneseq
    %v119 = vshrl.u32 %v118, 7
    %v120 = vsub.s32 0, %v119
    %v121 = vrot.slane %v116, %v120
    %v123 = vld [vmem:[#allocation2] sm:$0xff]
    %v124 = vpack.c.bf16 %v123, %v123
    %v141 = vunpack.c.l.b16 %v77
    %v142 = vunpack.c.l.b16 %v78
    %v143 = vunpack.c.l.b16 %v79
    %v144 = vunpack.c.l.b16 %v80
    %v145 = vunpack.c.l.b16 %v81
    %v146 = vunpack.c.l.b16 %v82
    %v147 = vunpack.c.l.b16 %v83
    %v148 = vunpack.c.l.b16 %v84
    %v149 = vunpack.c.l.b16 %v85
    %v150 = vunpack.c.l.b16 %v86
    %v151 = vunpack.c.l.b16 %v87
    %v152 = vunpack.c.l.b16 %v88
    %v153 = vunpack.c.l.b16 %v89
    %v154 = vunpack.c.l.b16 %v90
    %v155 = vunpack.c.l.b16 %v91
    %v156 = vunpack.c.l.b16 %v92
    %v157 = vpack.c.b16 %v142, %v141
    %v158 = vpack.c.b16 %v144, %v143
    %v159 = vpack.c.b16 %v146, %v145
    %v160 = vpack.c.b16 %v148, %v147
    %v161 = vpack.c.b16 %v150, %v149
    %v162 = vpack.c.b16 %v152, %v151
    %v163 = vpack.c.b16 %v154, %v153
    %v164 = vpack.c.b16 %v156, %v155
    %173 = vmatprep.subr.bf16.mxu0 0
    %174 = vmatpush1.bf16.msra.mxu0 %v157
    %175 = vmatprep.subr.bf16.mxu0 0
    %176 = vmatpush1.bf16.msra.mxu0 %v158
    %177 = vmatprep.subr.bf16.mxu0 0
    %178 = vmatpush1.bf16.msra.mxu0 %v159
    %179 = vmatprep.subr.bf16.mxu0 0
    %180 = vmatpush1.bf16.msra.mxu0 %v160
    %181 = vmatprep.subr.bf16.mxu0 0
    %182 = vmatpush1.bf16.msra.mxu0 %v161
    %183 = vmatprep.subr.bf16.mxu0 0
    %184 = vmatpush1.bf16.msra.mxu0 %v162
    %185 = vmatprep.subr.bf16.mxu0 0
    %186 = vmatpush1.bf16.msra.mxu0 %v163
    %187 = vmatprep.subr.bf16.mxu0 0
    %188 = vmatpush1.bf16.msra.mxu0 %v164
    %189 = vmatprep.subr.bf16.mxu0 0
    %190 = vmatpush1.bf16.msra.mxu0 0
    %191 = vmatprep.subr.bf16.mxu0 0
    %192 = vmatpush1.bf16.msra.mxu0 0
    %193 = vmatprep.subr.bf16.mxu0 0
    %194 = vmatpush1.bf16.msra.mxu0 0
    %195 = vmatprep.subr.bf16.mxu0 0
    %196 = vmatpush1.bf16.msra.mxu0 0
    %197 = vmatprep.subr.bf16.mxu0 0
    %198 = vmatpush1.bf16.msra.mxu0 0
    %199 = vmatprep.subr.bf16.mxu0 0
    %200 = vmatpush1.bf16.msra.mxu0 0
    %201 = vmatprep.subr.bf16.mxu0 0
    %202 = vmatpush1.bf16.msra.mxu0 0
    %203 = vmatprep.subr.bf16.mxu0 0
    %204 = vmatpush1.bf16.msra.mxu0 0
    %205 = vmatprep.mubr.bf16.mxu0 0
    %206 = vmatmul.mubr.bf16.gmra.mrb[0].mxu0 %v124
    %v207 = vpop.f32.mrb[0].mxu0
    %v208 = vadd.f32 0.0, %v207
    %v209 = vpop.f32.mrb[0].mxu0
    %v210 = vpop.f32.mrb[0].mxu0
    %v211 = vpop.f32.mrb[0].mxu0
    %212 = vdwg.mxu0
    %v213 = vtanh.pop %v208
    %v214 = vsel %vm68, %v213, %v123
    %v215 = vpack.c.bf16 %v214, %v214
    %216 = vmatprep.subr.bf16.mxu0 0
    %217 = vmatpush1.bf16.msra.mxu0 %v157
    %218 = vmatprep.subr.bf16.mxu0 0
    %219 = vmatpush1.bf16.msra.mxu0 %v158
    %220 = vmatprep.subr.bf16.mxu0 0
    %221 = vmatpush1.bf16.msra.mxu0 %v159
    %222 = vmatprep.subr.bf16.mxu0 0
    %223 = vmatpush1.bf16.msra.mxu0 %v160
    %224 = vmatprep.subr.bf16.mxu0 0
    %225 = vmatpush1.bf16.msra.mxu0 %v161
    %226 = vmatprep.subr.bf16.mxu0 0
    %227 = vmatpush1.bf16.msra.mxu0 %v162
    %228 = vmatprep.subr.bf16.mxu0 0
    %229 = vmatpush1.bf16.msra.mxu0 %v163
    %230 = vmatprep.subr.bf16.mxu0 0
    %231 = vmatpush1.bf16.msra.mxu0 %v164
    %232 = vmatprep.subr.bf16.mxu0 0
    %233 = vmatpush1.bf16.msra.mxu0 0
    %234 = vmatprep.subr.bf16.mxu0 0
    %235 = vmatpush1.bf16.msra.mxu0 0
    %236 = vmatprep.subr.bf16.mxu0 0
    %237 = vmatpush1.bf16.msra.mxu0 0
    %238 = vmatprep.subr.bf16.mxu0 0
    %239 = vmatpush1.bf16.msra.mxu0 0
    %240 = vmatprep.subr.bf16.mxu0 0
    %241 = vmatpush1.bf16.msra.mxu0 0
    %242 = vmatprep.subr.bf16.mxu0 0
    %243 = vmatpush1.bf16.msra.mxu0 0
    %244 = vmatprep.subr.bf16.mxu0 0
    %245 = vmatpush1.bf16.msra.mxu0 0
    %246 = vmatprep.subr.bf16.mxu0 0
    %247 = vmatpush1.bf16.msra.mxu0 0
    %248 = vmatprep.mubr.bf16.mxu0 0
    %249 = vmatmul.mubr.bf16.gmra.mrb[0].mxu0 %v215
    %v250 = vpop.f32.mrb[0].mxu0
    %v251 = vadd.f32 0.0, %v250
    %v252 = vpop.f32.mrb[0].mxu0
    %v253 = vpop.f32.mrb[0].mxu0
    %v254 = vpop.f32.mrb[0].mxu0
    %255 = vdwg.mxu0
    %v256 = vtanh.pop %v251
    %v257 = vsel %vm71, %v256, %v214
    %v258 = vtanh.pop %v257
    %v259 = vpack.c.bf16 %v257, %v257
    %260 = vmatprep.subr.bf16.mxu0 0
    %261 = vmatpush1.bf16.msra.mxu0 %v157
    %262 = vmatprep.subr.bf16.mxu0 0
    %263 = vmatpush1.bf16.msra.mxu0 %v158
    %264 = vmatprep.subr.bf16.mxu0 0
    %265 = vmatpush1.bf16.msra.mxu0 %v159
    %266 = vmatprep.subr.bf16.mxu0 0
    %267 = vmatpush1.bf16.msra.mxu0 %v160
    %268 = vmatprep.subr.bf16.mxu0 0
    %269 = vmatpush1.bf16.msra.mxu0 %v161
    %270 = vmatprep.subr.bf16.mxu0 0
    %271 = vmatpush1.bf16.msra.mxu0 %v162
    %272 = vmatprep.subr.bf16.mxu0 0
    %273 = vmatpush1.bf16.msra.mxu0 %v163
    %274 = vmatprep.subr.bf16.mxu0 0
    %275 = vmatpush1.bf16.msra.mxu0 %v164
    %276 = vmatprep.subr.bf16.mxu0 0
    %277 = vmatpush1.bf16.msra.mxu0 0
    %278 = vmatprep.subr.bf16.mxu0 0
    %279 = vmatpush1.bf16.msra.mxu0 0
    %280 = vmatprep.subr.bf16.mxu0 0
    %281 = vmatpush1.bf16.msra.mxu0 0
    %282 = vmatprep.subr.bf16.mxu0 0
    %283 = vmatpush1.bf16.msra.mxu0 0
    %284 = vmatprep.subr.bf16.mxu0 0
    %285 = vmatpush1.bf16.msra.mxu0 0
    %286 = vmatprep.subr.bf16.mxu0 0
    %287 = vmatpush1.bf16.msra.mxu0 0
    %288 = vmatprep.subr.bf16.mxu0 0
    %289 = vmatpush1.bf16.msra.mxu0 0
    %290 = vmatprep.subr.bf16.mxu0 0
    %291 = vmatpush1.bf16.msra.mxu0 0
    %292 = vmatprep.mubr.bf16.mxu0 0
    %293 = vmatmul.mubr.bf16.gmra.mrb[0].mxu0 %v259
    %v294 = vpop.f32.mrb[0].mxu0
    %v295 = vadd.f32 0.0, %v294
    %v296 = vpop.f32.mrb[0].mxu0
    %v297 = vpop.f32.mrb[0].mxu0
    %v298 = vpop.f32.mrb[0].mxu0
    %299 = vdwg.mxu0
    %v300 = vpack.c.bf16 %v258, %v258
    %v317 = vunpack.c.l.b16 %v93
    %v318 = vunpack.c.h.b16 %v93
    %v319 = vunpack.c.l.b16 %v94
    %v320 = vunpack.c.h.b16 %v94
    %v321 = vunpack.c.l.b16 %v95
    %v322 = vunpack.c.h.b16 %v95
    %v323 = vunpack.c.l.b16 %v96
    %v324 = vunpack.c.h.b16 %v96
    %v325 = vunpack.c.l.b16 %v97
    %v326 = vunpack.c.h.b16 %v97
    %v327 = vunpack.c.l.b16 %v98
    %v328 = vunpack.c.h.b16 %v98
    %v329 = vunpack.c.l.b16 %v99
    %v330 = vunpack.c.h.b16 %v99
    %v331 = vunpack.c.l.b16 %v100
    %v332 = vunpack.c.h.b16 %v100
    %v333 = vunpack.c.l.b16 %v101
    %v334 = vunpack.c.h.b16 %v101
    %v335 = vunpack.c.l.b16 %v102
    %v336 = vunpack.c.h.b16 %v102
    %v337 = vunpack.c.l.b16 %v103
    %v338 = vunpack.c.h.b16 %v103
    %v339 = vunpack.c.l.b16 %v104
    %v340 = vunpack.c.h.b16 %v104
    %v341 = vunpack.c.l.b16 %v105
    %v342 = vunpack.c.h.b16 %v105
    %v343 = vunpack.c.l.b16 %v106
    %v344 = vunpack.c.h.b16 %v106
    %v345 = vunpack.c.l.b16 %v107
    %v346 = vunpack.c.h.b16 %v107
    %v347 = vunpack.c.l.b16 %v108
    %v348 = vunpack.c.h.b16 %v108
    %v349 = vpack.c.b16 %v319, %v317
    %v350 = vpack.c.b16 %v320, %v318
    %v351 = vpack.c.b16 %v323, %v321
    %v352 = vpack.c.b16 %v324, %v322
    %v353 = vpack.c.b16 %v327, %v325
    %v354 = vpack.c.b16 %v328, %v326
    %v355 = vpack.c.b16 %v331, %v329
    %v356 = vpack.c.b16 %v332, %v330
    %v357 = vpack.c.b16 %v335, %v333
    %v358 = vpack.c.b16 %v336, %v334
    %v359 = vpack.c.b16 %v339, %v337
    %v360 = vpack.c.b16 %v340, %v338
    %v361 = vpack.c.b16 %v343, %v341
    %v362 = vpack.c.b16 %v344, %v342
    %v363 = vpack.c.b16 %v347, %v345
    %v364 = vpack.c.b16 %v348, %v346
    %381 = vmatprep.subr.bf16.mxu0 %v350
    %382 = vmatpush1.bf16.msra.mxu0 %v349
    %383 = vmatprep.subr.bf16.mxu0 %v352
    %384 = vmatpush1.bf16.msra.mxu0 %v351
    %385 = vmatprep.subr.bf16.mxu0 %v354
    %386 = vmatpush1.bf16.msra.mxu0 %v353
    %387 = vmatprep.subr.bf16.mxu0 %v356
    %388 = vmatpush1.bf16.msra.mxu0 %v355
    %389 = vmatprep.subr.bf16.mxu0 %v358
    %390 = vmatpush1.bf16.msra.mxu0 %v357
    %391 = vmatprep.subr.bf16.mxu0 %v360
    %392 = vmatpush1.bf16.msra.mxu0 %v359
    %393 = vmatprep.subr.bf16.mxu0 %v362
    %394 = vmatpush1.bf16.msra.mxu0 %v361
    %395 = vmatprep.subr.bf16.mxu0 %v364
    %396 = vmatpush1.bf16.msra.mxu0 %v363
    %397 = vmatprep.subr.bf16.mxu0 0
    %398 = vmatpush1.bf16.msra.mxu0 0
    %399 = vmatprep.subr.bf16.mxu0 0
    %400 = vmatpush1.bf16.msra.mxu0 0
    %401 = vmatprep.subr.bf16.mxu0 0
    %402 = vmatpush1.bf16.msra.mxu0 0
    %403 = vmatprep.subr.bf16.mxu0 0
    %404 = vmatpush1.bf16.msra.mxu0 0
    %405 = vmatprep.subr.bf16.mxu0 0
    %406 = vmatpush1.bf16.msra.mxu0 0
    %407 = vmatprep.subr.bf16.mxu0 0
    %408 = vmatpush1.bf16.msra.mxu0 0
    %409 = vmatprep.subr.bf16.mxu0 0
    %410 = vmatpush1.bf16.msra.mxu0 0
    %411 = vmatprep.subr.bf16.mxu0 0
    %412 = vmatpush1.bf16.msra.mxu0 0
    %413 = vmatprep.mubr.bf16.mxu0 0
    %414 = vmatmul.mubr.bf16.gmra.mrb[0].mxu0 %v300
    %v415 = vpop.f32.mrb[0].mxu0
    %v416 = vadd.f32 0.0, %v415
    %v417 = vpop.f32.mrb[0].mxu0
    %v418 = vadd.f32 0.0, %v417
    %v419 = vpop.f32.mrb[0].mxu0
    %v420 = vpop.f32.mrb[0].mxu0
    %421 = vdwg.mxu0
    %v422 = vadd.f32 %v416, %v114
    %v423 = vsub.f32 %v257, %v422
    %v424 = vmul.f32 %v76, %v423
    %v425 = vsub.f32 %v295, %v418
    %v426 = vsub.f32 %v425, %v121
    %v427 = vmul.f32 %v74, 0.1
    %v428 = vmul.f32 %v258, %v258
    %v429 = vsub.f32 1.0, %v428
    %v430 = vmul.f32 %v426, %v429
    %v431 = vsub.f32 %v430, %v424
    %v432 = vmul.f32 %v427, %v431
    %v433 = vadd.f32 %v257, %v432
    %v434 = vtanh.pop %v433
    %v435 = vpack.c.bf16 %v433, %v433
    %436 = vmatprep.subr.bf16.mxu0 0
    %437 = vmatpush1.bf16.msra.mxu0 %v157
    %438 = vmatprep.subr.bf16.mxu0 0
    %439 = vmatpush1.bf16.msra.mxu0 %v158
    %440 = vmatprep.subr.bf16.mxu0 0
    %441 = vmatpush1.bf16.msra.mxu0 %v159
    %442 = vmatprep.subr.bf16.mxu0 0
    %443 = vmatpush1.bf16.msra.mxu0 %v160
    %444 = vmatprep.subr.bf16.mxu0 0
    %445 = vmatpush1.bf16.msra.mxu0 %v161
    %446 = vmatprep.subr.bf16.mxu0 0
    %447 = vmatpush1.bf16.msra.mxu0 %v162
    %448 = vmatprep.subr.bf16.mxu0 0
    %449 = vmatpush1.bf16.msra.mxu0 %v163
    %450 = vmatprep.subr.bf16.mxu0 0
    %451 = vmatpush1.bf16.msra.mxu0 %v164
    %452 = vmatprep.subr.bf16.mxu0 0
    %453 = vmatpush1.bf16.msra.mxu0 0
    %454 = vmatprep.subr.bf16.mxu0 0
    %455 = vmatpush1.bf16.msra.mxu0 0
    %456 = vmatprep.subr.bf16.mxu0 0
    %457 = vmatpush1.bf16.msra.mxu0 0
    %458 = vmatprep.subr.bf16.mxu0 0
    %459 = vmatpush1.bf16.msra.mxu0 0
    %460 = vmatprep.subr.bf16.mxu0 0
    %461 = vmatpush1.bf16.msra.mxu0 0
    %462 = vmatprep.subr.bf16.mxu0 0
    %463 = vmatpush1.bf16.msra.mxu0 0
    %464 = vmatprep.subr.bf16.mxu0 0
    %465 = vmatpush1.bf16.msra.mxu0 0
    %466 = vmatprep.subr.bf16.mxu0 0
    %467 = vmatpush1.bf16.msra.mxu0 0
    %468 = vmatprep.mubr.bf16.mxu0 0
    %469 = vmatmul.mubr.bf16.gmra.mrb[0].mxu0 %v435
    %v470 = vpop.f32.mrb[0].mxu0
    %v471 = vadd.f32 0.0, %v470
    %v472 = vpop.f32.mrb[0].mxu0
    %v473 = vpop.f32.mrb[0].mxu0
    %v474 = vpop.f32.mrb[0].mxu0
    %475 = vdwg.mxu0
    %v476 = vpack.c.bf16 %v434, %v434
    %477 = vmatprep.subr.bf16.mxu0 %v350
    %478 = vmatpush1.bf16.msra.mxu0 %v349
    %479 = vmatprep.subr.bf16.mxu0 %v352
    %480 = vmatpush1.bf16.msra.mxu0 %v351
    %481 = vmatprep.subr.bf16.mxu0 %v354
    %482 = vmatpush1.bf16.msra.mxu0 %v353
    %483 = vmatprep.subr.bf16.mxu0 %v356
    %484 = vmatpush1.bf16.msra.mxu0 %v355
    %485 = vmatprep.subr.bf16.mxu0 %v358
    %486 = vmatpush1.bf16.msra.mxu0 %v357
    %487 = vmatprep.subr.bf16.mxu0 %v360
    %488 = vmatpush1.bf16.msra.mxu0 %v359
    %489 = vmatprep.subr.bf16.mxu0 %v362
    %490 = vmatpush1.bf16.msra.mxu0 %v361
    %491 = vmatprep.subr.bf16.mxu0 %v364
    %492 = vmatpush1.bf16.msra.mxu0 %v363
    %493 = vmatprep.subr.bf16.mxu0 0
    %494 = vmatpush1.bf16.msra.mxu0 0
    %495 = vmatprep.subr.bf16.mxu0 0
    %496 = vmatpush1.bf16.msra.mxu0 0
    %497 = vmatprep.subr.bf16.mxu0 0
    %498 = vmatpush1.bf16.msra.mxu0 0
    %499 = vmatprep.subr.bf16.mxu0 0
    %500 = vmatpush1.bf16.msra.mxu0 0
    %501 = vmatprep.subr.bf16.mxu0 0
    %502 = vmatpush1.bf16.msra.mxu0 0
    %503 = vmatprep.subr.bf16.mxu0 0
    %504 = vmatpush1.bf16.msra.mxu0 0
    %505 = vmatprep.subr.bf16.mxu0 0
    %506 = vmatpush1.bf16.msra.mxu0 0
    %507 = vmatprep.subr.bf16.mxu0 0
    %508 = vmatpush1.bf16.msra.mxu0 0
    %509 = vmatprep.mubr.bf16.mxu0 0
    %510 = vmatmul.mubr.bf16.gmra.mrb[0].mxu0 %v476
    %v511 = vpop.f32.mrb[0].mxu0
    %v512 = vadd.f32 0.0, %v511
    %v513 = vpop.f32.mrb[0].mxu0
    %v514 = vadd.f32 0.0, %v513
    %v515 = vpop.f32.mrb[0].mxu0
    %v516 = vpop.f32.mrb[0].mxu0
    %517 = vdwg.mxu0
    %v518 = vadd.f32 %v512, %v114
    %v519 = vsub.f32 %v433, %v518
    %v520 = vmul.f32 %v76, %v519
    %v521 = vsub.f32 %v471, %v514
    %v522 = vsub.f32 %v521, %v121
    %v523 = vmul.f32 %v434, %v434
    %v524 = vsub.f32 1.0, %v523
    %v525 = vmul.f32 %v522, %v524
    %v526 = vsub.f32 %v525, %v520
    %v527 = vmul.f32 %v427, %v526
    %v528 = vadd.f32 %v433, %v527
    %v529 = vtanh.pop %v528
    %v530 = vpack.c.bf16 %v528, %v528
    %531 = vmatprep.subr.bf16.mxu0 0
    %532 = vmatpush1.bf16.msra.mxu0 %v157
    %533 = vmatprep.subr.bf16.mxu0 0
    %534 = vmatpush1.bf16.msra.mxu0 %v158
    %535 = vmatprep.subr.bf16.mxu0 0
    %536 = vmatpush1.bf16.msra.mxu0 %v159
    %537 = vmatprep.subr.bf16.mxu0 0
    %538 = vmatpush1.bf16.msra.mxu0 %v160
    %539 = vmatprep.subr.bf16.mxu0 0
    %540 = vmatpush1.bf16.msra.mxu0 %v161
    %541 = vmatprep.subr.bf16.mxu0 0
    %542 = vmatpush1.bf16.msra.mxu0 %v162
    %543 = vmatprep.subr.bf16.mxu0 0
    %544 = vmatpush1.bf16.msra.mxu0 %v163
    %545 = vmatprep.subr.bf16.mxu0 0
    %546 = vmatpush1.bf16.msra.mxu0 %v164
    %547 = vmatprep.subr.bf16.mxu0 0
    %548 = vmatpush1.bf16.msra.mxu0 0
    %549 = vmatprep.subr.bf16.mxu0 0
    %550 = vmatpush1.bf16.msra.mxu0 0
    %551 = vmatprep.subr.bf16.mxu0 0
    %552 = vmatpush1.bf16.msra.mxu0 0
    %553 = vmatprep.subr.bf16.mxu0 0
    %554 = vmatpush1.bf16.msra.mxu0 0
    %555 = vmatprep.subr.bf16.mxu0 0
    %556 = vmatpush1.bf16.msra.mxu0 0
    %557 = vmatprep.subr.bf16.mxu0 0
    %558 = vmatpush1.bf16.msra.mxu0 0
    %559 = vmatprep.subr.bf16.mxu0 0
    %560 = vmatpush1.bf16.msra.mxu0 0
    %561 = vmatprep.subr.bf16.mxu0 0
    %562 = vmatpush1.bf16.msra.mxu0 0
    %563 = vmatprep.mubr.bf16.mxu0 0
    %564 = vmatmul.mubr.bf16.gmra.mrb[0].mxu0 %v530
    %v565 = vpop.f32.mrb[0].mxu0
    %v566 = vadd.f32 0.0, %v565
    %v567 = vpop.f32.mrb[0].mxu0
    %v568 = vpop.f32.mrb[0].mxu0
    %v569 = vpop.f32.mrb[0].mxu0
    %570 = vdwg.mxu0
    %v571 = vpack.c.bf16 %v529, %v529
    %572 = vmatprep.subr.bf16.mxu0 %v350
    %573 = vmatpush1.bf16.msra.mxu0 %v349
    %574 = vmatprep.subr.bf16.mxu0 %v352
    %575 = vmatpush1.bf16.msra.mxu0 %v351
    %576 = vmatprep.subr.bf16.mxu0 %v354
    %577 = vmatpush1.bf16.msra.mxu0 %v353
    %578 = vmatprep.subr.bf16.mxu0 %v356
    %579 = vmatpush1.bf16.msra.mxu0 %v355
    %580 = vmatprep.subr.bf16.mxu0 %v358
    %581 = vmatpush1.bf16.msra.mxu0 %v357
    %582 = vmatprep.subr.bf16.mxu0 %v360
    %583 = vmatpush1.bf16.msra.mxu0 %v359
    %584 = vmatprep.subr.bf16.mxu0 %v362
    %585 = vmatpush1.bf16.msra.mxu0 %v361
    %586 = vmatprep.subr.bf16.mxu0 %v364
    %587 = vmatpush1.bf16.msra.mxu0 %v363
    %588 = vmatprep.subr.bf16.mxu0 0
    %589 = vmatpush1.bf16.msra.mxu0 0
    %590 = vmatprep.subr.bf16.mxu0 0
    %591 = vmatpush1.bf16.msra.mxu0 0
    %592 = vmatprep.subr.bf16.mxu0 0
    %593 = vmatpush1.bf16.msra.mxu0 0
    %594 = vmatprep.subr.bf16.mxu0 0
    %595 = vmatpush1.bf16.msra.mxu0 0
    %596 = vmatprep.subr.bf16.mxu0 0
    %597 = vmatpush1.bf16.msra.mxu0 0
    %598 = vmatprep.subr.bf16.mxu0 0
    %599 = vmatpush1.bf16.msra.mxu0 0
    %600 = vmatprep.subr.bf16.mxu0 0
    %601 = vmatpush1.bf16.msra.mxu0 0
    %602 = vmatprep.subr.bf16.mxu0 0
    %603 = vmatpush1.bf16.msra.mxu0 0
    %604 = vmatprep.mubr.bf16.mxu0 0
    %605 = vmatmul.mubr.bf16.gmra.mrb[0].mxu0 %v571
    %v606 = vpop.f32.mrb[0].mxu0
    %v607 = vadd.f32 0.0, %v606
    %v608 = vpop.f32.mrb[0].mxu0
    %v609 = vadd.f32 0.0, %v608
    %v610 = vpop.f32.mrb[0].mxu0
    %v611 = vpop.f32.mrb[0].mxu0
    %612 = vdwg.mxu0
    %v613 = vadd.f32 %v607, %v114
    %v614 = vsub.f32 %v528, %v613
    %v615 = vmul.f32 %v76, %v614
    %v616 = vsub.f32 %v566, %v609
    %v617 = vsub.f32 %v616, %v121
    %v618 = vmul.f32 %v529, %v529
    %v619 = vsub.f32 1.0, %v618
    %v620 = vmul.f32 %v617, %v619
    %v621 = vsub.f32 %v620, %v615
    %v622 = vmul.f32 %v427, %v621
    %v623 = vadd.f32 %v528, %v622
    %v624 = vtanh.pop %v623
    %v625 = vpack.c.bf16 %v623, %v623
    %626 = vmatprep.subr.bf16.mxu0 0
    %627 = vmatpush1.bf16.msra.mxu0 %v157
    %628 = vmatprep.subr.bf16.mxu0 0
    %629 = vmatpush1.bf16.msra.mxu0 %v158
    %630 = vmatprep.subr.bf16.mxu0 0
    %631 = vmatpush1.bf16.msra.mxu0 %v159
    %632 = vmatprep.subr.bf16.mxu0 0
    %633 = vmatpush1.bf16.msra.mxu0 %v160
    %634 = vmatprep.subr.bf16.mxu0 0
    %635 = vmatpush1.bf16.msra.mxu0 %v161
    %636 = vmatprep.subr.bf16.mxu0 0
    %637 = vmatpush1.bf16.msra.mxu0 %v162
    %638 = vmatprep.subr.bf16.mxu0 0
    %639 = vmatpush1.bf16.msra.mxu0 %v163
    %640 = vmatprep.subr.bf16.mxu0 0
    %641 = vmatpush1.bf16.msra.mxu0 %v164
    %642 = vmatprep.subr.bf16.mxu0 0
    %643 = vmatpush1.bf16.msra.mxu0 0
    %644 = vmatprep.subr.bf16.mxu0 0
    %645 = vmatpush1.bf16.msra.mxu0 0
    %646 = vmatprep.subr.bf16.mxu0 0
    %647 = vmatpush1.bf16.msra.mxu0 0
    %648 = vmatprep.subr.bf16.mxu0 0
    %649 = vmatpush1.bf16.msra.mxu0 0
    %650 = vmatprep.subr.bf16.mxu0 0
    %651 = vmatpush1.bf16.msra.mxu0 0
    %652 = vmatprep.subr.bf16.mxu0 0
    %653 = vmatpush1.bf16.msra.mxu0 0
    %654 = vmatprep.subr.bf16.mxu0 0
    %655 = vmatpush1.bf16.msra.mxu0 0
    %656 = vmatprep.subr.bf16.mxu0 0
    %657 = vmatpush1.bf16.msra.mxu0 0
    %658 = vmatprep.mubr.bf16.mxu0 0
    %659 = vmatmul.mubr.bf16.gmra.mrb[0].mxu0 %v625
    %v660 = vpop.f32.mrb[0].mxu0
    %v661 = vadd.f32 0.0, %v660
    %v662 = vpop.f32.mrb[0].mxu0
    %v663 = vpop.f32.mrb[0].mxu0
    %v664 = vpop.f32.mrb[0].mxu0
    %665 = vdwg.mxu0
    %v666 = vpack.c.bf16 %v624, %v624
    %667 = vmatprep.subr.bf16.mxu0 %v350
    %668 = vmatpush1.bf16.msra.mxu0 %v349
    %669 = vmatprep.subr.bf16.mxu0 %v352
    %670 = vmatpush1.bf16.msra.mxu0 %v351
    %671 = vmatprep.subr.bf16.mxu0 %v354
    %672 = vmatpush1.bf16.msra.mxu0 %v353
    %673 = vmatprep.subr.bf16.mxu0 %v356
    %674 = vmatpush1.bf16.msra.mxu0 %v355
    %675 = vmatprep.subr.bf16.mxu0 %v358
    %676 = vmatpush1.bf16.msra.mxu0 %v357
    %677 = vmatprep.subr.bf16.mxu0 %v360
    %678 = vmatpush1.bf16.msra.mxu0 %v359
    %679 = vmatprep.subr.bf16.mxu0 %v362
    %680 = vmatpush1.bf16.msra.mxu0 %v361
    %681 = vmatprep.subr.bf16.mxu0 %v364
    %682 = vmatpush1.bf16.msra.mxu0 %v363
    %683 = vmatprep.subr.bf16.mxu0 0
    %684 = vmatpush1.bf16.msra.mxu0 0
    %685 = vmatprep.subr.bf16.mxu0 0
    %686 = vmatpush1.bf16.msra.mxu0 0
    %687 = vmatprep.subr.bf16.mxu0 0
    %688 = vmatpush1.bf16.msra.mxu0 0
    %689 = vmatprep.subr.bf16.mxu0 0
    %690 = vmatpush1.bf16.msra.mxu0 0
    %691 = vmatprep.subr.bf16.mxu0 0
    %692 = vmatpush1.bf16.msra.mxu0 0
    %693 = vmatprep.subr.bf16.mxu0 0
    %694 = vmatpush1.bf16.msra.mxu0 0
    %695 = vmatprep.subr.bf16.mxu0 0
    %696 = vmatpush1.bf16.msra.mxu0 0
    %697 = vmatprep.subr.bf16.mxu0 0
    %698 = vmatpush1.bf16.msra.mxu0 0
    %699 = vmatprep.mubr.bf16.mxu0 0
    %700 = vmatmul.mubr.bf16.gmra.mrb[0].mxu0 %v666
    %v701 = vpop.f32.mrb[0].mxu0
    %v702 = vadd.f32 0.0, %v701
    %v703 = vpop.f32.mrb[0].mxu0
    %v704 = vadd.f32 0.0, %v703
    %v705 = vpop.f32.mrb[0].mxu0
    %v706 = vpop.f32.mrb[0].mxu0
    %707 = vdwg.mxu0
    %v708 = vadd.f32 %v702, %v114
    %v709 = vsub.f32 %v623, %v708
    %v710 = vmul.f32 %v76, %v709
    %v711 = vsub.f32 %v661, %v704
    %v712 = vsub.f32 %v711, %v121
    %v713 = vmul.f32 %v624, %v624
    %v714 = vsub.f32 1.0, %v713
    %v715 = vmul.f32 %v712, %v714
    %v716 = vsub.f32 %v715, %v710
    %v717 = vmul.f32 %v427, %v716
    %v718 = vadd.f32 %v623, %v717
    %v719 = vtanh.pop %v718
    %v720 = vpack.c.bf16 %v718, %v718
    %721 = vmatprep.subr.bf16.mxu0 0
    %722 = vmatpush1.bf16.msra.mxu0 %v157
    %723 = vmatprep.subr.bf16.mxu0 0
    %724 = vmatpush1.bf16.msra.mxu0 %v158
    %725 = vmatprep.subr.bf16.mxu0 0
    %726 = vmatpush1.bf16.msra.mxu0 %v159
    %727 = vmatprep.subr.bf16.mxu0 0
    %728 = vmatpush1.bf16.msra.mxu0 %v160
    %729 = vmatprep.subr.bf16.mxu0 0
    %730 = vmatpush1.bf16.msra.mxu0 %v161
    %731 = vmatprep.subr.bf16.mxu0 0
    %732 = vmatpush1.bf16.msra.mxu0 %v162
    %733 = vmatprep.subr.bf16.mxu0 0
    %734 = vmatpush1.bf16.msra.mxu0 %v163
    %735 = vmatprep.subr.bf16.mxu0 0
    %736 = vmatpush1.bf16.msra.mxu0 %v164
    %737 = vmatprep.subr.bf16.mxu0 0
    %738 = vmatpush1.bf16.msra.mxu0 0
    %739 = vmatprep.subr.bf16.mxu0 0
    %740 = vmatpush1.bf16.msra.mxu0 0
    %741 = vmatprep.subr.bf16.mxu0 0
    %742 = vmatpush1.bf16.msra.mxu0 0
    %743 = vmatprep.subr.bf16.mxu0 0
    %744 = vmatpush1.bf16.msra.mxu0 0
    %745 = vmatprep.subr.bf16.mxu0 0
    %746 = vmatpush1.bf16.msra.mxu0 0
    %747 = vmatprep.subr.bf16.mxu0 0
    %748 = vmatpush1.bf16.msra.mxu0 0
    %749 = vmatprep.subr.bf16.mxu0 0
    %750 = vmatpush1.bf16.msra.mxu0 0
    %751 = vmatprep.subr.bf16.mxu0 0
    %752 = vmatpush1.bf16.msra.mxu0 0
    %753 = vmatprep.mubr.bf16.mxu0 0
    %754 = vmatmul.mubr.bf16.gmra.mrb[0].mxu0 %v720
    %v755 = vpop.f32.mrb[0].mxu0
    %v756 = vadd.f32 0.0, %v755
    %v757 = vpop.f32.mrb[0].mxu0
    %v758 = vpop.f32.mrb[0].mxu0
    %v759 = vpop.f32.mrb[0].mxu0
    %760 = vdwg.mxu0
    %v761 = vpack.c.bf16 %v719, %v719
    %762 = vmatprep.subr.bf16.mxu0 %v350
    %763 = vmatpush1.bf16.msra.mxu0 %v349
    %764 = vmatprep.subr.bf16.mxu0 %v352
    %765 = vmatpush1.bf16.msra.mxu0 %v351
    %766 = vmatprep.subr.bf16.mxu0 %v354
    %767 = vmatpush1.bf16.msra.mxu0 %v353
    %768 = vmatprep.subr.bf16.mxu0 %v356
    %769 = vmatpush1.bf16.msra.mxu0 %v355
    %770 = vmatprep.subr.bf16.mxu0 %v358
    %771 = vmatpush1.bf16.msra.mxu0 %v357
    %772 = vmatprep.subr.bf16.mxu0 %v360
    %773 = vmatpush1.bf16.msra.mxu0 %v359
    %774 = vmatprep.subr.bf16.mxu0 %v362
    %775 = vmatpush1.bf16.msra.mxu0 %v361
    %776 = vmatprep.subr.bf16.mxu0 %v364
    %777 = vmatpush1.bf16.msra.mxu0 %v363
    %778 = vmatprep.subr.bf16.mxu0 0
    %779 = vmatpush1.bf16.msra.mxu0 0
    %780 = vmatprep.subr.bf16.mxu0 0
    %781 = vmatpush1.bf16.msra.mxu0 0
    %782 = vmatprep.subr.bf16.mxu0 0
    %783 = vmatpush1.bf16.msra.mxu0 0
    %784 = vmatprep.subr.bf16.mxu0 0
    %785 = vmatpush1.bf16.msra.mxu0 0
    %786 = vmatprep.subr.bf16.mxu0 0
    %787 = vmatpush1.bf16.msra.mxu0 0
    %788 = vmatprep.subr.bf16.mxu0 0
    %789 = vmatpush1.bf16.msra.mxu0 0
    %790 = vmatprep.subr.bf16.mxu0 0
    %791 = vmatpush1.bf16.msra.mxu0 0
    %792 = vmatprep.subr.bf16.mxu0 0
    %793 = vmatpush1.bf16.msra.mxu0 0
    %794 = vmatprep.mubr.bf16.mxu0 0
    %795 = vmatmul.mubr.bf16.gmra.mrb[0].mxu0 %v761
    %v796 = vpop.f32.mrb[0].mxu0
    %v797 = vadd.f32 0.0, %v796
    %v798 = vpop.f32.mrb[0].mxu0
    %v799 = vadd.f32 0.0, %v798
    %v800 = vpop.f32.mrb[0].mxu0
    %v801 = vpop.f32.mrb[0].mxu0
    %802 = vdwg.mxu0
    %v803 = vadd.f32 %v797, %v114
    %v804 = vsub.f32 %v718, %v803
    %v805 = vmul.f32 %v76, %v804
    %v806 = vsub.f32 %v756, %v799
    %v807 = vsub.f32 %v806, %v121
    %v808 = vmul.f32 %v719, %v719
    %v809 = vsub.f32 1.0, %v808
    %v810 = vmul.f32 %v807, %v809
    %v811 = vsub.f32 %v810, %v805
    %v812 = vmul.f32 %v427, %v811
    %v813 = vadd.f32 %v718, %v812
    %v814 = vtanh.pop %v813
    %v815 = vpack.c.bf16 %v813, %v813
    %816 = vmatprep.subr.bf16.mxu0 0
    %817 = vmatpush1.bf16.msra.mxu0 %v157
    %818 = vmatprep.subr.bf16.mxu0 0
    %819 = vmatpush1.bf16.msra.mxu0 %v158
    %820 = vmatprep.subr.bf16.mxu0 0
    %821 = vmatpush1.bf16.msra.mxu0 %v159
    %822 = vmatprep.subr.bf16.mxu0 0
    %823 = vmatpush1.bf16.msra.mxu0 %v160
    %824 = vmatprep.subr.bf16.mxu0 0
    %825 = vmatpush1.bf16.msra.mxu0 %v161
    %826 = vmatprep.subr.bf16.mxu0 0
    %827 = vmatpush1.bf16.msra.mxu0 %v162
    %828 = vmatprep.subr.bf16.mxu0 0
    %829 = vmatpush1.bf16.msra.mxu0 %v163
    %830 = vmatprep.subr.bf16.mxu0 0
    %831 = vmatpush1.bf16.msra.mxu0 %v164
    %832 = vmatprep.subr.bf16.mxu0 0
    %833 = vmatpush1.bf16.msra.mxu0 0
    %834 = vmatprep.subr.bf16.mxu0 0
    %835 = vmatpush1.bf16.msra.mxu0 0
    %836 = vmatprep.subr.bf16.mxu0 0
    %837 = vmatpush1.bf16.msra.mxu0 0
    %838 = vmatprep.subr.bf16.mxu0 0
    %839 = vmatpush1.bf16.msra.mxu0 0
    %840 = vmatprep.subr.bf16.mxu0 0
    %841 = vmatpush1.bf16.msra.mxu0 0
    %842 = vmatprep.subr.bf16.mxu0 0
    %843 = vmatpush1.bf16.msra.mxu0 0
    %844 = vmatprep.subr.bf16.mxu0 0
    %845 = vmatpush1.bf16.msra.mxu0 0
    %846 = vmatprep.subr.bf16.mxu0 0
    %847 = vmatpush1.bf16.msra.mxu0 0
    %848 = vmatprep.mubr.bf16.mxu0 0
    %849 = vmatmul.mubr.bf16.gmra.mrb[0].mxu0 %v815
    %v850 = vpop.f32.mrb[0].mxu0
    %v851 = vadd.f32 0.0, %v850
    %v852 = vpop.f32.mrb[0].mxu0
    %v853 = vpop.f32.mrb[0].mxu0
    %v854 = vpop.f32.mrb[0].mxu0
    %855 = vdwg.mxu0
    %v856 = vpack.c.bf16 %v814, %v814
    %857 = vmatprep.subr.bf16.mxu0 %v350
    %858 = vmatpush1.bf16.msra.mxu0 %v349
    %859 = vmatprep.subr.bf16.mxu0 %v352
    %860 = vmatpush1.bf16.msra.mxu0 %v351
    %861 = vmatprep.subr.bf16.mxu0 %v354
    %862 = vmatpush1.bf16.msra.mxu0 %v353
    %863 = vmatprep.subr.bf16.mxu0 %v356
    %864 = vmatpush1.bf16.msra.mxu0 %v355
    %865 = vmatprep.subr.bf16.mxu0 %v358
    %866 = vmatpush1.bf16.msra.mxu0 %v357
    %867 = vmatprep.subr.bf16.mxu0 %v360
    %868 = vmatpush1.bf16.msra.mxu0 %v359
    %869 = vmatprep.subr.bf16.mxu0 %v362
    %870 = vmatpush1.bf16.msra.mxu0 %v361
    %871 = vmatprep.subr.bf16.mxu0 %v364
    %872 = vmatpush1.bf16.msra.mxu0 %v363
    %873 = vmatprep.subr.bf16.mxu0 0
    %874 = vmatpush1.bf16.msra.mxu0 0
    %875 = vmatprep.subr.bf16.mxu0 0
    %876 = vmatpush1.bf16.msra.mxu0 0
    %877 = vmatprep.subr.bf16.mxu0 0
    %878 = vmatpush1.bf16.msra.mxu0 0
    %879 = vmatprep.subr.bf16.mxu0 0
    %880 = vmatpush1.bf16.msra.mxu0 0
    %881 = vmatprep.subr.bf16.mxu0 0
    %882 = vmatpush1.bf16.msra.mxu0 0
    %883 = vmatprep.subr.bf16.mxu0 0
    %884 = vmatpush1.bf16.msra.mxu0 0
    %885 = vmatprep.subr.bf16.mxu0 0
    %886 = vmatpush1.bf16.msra.mxu0 0
    %887 = vmatprep.subr.bf16.mxu0 0
    %888 = vmatpush1.bf16.msra.mxu0 0
    %889 = vmatprep.mubr.bf16.mxu0 0
    %890 = vmatmul.mubr.bf16.gmra.mrb[0].mxu0 %v856
    %v891 = vpop.f32.mrb[0].mxu0
    %v892 = vadd.f32 0.0, %v891
    %v893 = vpop.f32.mrb[0].mxu0
    %v894 = vadd.f32 0.0, %v893
    %v895 = vpop.f32.mrb[0].mxu0
    %v896 = vpop.f32.mrb[0].mxu0
    %897 = vdwg.mxu0
    %v898 = vadd.f32 %v892, %v114
    %v899 = vsub.f32 %v813, %v898
    %v900 = vmul.f32 %v76, %v899
    %v901 = vsub.f32 %v851, %v894
    %v902 = vsub.f32 %v901, %v121
    %v903 = vmul.f32 %v814, %v814
    %v904 = vsub.f32 1.0, %v903
    %v905 = vmul.f32 %v902, %v904
    %v906 = vsub.f32 %v905, %v900
    %v907 = vmul.f32 %v427, %v906
    %v908 = vadd.f32 %v813, %v907
    %v909 = vtanh.pop %v908
    %v910 = vpack.c.bf16 %v908, %v908
    %911 = vmatprep.subr.bf16.mxu0 0
    %912 = vmatpush1.bf16.msra.mxu0 %v157
    %913 = vmatprep.subr.bf16.mxu0 0
    %914 = vmatpush1.bf16.msra.mxu0 %v158
    %915 = vmatprep.subr.bf16.mxu0 0
    %916 = vmatpush1.bf16.msra.mxu0 %v159
    %917 = vmatprep.subr.bf16.mxu0 0
    %918 = vmatpush1.bf16.msra.mxu0 %v160
    %919 = vmatprep.subr.bf16.mxu0 0
    %920 = vmatpush1.bf16.msra.mxu0 %v161
    %921 = vmatprep.subr.bf16.mxu0 0
    %922 = vmatpush1.bf16.msra.mxu0 %v162
    %923 = vmatprep.subr.bf16.mxu0 0
    %924 = vmatpush1.bf16.msra.mxu0 %v163
    %925 = vmatprep.subr.bf16.mxu0 0
    %926 = vmatpush1.bf16.msra.mxu0 %v164
    %927 = vmatprep.subr.bf16.mxu0 0
    %928 = vmatpush1.bf16.msra.mxu0 0
    %929 = vmatprep.subr.bf16.mxu0 0
    %930 = vmatpush1.bf16.msra.mxu0 0
    %931 = vmatprep.subr.bf16.mxu0 0
    %932 = vmatpush1.bf16.msra.mxu0 0
    %933 = vmatprep.subr.bf16.mxu0 0
    %934 = vmatpush1.bf16.msra.mxu0 0
    %935 = vmatprep.subr.bf16.mxu0 0
    %936 = vmatpush1.bf16.msra.mxu0 0
    %937 = vmatprep.subr.bf16.mxu0 0
    %938 = vmatpush1.bf16.msra.mxu0 0
    %939 = vmatprep.subr.bf16.mxu0 0
    %940 = vmatpush1.bf16.msra.mxu0 0
    %941 = vmatprep.subr.bf16.mxu0 0
    %942 = vmatpush1.bf16.msra.mxu0 0
    %943 = vmatprep.mubr.bf16.mxu0 0
    %944 = vmatmul.mubr.bf16.gmra.mrb[0].mxu0 %v910
    %v945 = vpop.f32.mrb[0].mxu0
    %v946 = vadd.f32 0.0, %v945
    %v947 = vpop.f32.mrb[0].mxu0
    %v948 = vpop.f32.mrb[0].mxu0
    %v949 = vpop.f32.mrb[0].mxu0
    %950 = vdwg.mxu0
    %v951 = vpack.c.bf16 %v909, %v909
    %952 = vmatprep.subr.bf16.mxu0 %v350
    %953 = vmatpush1.bf16.msra.mxu0 %v349
    %954 = vmatprep.subr.bf16.mxu0 %v352
    %955 = vmatpush1.bf16.msra.mxu0 %v351
    %956 = vmatprep.subr.bf16.mxu0 %v354
    %957 = vmatpush1.bf16.msra.mxu0 %v353
    %958 = vmatprep.subr.bf16.mxu0 %v356
    %959 = vmatpush1.bf16.msra.mxu0 %v355
    %960 = vmatprep.subr.bf16.mxu0 %v358
    %961 = vmatpush1.bf16.msra.mxu0 %v357
    %962 = vmatprep.subr.bf16.mxu0 %v360
    %963 = vmatpush1.bf16.msra.mxu0 %v359
    %964 = vmatprep.subr.bf16.mxu0 %v362
    %965 = vmatpush1.bf16.msra.mxu0 %v361
    %966 = vmatprep.subr.bf16.mxu0 %v364
    %967 = vmatpush1.bf16.msra.mxu0 %v363
    %968 = vmatprep.subr.bf16.mxu0 0
    %969 = vmatpush1.bf16.msra.mxu0 0
    %970 = vmatprep.subr.bf16.mxu0 0
    %971 = vmatpush1.bf16.msra.mxu0 0
    %972 = vmatprep.subr.bf16.mxu0 0
    %973 = vmatpush1.bf16.msra.mxu0 0
    %974 = vmatprep.subr.bf16.mxu0 0
    %975 = vmatpush1.bf16.msra.mxu0 0
    %976 = vmatprep.subr.bf16.mxu0 0
    %977 = vmatpush1.bf16.msra.mxu0 0
    %978 = vmatprep.subr.bf16.mxu0 0
    %979 = vmatpush1.bf16.msra.mxu0 0
    %980 = vmatprep.subr.bf16.mxu0 0
    %981 = vmatpush1.bf16.msra.mxu0 0
    %982 = vmatprep.subr.bf16.mxu0 0
    %983 = vmatpush1.bf16.msra.mxu0 0
    %984 = vmatprep.mubr.bf16.mxu0 0
    %985 = vmatmul.mubr.bf16.gmra.mrb[0].mxu0 %v951
    %v986 = vpop.f32.mrb[0].mxu0
    %v987 = vadd.f32 0.0, %v986
    %v988 = vpop.f32.mrb[0].mxu0
    %v989 = vadd.f32 0.0, %v988
    %v990 = vpop.f32.mrb[0].mxu0
    %v991 = vpop.f32.mrb[0].mxu0
    %992 = vdwg.mxu0
    %v993 = vadd.f32 %v987, %v114
    %v994 = vsub.f32 %v908, %v993
    %v995 = vmul.f32 %v76, %v994
    %v996 = vsub.f32 %v946, %v989
    %v997 = vsub.f32 %v996, %v121
    %v998 = vmul.f32 %v909, %v909
    %v999 = vsub.f32 1.0, %v998
    %v1000 = vmul.f32 %v997, %v999
    %v1001 = vsub.f32 %v1000, %v995
    %v1002 = vmul.f32 %v427, %v1001
    %v1003 = vadd.f32 %v908, %v1002
    %v1004 = vtanh.pop %v1003
    %v1005 = vpack.c.bf16 %v1003, %v1003
    %1006 = vmatprep.subr.bf16.mxu0 0
    %1007 = vmatpush1.bf16.msra.mxu0 %v157
    %1008 = vmatprep.subr.bf16.mxu0 0
    %1009 = vmatpush1.bf16.msra.mxu0 %v158
    %1010 = vmatprep.subr.bf16.mxu0 0
    %1011 = vmatpush1.bf16.msra.mxu0 %v159
    %1012 = vmatprep.subr.bf16.mxu0 0
    %1013 = vmatpush1.bf16.msra.mxu0 %v160
    %1014 = vmatprep.subr.bf16.mxu0 0
    %1015 = vmatpush1.bf16.msra.mxu0 %v161
    %1016 = vmatprep.subr.bf16.mxu0 0
    %1017 = vmatpush1.bf16.msra.mxu0 %v162
    %1018 = vmatprep.subr.bf16.mxu0 0
    %1019 = vmatpush1.bf16.msra.mxu0 %v163
    %1020 = vmatprep.subr.bf16.mxu0 0
    %1021 = vmatpush1.bf16.msra.mxu0 %v164
    %1022 = vmatprep.subr.bf16.mxu0 0
    %1023 = vmatpush1.bf16.msra.mxu0 0
    %1024 = vmatprep.subr.bf16.mxu0 0
    %1025 = vmatpush1.bf16.msra.mxu0 0
    %1026 = vmatprep.subr.bf16.mxu0 0
    %1027 = vmatpush1.bf16.msra.mxu0 0
    %1028 = vmatprep.subr.bf16.mxu0 0
    %1029 = vmatpush1.bf16.msra.mxu0 0
    %1030 = vmatprep.subr.bf16.mxu0 0
    %1031 = vmatpush1.bf16.msra.mxu0 0
    %1032 = vmatprep.subr.bf16.mxu0 0
    %1033 = vmatpush1.bf16.msra.mxu0 0
    %1034 = vmatprep.subr.bf16.mxu0 0
    %1035 = vmatpush1.bf16.msra.mxu0 0
    %1036 = vmatprep.subr.bf16.mxu0 0
    %1037 = vmatpush1.bf16.msra.mxu0 0
    %1038 = vmatprep.mubr.bf16.mxu0 0
    %1039 = vmatmul.mubr.bf16.gmra.mrb[0].mxu0 %v1005
    %v1040 = vpop.f32.mrb[0].mxu0
    %v1041 = vadd.f32 0.0, %v1040
    %v1042 = vpop.f32.mrb[0].mxu0
    %v1043 = vpop.f32.mrb[0].mxu0
    %v1044 = vpop.f32.mrb[0].mxu0
    %1045 = vdwg.mxu0
    %v1046 = vpack.c.bf16 %v1004, %v1004
    %1047 = vmatprep.subr.bf16.mxu0 %v350
    %1048 = vmatpush1.bf16.msra.mxu0 %v349
    %1049 = vmatprep.subr.bf16.mxu0 %v352
    %1050 = vmatpush1.bf16.msra.mxu0 %v351
    %1051 = vmatprep.subr.bf16.mxu0 %v354
    %1052 = vmatpush1.bf16.msra.mxu0 %v353
    %1053 = vmatprep.subr.bf16.mxu0 %v356
    %1054 = vmatpush1.bf16.msra.mxu0 %v355
    %1055 = vmatprep.subr.bf16.mxu0 %v358
    %1056 = vmatpush1.bf16.msra.mxu0 %v357
    %1057 = vmatprep.subr.bf16.mxu0 %v360
    %1058 = vmatpush1.bf16.msra.mxu0 %v359
    %1059 = vmatprep.subr.bf16.mxu0 %v362
    %1060 = vmatpush1.bf16.msra.mxu0 %v361
    %1061 = vmatprep.subr.bf16.mxu0 %v364
    %1062 = vmatpush1.bf16.msra.mxu0 %v363
    %1063 = vmatprep.subr.bf16.mxu0 0
    %1064 = vmatpush1.bf16.msra.mxu0 0
    %1065 = vmatprep.subr.bf16.mxu0 0
    %1066 = vmatpush1.bf16.msra.mxu0 0
    %1067 = vmatprep.subr.bf16.mxu0 0
    %1068 = vmatpush1.bf16.msra.mxu0 0
    %1069 = vmatprep.subr.bf16.mxu0 0
    %1070 = vmatpush1.bf16.msra.mxu0 0
    %1071 = vmatprep.subr.bf16.mxu0 0
    %1072 = vmatpush1.bf16.msra.mxu0 0
    %1073 = vmatprep.subr.bf16.mxu0 0
    %1074 = vmatpush1.bf16.msra.mxu0 0
    %1075 = vmatprep.subr.bf16.mxu0 0
    %1076 = vmatpush1.bf16.msra.mxu0 0
    %1077 = vmatprep.subr.bf16.mxu0 0
    %1078 = vmatpush1.bf16.msra.mxu0 0
    %1079 = vmatprep.mubr.bf16.mxu0 0
    %1080 = vmatmul.mubr.bf16.gmra.mrb[0].mxu0 %v1046
    %v1081 = vpop.f32.mrb[0].mxu0
    %v1082 = vadd.f32 0.0, %v1081
    %v1083 = vpop.f32.mrb[0].mxu0
    %v1084 = vadd.f32 0.0, %v1083
    %v1085 = vpop.f32.mrb[0].mxu0
    %v1086 = vpop.f32.mrb[0].mxu0
    %1087 = vdwg.mxu0
    %v1088 = vadd.f32 %v1082, %v114
    %v1089 = vsub.f32 %v1003, %v1088
    %v1090 = vmul.f32 %v76, %v1089
    %v1091 = vsub.f32 %v1041, %v1084
    %v1092 = vsub.f32 %v1091, %v121
    %v1093 = vmul.f32 %v1004, %v1004
    %v1094 = vsub.f32 1.0, %v1093
    %v1095 = vmul.f32 %v1092, %v1094
    %v1096 = vsub.f32 %v1095, %v1090
    %v1097 = vmul.f32 %v427, %v1096
    %v1098 = vadd.f32 %v1003, %v1097
    %v1099 = vtanh.pop %v1098
    %v1100 = vpack.c.bf16 %v1098, %v1098
    %1101 = vmatprep.subr.bf16.mxu0 0
    %1102 = vmatpush1.bf16.msra.mxu0 %v157
    %1103 = vmatprep.subr.bf16.mxu0 0
    %1104 = vmatpush1.bf16.msra.mxu0 %v158
    %1105 = vmatprep.subr.bf16.mxu0 0
    %1106 = vmatpush1.bf16.msra.mxu0 %v159
    %1107 = vmatprep.subr.bf16.mxu0 0
    %1108 = vmatpush1.bf16.msra.mxu0 %v160
    %1109 = vmatprep.subr.bf16.mxu0 0
    %1110 = vmatpush1.bf16.msra.mxu0 %v161
    %1111 = vmatprep.subr.bf16.mxu0 0
    %1112 = vmatpush1.bf16.msra.mxu0 %v162
    %1113 = vmatprep.subr.bf16.mxu0 0
    %1114 = vmatpush1.bf16.msra.mxu0 %v163
    %1115 = vmatprep.subr.bf16.mxu0 0
    %1116 = vmatpush1.bf16.msra.mxu0 %v164
    %1117 = vmatprep.subr.bf16.mxu0 0
    %1118 = vmatpush1.bf16.msra.mxu0 0
    %1119 = vmatprep.subr.bf16.mxu0 0
    %1120 = vmatpush1.bf16.msra.mxu0 0
    %1121 = vmatprep.subr.bf16.mxu0 0
    %1122 = vmatpush1.bf16.msra.mxu0 0
    %1123 = vmatprep.subr.bf16.mxu0 0
    %1124 = vmatpush1.bf16.msra.mxu0 0
    %1125 = vmatprep.subr.bf16.mxu0 0
    %1126 = vmatpush1.bf16.msra.mxu0 0
    %1127 = vmatprep.subr.bf16.mxu0 0
    %1128 = vmatpush1.bf16.msra.mxu0 0
    %1129 = vmatprep.subr.bf16.mxu0 0
    %1130 = vmatpush1.bf16.msra.mxu0 0
    %1131 = vmatprep.subr.bf16.mxu0 0
    %1132 = vmatpush1.bf16.msra.mxu0 0
    %1133 = vmatprep.mubr.bf16.mxu0 0
    %1134 = vmatmul.mubr.bf16.gmra.mrb[0].mxu0 %v1100
    %v1135 = vpop.f32.mrb[0].mxu0
    %v1136 = vadd.f32 0.0, %v1135
    %v1137 = vpop.f32.mrb[0].mxu0
    %v1138 = vpop.f32.mrb[0].mxu0
    %v1139 = vpop.f32.mrb[0].mxu0
    %1140 = vdwg.mxu0
    %v1141 = vpack.c.bf16 %v1099, %v1099
    %1142 = vmatprep.subr.bf16.mxu0 %v350
    %1143 = vmatpush1.bf16.msra.mxu0 %v349
    %1144 = vmatprep.subr.bf16.mxu0 %v352
    %1145 = vmatpush1.bf16.msra.mxu0 %v351
    %1146 = vmatprep.subr.bf16.mxu0 %v354
    %1147 = vmatpush1.bf16.msra.mxu0 %v353
    %1148 = vmatprep.subr.bf16.mxu0 %v356
    %1149 = vmatpush1.bf16.msra.mxu0 %v355
    %1150 = vmatprep.subr.bf16.mxu0 %v358
    %1151 = vmatpush1.bf16.msra.mxu0 %v357
    %1152 = vmatprep.subr.bf16.mxu0 %v360
    %1153 = vmatpush1.bf16.msra.mxu0 %v359
    %1154 = vmatprep.subr.bf16.mxu0 %v362
    %1155 = vmatpush1.bf16.msra.mxu0 %v361
    %1156 = vmatprep.subr.bf16.mxu0 %v364
    %1157 = vmatpush1.bf16.msra.mxu0 %v363
    %1158 = vmatprep.subr.bf16.mxu0 0
    %1159 = vmatpush1.bf16.msra.mxu0 0
    %1160 = vmatprep.subr.bf16.mxu0 0
    %1161 = vmatpush1.bf16.msra.mxu0 0
    %1162 = vmatprep.subr.bf16.mxu0 0
    %1163 = vmatpush1.bf16.msra.mxu0 0
    %1164 = vmatprep.subr.bf16.mxu0 0
    %1165 = vmatpush1.bf16.msra.mxu0 0
    %1166 = vmatprep.subr.bf16.mxu0 0
    %1167 = vmatpush1.bf16.msra.mxu0 0
    %1168 = vmatprep.subr.bf16.mxu0 0
    %1169 = vmatpush1.bf16.msra.mxu0 0
    %1170 = vmatprep.subr.bf16.mxu0 0
    %1171 = vmatpush1.bf16.msra.mxu0 0
    %1172 = vmatprep.subr.bf16.mxu0 0
    %1173 = vmatpush1.bf16.msra.mxu0 0
    %1174 = vmatprep.mubr.bf16.mxu0 0
    %1175 = vmatmul.mubr.bf16.gmra.mrb[0].mxu0 %v1141
    %v1176 = vpop.f32.mrb[0].mxu0
    %v1177 = vadd.f32 0.0, %v1176
    %v1178 = vpop.f32.mrb[0].mxu0
    %v1179 = vadd.f32 0.0, %v1178
    %v1180 = vpop.f32.mrb[0].mxu0
    %v1181 = vpop.f32.mrb[0].mxu0
    %1182 = vdwg.mxu0
    %v1183 = vadd.f32 %v1177, %v114
    %v1184 = vsub.f32 %v1098, %v1183
    %v1185 = vmul.f32 %v76, %v1184
    %v1186 = vsub.f32 %v1136, %v1179
    %v1187 = vsub.f32 %v1186, %v121
    %v1188 = vmul.f32 %v1099, %v1099
    %v1189 = vsub.f32 1.0, %v1188
    %v1190 = vmul.f32 %v1187, %v1189
    %v1191 = vsub.f32 %v1190, %v1185
    %v1192 = vmul.f32 %v427, %v1191
    %v1193 = vadd.f32 %v1098, %v1192
    %v1194 = vtanh.pop %v1193
    %v1195 = vpack.c.bf16 %v1193, %v1193
    %1196 = vmatprep.subr.bf16.mxu0 0
    %1197 = vmatpush1.bf16.msra.mxu0 %v157
    %1198 = vmatprep.subr.bf16.mxu0 0
    %1199 = vmatpush1.bf16.msra.mxu0 %v158
    %1200 = vmatprep.subr.bf16.mxu0 0
    %1201 = vmatpush1.bf16.msra.mxu0 %v159
    %1202 = vmatprep.subr.bf16.mxu0 0
    %1203 = vmatpush1.bf16.msra.mxu0 %v160
    %1204 = vmatprep.subr.bf16.mxu0 0
    %1205 = vmatpush1.bf16.msra.mxu0 %v161
    %1206 = vmatprep.subr.bf16.mxu0 0
    %1207 = vmatpush1.bf16.msra.mxu0 %v162
    %1208 = vmatprep.subr.bf16.mxu0 0
    %1209 = vmatpush1.bf16.msra.mxu0 %v163
    %1210 = vmatprep.subr.bf16.mxu0 0
    %1211 = vmatpush1.bf16.msra.mxu0 %v164
    %1212 = vmatprep.subr.bf16.mxu0 0
    %1213 = vmatpush1.bf16.msra.mxu0 0
    %1214 = vmatprep.subr.bf16.mxu0 0
    %1215 = vmatpush1.bf16.msra.mxu0 0
    %1216 = vmatprep.subr.bf16.mxu0 0
    %1217 = vmatpush1.bf16.msra.mxu0 0
    %1218 = vmatprep.subr.bf16.mxu0 0
    %1219 = vmatpush1.bf16.msra.mxu0 0
    %1220 = vmatprep.subr.bf16.mxu0 0
    %1221 = vmatpush1.bf16.msra.mxu0 0
    %1222 = vmatprep.subr.bf16.mxu0 0
    %1223 = vmatpush1.bf16.msra.mxu0 0
    %1224 = vmatprep.subr.bf16.mxu0 0
    %1225 = vmatpush1.bf16.msra.mxu0 0
    %1226 = vmatprep.subr.bf16.mxu0 0
    %1227 = vmatpush1.bf16.msra.mxu0 0
    %1228 = vmatprep.mubr.bf16.mxu0 0
    %1229 = vmatmul.mubr.bf16.gmra.mrb[0].mxu0 %v1195
    %v1230 = vpop.f32.mrb[0].mxu0
    %v1231 = vadd.f32 0.0, %v1230
    %v1232 = vpop.f32.mrb[0].mxu0
    %v1233 = vpop.f32.mrb[0].mxu0
    %v1234 = vpop.f32.mrb[0].mxu0
    %1235 = vdwg.mxu0
    %v1236 = vpack.c.bf16 %v1194, %v1194
    %1237 = vmatprep.subr.bf16.mxu0 %v350
    %1238 = vmatpush1.bf16.msra.mxu0 %v349
    %1239 = vmatprep.subr.bf16.mxu0 %v352
    %1240 = vmatpush1.bf16.msra.mxu0 %v351
    %1241 = vmatprep.subr.bf16.mxu0 %v354
    %1242 = vmatpush1.bf16.msra.mxu0 %v353
    %1243 = vmatprep.subr.bf16.mxu0 %v356
    %1244 = vmatpush1.bf16.msra.mxu0 %v355
    %1245 = vmatprep.subr.bf16.mxu0 %v358
    %1246 = vmatpush1.bf16.msra.mxu0 %v357
    %1247 = vmatprep.subr.bf16.mxu0 %v360
    %1248 = vmatpush1.bf16.msra.mxu0 %v359
    %1249 = vmatprep.subr.bf16.mxu0 %v362
    %1250 = vmatpush1.bf16.msra.mxu0 %v361
    %1251 = vmatprep.subr.bf16.mxu0 %v364
    %1252 = vmatpush1.bf16.msra.mxu0 %v363
    %1253 = vmatprep.subr.bf16.mxu0 0
    %1254 = vmatpush1.bf16.msra.mxu0 0
    %1255 = vmatprep.subr.bf16.mxu0 0
    %1256 = vmatpush1.bf16.msra.mxu0 0
    %1257 = vmatprep.subr.bf16.mxu0 0
    %1258 = vmatpush1.bf16.msra.mxu0 0
    %1259 = vmatprep.subr.bf16.mxu0 0
    %1260 = vmatpush1.bf16.msra.mxu0 0
    %1261 = vmatprep.subr.bf16.mxu0 0
    %1262 = vmatpush1.bf16.msra.mxu0 0
    %1263 = vmatprep.subr.bf16.mxu0 0
    %1264 = vmatpush1.bf16.msra.mxu0 0
    %1265 = vmatprep.subr.bf16.mxu0 0
    %1266 = vmatpush1.bf16.msra.mxu0 0
    %1267 = vmatprep.subr.bf16.mxu0 0
    %1268 = vmatpush1.bf16.msra.mxu0 0
    %1269 = vmatprep.mubr.bf16.mxu0 0
    %1270 = vmatmul.mubr.bf16.gmra.mrb[0].mxu0 %v1236
    %v1271 = vpop.f32.mrb[0].mxu0
    %v1272 = vadd.f32 0.0, %v1271
    %v1273 = vpop.f32.mrb[0].mxu0
    %v1274 = vadd.f32 0.0, %v1273
    %v1275 = vpop.f32.mrb[0].mxu0
    %v1276 = vpop.f32.mrb[0].mxu0
    %1277 = vdwg.mxu0
    %v1278 = vadd.f32 %v1272, %v114
    %v1279 = vsub.f32 %v1193, %v1278
    %v1280 = vmul.f32 %v76, %v1279
    %v1281 = vsub.f32 %v1231, %v1274
    %v1282 = vsub.f32 %v1281, %v121
    %v1283 = vmul.f32 %v1194, %v1194
    %v1284 = vsub.f32 1.0, %v1283
    %v1285 = vmul.f32 %v1282, %v1284
    %v1286 = vsub.f32 %v1285, %v1280
    %v1287 = vmul.f32 %v427, %v1286
    %v1288 = vadd.f32 %v1193, %v1287
    %v1289 = vtanh.pop %v1288
    %v1290 = vpack.c.bf16 %v1288, %v1288
    %1291 = vmatprep.subr.bf16.mxu0 0
    %1292 = vmatpush1.bf16.msra.mxu0 %v157
    %1293 = vmatprep.subr.bf16.mxu0 0
    %1294 = vmatpush1.bf16.msra.mxu0 %v158
    %1295 = vmatprep.subr.bf16.mxu0 0
    %1296 = vmatpush1.bf16.msra.mxu0 %v159
    %1297 = vmatprep.subr.bf16.mxu0 0
    %1298 = vmatpush1.bf16.msra.mxu0 %v160
    %1299 = vmatprep.subr.bf16.mxu0 0
    %1300 = vmatpush1.bf16.msra.mxu0 %v161
    %1301 = vmatprep.subr.bf16.mxu0 0
    %1302 = vmatpush1.bf16.msra.mxu0 %v162
    %1303 = vmatprep.subr.bf16.mxu0 0
    %1304 = vmatpush1.bf16.msra.mxu0 %v163
    %1305 = vmatprep.subr.bf16.mxu0 0
    %1306 = vmatpush1.bf16.msra.mxu0 %v164
    %1307 = vmatprep.subr.bf16.mxu0 0
    %1308 = vmatpush1.bf16.msra.mxu0 0
    %1309 = vmatprep.subr.bf16.mxu0 0
    %1310 = vmatpush1.bf16.msra.mxu0 0
    %1311 = vmatprep.subr.bf16.mxu0 0
    %1312 = vmatpush1.bf16.msra.mxu0 0
    %1313 = vmatprep.subr.bf16.mxu0 0
    %1314 = vmatpush1.bf16.msra.mxu0 0
    %1315 = vmatprep.subr.bf16.mxu0 0
    %1316 = vmatpush1.bf16.msra.mxu0 0
    %1317 = vmatprep.subr.bf16.mxu0 0
    %1318 = vmatpush1.bf16.msra.mxu0 0
    %1319 = vmatprep.subr.bf16.mxu0 0
    %1320 = vmatpush1.bf16.msra.mxu0 0
    %1321 = vmatprep.subr.bf16.mxu0 0
    %1322 = vmatpush1.bf16.msra.mxu0 0
    %1323 = vmatprep.mubr.bf16.mxu0 0
    %1324 = vmatmul.mubr.bf16.gmra.mrb[0].mxu0 %v1290
    %v1325 = vpop.f32.mrb[0].mxu0
    %v1326 = vadd.f32 0.0, %v1325
    %v1327 = vpop.f32.mrb[0].mxu0
    %v1328 = vpop.f32.mrb[0].mxu0
    %v1329 = vpop.f32.mrb[0].mxu0
    %1330 = vdwg.mxu0
    %v1331 = vpack.c.bf16 %v1289, %v1289
    %1332 = vmatprep.subr.bf16.mxu0 %v350
    %1333 = vmatpush1.bf16.msra.mxu0 %v349
    %1334 = vmatprep.subr.bf16.mxu0 %v352
    %1335 = vmatpush1.bf16.msra.mxu0 %v351
    %1336 = vmatprep.subr.bf16.mxu0 %v354
    %1337 = vmatpush1.bf16.msra.mxu0 %v353
    %1338 = vmatprep.subr.bf16.mxu0 %v356
    %1339 = vmatpush1.bf16.msra.mxu0 %v355
    %1340 = vmatprep.subr.bf16.mxu0 %v358
    %1341 = vmatpush1.bf16.msra.mxu0 %v357
    %1342 = vmatprep.subr.bf16.mxu0 %v360
    %1343 = vmatpush1.bf16.msra.mxu0 %v359
    %1344 = vmatprep.subr.bf16.mxu0 %v362
    %1345 = vmatpush1.bf16.msra.mxu0 %v361
    %1346 = vmatprep.subr.bf16.mxu0 %v364
    %1347 = vmatpush1.bf16.msra.mxu0 %v363
    %1348 = vmatprep.subr.bf16.mxu0 0
    %1349 = vmatpush1.bf16.msra.mxu0 0
    %1350 = vmatprep.subr.bf16.mxu0 0
    %1351 = vmatpush1.bf16.msra.mxu0 0
    %1352 = vmatprep.subr.bf16.mxu0 0
    %1353 = vmatpush1.bf16.msra.mxu0 0
    %1354 = vmatprep.subr.bf16.mxu0 0
    %1355 = vmatpush1.bf16.msra.mxu0 0
    %1356 = vmatprep.subr.bf16.mxu0 0
    %1357 = vmatpush1.bf16.msra.mxu0 0
    %1358 = vmatprep.subr.bf16.mxu0 0
    %1359 = vmatpush1.bf16.msra.mxu0 0
    %1360 = vmatprep.subr.bf16.mxu0 0
    %1361 = vmatpush1.bf16.msra.mxu0 0
    %1362 = vmatprep.subr.bf16.mxu0 0
    %1363 = vmatpush1.bf16.msra.mxu0 0
    %1364 = vmatprep.mubr.bf16.mxu0 0
    %1365 = vmatmul.mubr.bf16.gmra.mrb[0].mxu0 %v1331
    %v1366 = vpop.f32.mrb[0].mxu0
    %v1367 = vadd.f32 0.0, %v1366
    %v1368 = vpop.f32.mrb[0].mxu0
    %v1369 = vadd.f32 0.0, %v1368
    %v1370 = vpop.f32.mrb[0].mxu0
    %v1371 = vpop.f32.mrb[0].mxu0
    %1372 = vdwg.mxu0
    %v1373 = vadd.f32 %v1367, %v114
    %v1374 = vsub.f32 %v1288, %v1373
    %v1375 = vmul.f32 %v76, %v1374
    %v1376 = vsub.f32 %v1326, %v1369
    %v1377 = vsub.f32 %v1376, %v121
    %v1378 = vmul.f32 %v1289, %v1289
    %v1379 = vsub.f32 1.0, %v1378
    %v1380 = vmul.f32 %v1377, %v1379
    %v1381 = vsub.f32 %v1380, %v1375
    %v1382 = vmul.f32 %v427, %v1381
    %v1383 = vadd.f32 %v1288, %v1382
    %v1384 = vtanh.pop %v1383
    %v1385 = vpack.c.bf16 %v1383, %v1383
    %1386 = vmatprep.subr.bf16.mxu0 0
    %1387 = vmatpush1.bf16.msra.mxu0 %v157
    %1388 = vmatprep.subr.bf16.mxu0 0
    %1389 = vmatpush1.bf16.msra.mxu0 %v158
    %1390 = vmatprep.subr.bf16.mxu0 0
    %1391 = vmatpush1.bf16.msra.mxu0 %v159
    %1392 = vmatprep.subr.bf16.mxu0 0
    %1393 = vmatpush1.bf16.msra.mxu0 %v160
    %1394 = vmatprep.subr.bf16.mxu0 0
    %1395 = vmatpush1.bf16.msra.mxu0 %v161
    %1396 = vmatprep.subr.bf16.mxu0 0
    %1397 = vmatpush1.bf16.msra.mxu0 %v162
    %1398 = vmatprep.subr.bf16.mxu0 0
    %1399 = vmatpush1.bf16.msra.mxu0 %v163
    %1400 = vmatprep.subr.bf16.mxu0 0
    %1401 = vmatpush1.bf16.msra.mxu0 %v164
    %1402 = vmatprep.subr.bf16.mxu0 0
    %1403 = vmatpush1.bf16.msra.mxu0 0
    %1404 = vmatprep.subr.bf16.mxu0 0
    %1405 = vmatpush1.bf16.msra.mxu0 0
    %1406 = vmatprep.subr.bf16.mxu0 0
    %1407 = vmatpush1.bf16.msra.mxu0 0
    %1408 = vmatprep.subr.bf16.mxu0 0
    %1409 = vmatpush1.bf16.msra.mxu0 0
    %1410 = vmatprep.subr.bf16.mxu0 0
    %1411 = vmatpush1.bf16.msra.mxu0 0
    %1412 = vmatprep.subr.bf16.mxu0 0
    %1413 = vmatpush1.bf16.msra.mxu0 0
    %1414 = vmatprep.subr.bf16.mxu0 0
    %1415 = vmatpush1.bf16.msra.mxu0 0
    %1416 = vmatprep.subr.bf16.mxu0 0
    %1417 = vmatpush1.bf16.msra.mxu0 0
    %1418 = vmatprep.mubr.bf16.mxu0 0
    %1419 = vmatmul.mubr.bf16.gmra.mrb[0].mxu0 %v1385
    %v1420 = vpop.f32.mrb[0].mxu0
    %v1421 = vadd.f32 0.0, %v1420
    %v1422 = vpop.f32.mrb[0].mxu0
    %v1423 = vpop.f32.mrb[0].mxu0
    %v1424 = vpop.f32.mrb[0].mxu0
    %1425 = vdwg.mxu0
    %v1426 = vpack.c.bf16 %v1384, %v1384
    %1427 = vmatprep.subr.bf16.mxu0 %v350
    %1428 = vmatpush1.bf16.msra.mxu0 %v349
    %1429 = vmatprep.subr.bf16.mxu0 %v352
    %1430 = vmatpush1.bf16.msra.mxu0 %v351
    %1431 = vmatprep.subr.bf16.mxu0 %v354
    %1432 = vmatpush1.bf16.msra.mxu0 %v353
    %1433 = vmatprep.subr.bf16.mxu0 %v356
    %1434 = vmatpush1.bf16.msra.mxu0 %v355
    %1435 = vmatprep.subr.bf16.mxu0 %v358
    %1436 = vmatpush1.bf16.msra.mxu0 %v357
    %1437 = vmatprep.subr.bf16.mxu0 %v360
    %1438 = vmatpush1.bf16.msra.mxu0 %v359
    %1439 = vmatprep.subr.bf16.mxu0 %v362
    %1440 = vmatpush1.bf16.msra.mxu0 %v361
    %1441 = vmatprep.subr.bf16.mxu0 %v364
    %1442 = vmatpush1.bf16.msra.mxu0 %v363
    %1443 = vmatprep.subr.bf16.mxu0 0
    %1444 = vmatpush1.bf16.msra.mxu0 0
    %1445 = vmatprep.subr.bf16.mxu0 0
    %1446 = vmatpush1.bf16.msra.mxu0 0
    %1447 = vmatprep.subr.bf16.mxu0 0
    %1448 = vmatpush1.bf16.msra.mxu0 0
    %1449 = vmatprep.subr.bf16.mxu0 0
    %1450 = vmatpush1.bf16.msra.mxu0 0
    %1451 = vmatprep.subr.bf16.mxu0 0
    %1452 = vmatpush1.bf16.msra.mxu0 0
    %1453 = vmatprep.subr.bf16.mxu0 0
    %1454 = vmatpush1.bf16.msra.mxu0 0
    %1455 = vmatprep.subr.bf16.mxu0 0
    %1456 = vmatpush1.bf16.msra.mxu0 0
    %1457 = vmatprep.subr.bf16.mxu0 0
    %1458 = vmatpush1.bf16.msra.mxu0 0
    %1459 = vmatprep.mubr.bf16.mxu0 0
    %1460 = vmatmul.mubr.bf16.gmra.mrb[0].mxu0 %v1426
    %v1461 = vpop.f32.mrb[0].mxu0
    %v1462 = vadd.f32 0.0, %v1461
    %v1463 = vpop.f32.mrb[0].mxu0
    %v1464 = vadd.f32 0.0, %v1463
    %v1465 = vpop.f32.mrb[0].mxu0
    %v1466 = vpop.f32.mrb[0].mxu0
    %1467 = vdwg.mxu0
    %v1468 = vadd.f32 %v1462, %v114
    %v1469 = vsub.f32 %v1383, %v1468
    %v1470 = vmul.f32 %v76, %v1469
    %v1471 = vsub.f32 %v1421, %v1464
    %v1472 = vsub.f32 %v1471, %v121
    %v1473 = vmul.f32 %v1384, %v1384
    %v1474 = vsub.f32 1.0, %v1473
    %v1475 = vmul.f32 %v1472, %v1474
    %v1476 = vsub.f32 %v1475, %v1470
    %v1477 = vmul.f32 %v427, %v1476
    %v1478 = vadd.f32 %v1383, %v1477
    %v1479 = vtanh.pop %v1478
    %v1480 = vpack.c.bf16 %v1478, %v1478
    %1481 = vmatprep.subr.bf16.mxu0 0
    %1482 = vmatpush1.bf16.msra.mxu0 %v157
    %1483 = vmatprep.subr.bf16.mxu0 0
    %1484 = vmatpush1.bf16.msra.mxu0 %v158
    %1485 = vmatprep.subr.bf16.mxu0 0
    %1486 = vmatpush1.bf16.msra.mxu0 %v159
    %1487 = vmatprep.subr.bf16.mxu0 0
    %1488 = vmatpush1.bf16.msra.mxu0 %v160
    %1489 = vmatprep.subr.bf16.mxu0 0
    %1490 = vmatpush1.bf16.msra.mxu0 %v161
    %1491 = vmatprep.subr.bf16.mxu0 0
    %1492 = vmatpush1.bf16.msra.mxu0 %v162
    %1493 = vmatprep.subr.bf16.mxu0 0
    %1494 = vmatpush1.bf16.msra.mxu0 %v163
    %1495 = vmatprep.subr.bf16.mxu0 0
    %1496 = vmatpush1.bf16.msra.mxu0 %v164
    %1497 = vmatprep.subr.bf16.mxu0 0
    %1498 = vmatpush1.bf16.msra.mxu0 0
    %1499 = vmatprep.subr.bf16.mxu0 0
    %1500 = vmatpush1.bf16.msra.mxu0 0
    %1501 = vmatprep.subr.bf16.mxu0 0
    %1502 = vmatpush1.bf16.msra.mxu0 0
    %1503 = vmatprep.subr.bf16.mxu0 0
    %1504 = vmatpush1.bf16.msra.mxu0 0
    %1505 = vmatprep.subr.bf16.mxu0 0
    %1506 = vmatpush1.bf16.msra.mxu0 0
    %1507 = vmatprep.subr.bf16.mxu0 0
    %1508 = vmatpush1.bf16.msra.mxu0 0
    %1509 = vmatprep.subr.bf16.mxu0 0
    %1510 = vmatpush1.bf16.msra.mxu0 0
    %1511 = vmatprep.subr.bf16.mxu0 0
    %1512 = vmatpush1.bf16.msra.mxu0 0
    %1513 = vmatprep.mubr.bf16.mxu0 0
    %1514 = vmatmul.mubr.bf16.gmra.mrb[0].mxu0 %v1480
    %v1515 = vpop.f32.mrb[0].mxu0
    %v1516 = vadd.f32 0.0, %v1515
    %v1517 = vpop.f32.mrb[0].mxu0
    %v1518 = vpop.f32.mrb[0].mxu0
    %v1519 = vpop.f32.mrb[0].mxu0
    %1520 = vdwg.mxu0
    %v1521 = vpack.c.bf16 %v1479, %v1479
    %1522 = vmatprep.subr.bf16.mxu0 %v350
    %1523 = vmatpush1.bf16.msra.mxu0 %v349
    %1524 = vmatprep.subr.bf16.mxu0 %v352
    %1525 = vmatpush1.bf16.msra.mxu0 %v351
    %1526 = vmatprep.subr.bf16.mxu0 %v354
    %1527 = vmatpush1.bf16.msra.mxu0 %v353
    %1528 = vmatprep.subr.bf16.mxu0 %v356
    %1529 = vmatpush1.bf16.msra.mxu0 %v355
    %1530 = vmatprep.subr.bf16.mxu0 %v358
    %1531 = vmatpush1.bf16.msra.mxu0 %v357
    %1532 = vmatprep.subr.bf16.mxu0 %v360
    %1533 = vmatpush1.bf16.msra.mxu0 %v359
    %1534 = vmatprep.subr.bf16.mxu0 %v362
    %1535 = vmatpush1.bf16.msra.mxu0 %v361
    %1536 = vmatprep.subr.bf16.mxu0 %v364
    %1537 = vmatpush1.bf16.msra.mxu0 %v363
    %1538 = vmatprep.subr.bf16.mxu0 0
    %1539 = vmatpush1.bf16.msra.mxu0 0
    %1540 = vmatprep.subr.bf16.mxu0 0
    %1541 = vmatpush1.bf16.msra.mxu0 0
    %1542 = vmatprep.subr.bf16.mxu0 0
    %1543 = vmatpush1.bf16.msra.mxu0 0
    %1544 = vmatprep.subr.bf16.mxu0 0
    %1545 = vmatpush1.bf16.msra.mxu0 0
    %1546 = vmatprep.subr.bf16.mxu0 0
    %1547 = vmatpush1.bf16.msra.mxu0 0
    %1548 = vmatprep.subr.bf16.mxu0 0
    %1549 = vmatpush1.bf16.msra.mxu0 0
    %1550 = vmatprep.subr.bf16.mxu0 0
    %1551 = vmatpush1.bf16.msra.mxu0 0
    %1552 = vmatprep.subr.bf16.mxu0 0
    %1553 = vmatpush1.bf16.msra.mxu0 0
    %1554 = vmatprep.mubr.bf16.mxu0 0
    %1555 = vmatmul.mubr.bf16.gmra.mrb[0].mxu0 %v1521
    %v1556 = vpop.f32.mrb[0].mxu0
    %v1557 = vadd.f32 0.0, %v1556
    %v1558 = vpop.f32.mrb[0].mxu0
    %v1559 = vadd.f32 0.0, %v1558
    %v1560 = vpop.f32.mrb[0].mxu0
    %v1561 = vpop.f32.mrb[0].mxu0
    %1562 = vdwg.mxu0
    %v1563 = vadd.f32 %v1557, %v114
    %v1564 = vsub.f32 %v1478, %v1563
    %v1565 = vmul.f32 %v76, %v1564
    %v1566 = vsub.f32 %v1516, %v1559
    %v1567 = vsub.f32 %v1566, %v121
    %v1568 = vmul.f32 %v1479, %v1479
    %v1569 = vsub.f32 1.0, %v1568
    %v1570 = vmul.f32 %v1567, %v1569
    %v1571 = vsub.f32 %v1570, %v1565
    %v1572 = vmul.f32 %v427, %v1571
    %v1573 = vadd.f32 %v1478, %v1572
    %v1574 = vtanh.pop %v1573
    %v1575 = vpack.c.bf16 %v1573, %v1573
    %1576 = vmatprep.subr.bf16.mxu0 0
    %1577 = vmatpush1.bf16.msra.mxu0 %v157
    %1578 = vmatprep.subr.bf16.mxu0 0
    %1579 = vmatpush1.bf16.msra.mxu0 %v158
    %1580 = vmatprep.subr.bf16.mxu0 0
    %1581 = vmatpush1.bf16.msra.mxu0 %v159
    %1582 = vmatprep.subr.bf16.mxu0 0
    %1583 = vmatpush1.bf16.msra.mxu0 %v160
    %1584 = vmatprep.subr.bf16.mxu0 0
    %1585 = vmatpush1.bf16.msra.mxu0 %v161
    %1586 = vmatprep.subr.bf16.mxu0 0
    %1587 = vmatpush1.bf16.msra.mxu0 %v162
    %1588 = vmatprep.subr.bf16.mxu0 0
    %1589 = vmatpush1.bf16.msra.mxu0 %v163
    %1590 = vmatprep.subr.bf16.mxu0 0
    %1591 = vmatpush1.bf16.msra.mxu0 %v164
    %1592 = vmatprep.subr.bf16.mxu0 0
    %1593 = vmatpush1.bf16.msra.mxu0 0
    %1594 = vmatprep.subr.bf16.mxu0 0
    %1595 = vmatpush1.bf16.msra.mxu0 0
    %1596 = vmatprep.subr.bf16.mxu0 0
    %1597 = vmatpush1.bf16.msra.mxu0 0
    %1598 = vmatprep.subr.bf16.mxu0 0
    %1599 = vmatpush1.bf16.msra.mxu0 0
    %1600 = vmatprep.subr.bf16.mxu0 0
    %1601 = vmatpush1.bf16.msra.mxu0 0
    %1602 = vmatprep.subr.bf16.mxu0 0
    %1603 = vmatpush1.bf16.msra.mxu0 0
    %1604 = vmatprep.subr.bf16.mxu0 0
    %1605 = vmatpush1.bf16.msra.mxu0 0
    %1606 = vmatprep.subr.bf16.mxu0 0
    %1607 = vmatpush1.bf16.msra.mxu0 0
    %1608 = vmatprep.mubr.bf16.mxu0 0
    %1609 = vmatmul.mubr.bf16.gmra.mrb[0].mxu0 %v1575
    %v1610 = vpop.f32.mrb[0].mxu0
    %v1611 = vadd.f32 0.0, %v1610
    %v1612 = vpop.f32.mrb[0].mxu0
    %v1613 = vpop.f32.mrb[0].mxu0
    %v1614 = vpop.f32.mrb[0].mxu0
    %1615 = vdwg.mxu0
    %v1616 = vpack.c.bf16 %v1574, %v1574
    %1617 = vmatprep.subr.bf16.mxu0 %v350
    %1618 = vmatpush1.bf16.msra.mxu0 %v349
    %1619 = vmatprep.subr.bf16.mxu0 %v352
    %1620 = vmatpush1.bf16.msra.mxu0 %v351
    %1621 = vmatprep.subr.bf16.mxu0 %v354
    %1622 = vmatpush1.bf16.msra.mxu0 %v353
    %1623 = vmatprep.subr.bf16.mxu0 %v356
    %1624 = vmatpush1.bf16.msra.mxu0 %v355
    %1625 = vmatprep.subr.bf16.mxu0 %v358
    %1626 = vmatpush1.bf16.msra.mxu0 %v357
    %1627 = vmatprep.subr.bf16.mxu0 %v360
    %1628 = vmatpush1.bf16.msra.mxu0 %v359
    %1629 = vmatprep.subr.bf16.mxu0 %v362
    %1630 = vmatpush1.bf16.msra.mxu0 %v361
    %1631 = vmatprep.subr.bf16.mxu0 %v364
    %1632 = vmatpush1.bf16.msra.mxu0 %v363
    %1633 = vmatprep.subr.bf16.mxu0 0
    %1634 = vmatpush1.bf16.msra.mxu0 0
    %1635 = vmatprep.subr.bf16.mxu0 0
    %1636 = vmatpush1.bf16.msra.mxu0 0
    %1637 = vmatprep.subr.bf16.mxu0 0
    %1638 = vmatpush1.bf16.msra.mxu0 0
    %1639 = vmatprep.subr.bf16.mxu0 0
    %1640 = vmatpush1.bf16.msra.mxu0 0
    %1641 = vmatprep.subr.bf16.mxu0 0
    %1642 = vmatpush1.bf16.msra.mxu0 0
    %1643 = vmatprep.subr.bf16.mxu0 0
    %1644 = vmatpush1.bf16.msra.mxu0 0
    %1645 = vmatprep.subr.bf16.mxu0 0
    %1646 = vmatpush1.bf16.msra.mxu0 0
    %1647 = vmatprep.subr.bf16.mxu0 0
    %1648 = vmatpush1.bf16.msra.mxu0 0
    %1649 = vmatprep.mubr.bf16.mxu0 0
    %1650 = vmatmul.mubr.bf16.gmra.mrb[0].mxu0 %v1616
    %v1651 = vpop.f32.mrb[0].mxu0
    %v1652 = vadd.f32 0.0, %v1651
    %v1653 = vpop.f32.mrb[0].mxu0
    %v1654 = vadd.f32 0.0, %v1653
    %v1655 = vpop.f32.mrb[0].mxu0
    %v1656 = vpop.f32.mrb[0].mxu0
    %1657 = vdwg.mxu0
    %v1658 = vadd.f32 %v1652, %v114
    %v1659 = vsub.f32 %v1573, %v1658
    %v1660 = vmul.f32 %v76, %v1659
    %v1661 = vsub.f32 %v1611, %v1654
    %v1662 = vsub.f32 %v1661, %v121
    %v1663 = vmul.f32 %v1574, %v1574
    %v1664 = vsub.f32 1.0, %v1663
    %v1665 = vmul.f32 %v1662, %v1664
    %v1666 = vsub.f32 %v1665, %v1660
    %v1667 = vmul.f32 %v427, %v1666
    %v1668 = vadd.f32 %v1573, %v1667
    %v1669 = vtanh.pop %v1668
    %v1670 = vpack.c.bf16 %v1668, %v1668
    %1671 = vmatprep.subr.bf16.mxu0 0
    %1672 = vmatpush1.bf16.msra.mxu0 %v157
    %1673 = vmatprep.subr.bf16.mxu0 0
    %1674 = vmatpush1.bf16.msra.mxu0 %v158
    %1675 = vmatprep.subr.bf16.mxu0 0
    %1676 = vmatpush1.bf16.msra.mxu0 %v159
    %1677 = vmatprep.subr.bf16.mxu0 0
    %1678 = vmatpush1.bf16.msra.mxu0 %v160
    %1679 = vmatprep.subr.bf16.mxu0 0
    %1680 = vmatpush1.bf16.msra.mxu0 %v161
    %1681 = vmatprep.subr.bf16.mxu0 0
    %1682 = vmatpush1.bf16.msra.mxu0 %v162
    %1683 = vmatprep.subr.bf16.mxu0 0
    %1684 = vmatpush1.bf16.msra.mxu0 %v163
    %1685 = vmatprep.subr.bf16.mxu0 0
    %1686 = vmatpush1.bf16.msra.mxu0 %v164
    %1687 = vmatprep.subr.bf16.mxu0 0
    %1688 = vmatpush1.bf16.msra.mxu0 0
    %1689 = vmatprep.subr.bf16.mxu0 0
    %1690 = vmatpush1.bf16.msra.mxu0 0
    %1691 = vmatprep.subr.bf16.mxu0 0
    %1692 = vmatpush1.bf16.msra.mxu0 0
    %1693 = vmatprep.subr.bf16.mxu0 0
    %1694 = vmatpush1.bf16.msra.mxu0 0
    %1695 = vmatprep.subr.bf16.mxu0 0
    %1696 = vmatpush1.bf16.msra.mxu0 0
    %1697 = vmatprep.subr.bf16.mxu0 0
    %1698 = vmatpush1.bf16.msra.mxu0 0
    %1699 = vmatprep.subr.bf16.mxu0 0
    %1700 = vmatpush1.bf16.msra.mxu0 0
    %1701 = vmatprep.subr.bf16.mxu0 0
    %1702 = vmatpush1.bf16.msra.mxu0 0
    %1703 = vmatprep.mubr.bf16.mxu0 0
    %1704 = vmatmul.mubr.bf16.gmra.mrb[0].mxu0 %v1670
    %v1705 = vpop.f32.mrb[0].mxu0
    %v1706 = vadd.f32 0.0, %v1705
    %v1707 = vpop.f32.mrb[0].mxu0
    %v1708 = vpop.f32.mrb[0].mxu0
    %v1709 = vpop.f32.mrb[0].mxu0
    %1710 = vdwg.mxu0
    %v1711 = vpack.c.bf16 %v1669, %v1669
    %1712 = vmatprep.subr.bf16.mxu0 %v350
    %1713 = vmatpush1.bf16.msra.mxu0 %v349
    %1714 = vmatprep.subr.bf16.mxu0 %v352
    %1715 = vmatpush1.bf16.msra.mxu0 %v351
    %1716 = vmatprep.subr.bf16.mxu0 %v354
    %1717 = vmatpush1.bf16.msra.mxu0 %v353
    %1718 = vmatprep.subr.bf16.mxu0 %v356
    %1719 = vmatpush1.bf16.msra.mxu0 %v355
    %1720 = vmatprep.subr.bf16.mxu0 %v358
    %1721 = vmatpush1.bf16.msra.mxu0 %v357
    %1722 = vmatprep.subr.bf16.mxu0 %v360
    %1723 = vmatpush1.bf16.msra.mxu0 %v359
    %1724 = vmatprep.subr.bf16.mxu0 %v362
    %1725 = vmatpush1.bf16.msra.mxu0 %v361
    %1726 = vmatprep.subr.bf16.mxu0 %v364
    %1727 = vmatpush1.bf16.msra.mxu0 %v363
    %1728 = vmatprep.subr.bf16.mxu0 0
    %1729 = vmatpush1.bf16.msra.mxu0 0
    %1730 = vmatprep.subr.bf16.mxu0 0
    %1731 = vmatpush1.bf16.msra.mxu0 0
    %1732 = vmatprep.subr.bf16.mxu0 0
    %1733 = vmatpush1.bf16.msra.mxu0 0
    %1734 = vmatprep.subr.bf16.mxu0 0
    %1735 = vmatpush1.bf16.msra.mxu0 0
    %1736 = vmatprep.subr.bf16.mxu0 0
    %1737 = vmatpush1.bf16.msra.mxu0 0
    %1738 = vmatprep.subr.bf16.mxu0 0
    %1739 = vmatpush1.bf16.msra.mxu0 0
    %1740 = vmatprep.subr.bf16.mxu0 0
    %1741 = vmatpush1.bf16.msra.mxu0 0
    %1742 = vmatprep.subr.bf16.mxu0 0
    %1743 = vmatpush1.bf16.msra.mxu0 0
    %1744 = vmatprep.mubr.bf16.mxu0 0
    %1745 = vmatmul.mubr.bf16.gmra.mrb[0].mxu0 %v1711
    %v1746 = vpop.f32.mrb[0].mxu0
    %v1747 = vadd.f32 0.0, %v1746
    %v1748 = vpop.f32.mrb[0].mxu0
    %v1749 = vadd.f32 0.0, %v1748
    %v1750 = vpop.f32.mrb[0].mxu0
    %v1751 = vpop.f32.mrb[0].mxu0
    %1752 = vdwg.mxu0
    %v1753 = vadd.f32 %v1747, %v114
    %v1754 = vsub.f32 %v1668, %v1753
    %v1755 = vmul.f32 %v76, %v1754
    %v1756 = vsub.f32 %v1706, %v1749
    %v1757 = vsub.f32 %v1756, %v121
    %v1758 = vmul.f32 %v1669, %v1669
    %v1759 = vsub.f32 1.0, %v1758
    %v1760 = vmul.f32 %v1757, %v1759
    %v1761 = vsub.f32 %v1760, %v1755
    %v1762 = vmul.f32 %v427, %v1761
    %v1763 = vadd.f32 %v1668, %v1762
    %v1764 = vtanh.pop %v1763
    %v1765 = vpack.c.bf16 %v1763, %v1763
    %1766 = vmatprep.subr.bf16.mxu0 0
    %1767 = vmatpush1.bf16.msra.mxu0 %v157
    %1768 = vmatprep.subr.bf16.mxu0 0
    %1769 = vmatpush1.bf16.msra.mxu0 %v158
    %1770 = vmatprep.subr.bf16.mxu0 0
    %1771 = vmatpush1.bf16.msra.mxu0 %v159
    %1772 = vmatprep.subr.bf16.mxu0 0
    %1773 = vmatpush1.bf16.msra.mxu0 %v160
    %1774 = vmatprep.subr.bf16.mxu0 0
    %1775 = vmatpush1.bf16.msra.mxu0 %v161
    %1776 = vmatprep.subr.bf16.mxu0 0
    %1777 = vmatpush1.bf16.msra.mxu0 %v162
    %1778 = vmatprep.subr.bf16.mxu0 0
    %1779 = vmatpush1.bf16.msra.mxu0 %v163
    %1780 = vmatprep.subr.bf16.mxu0 0
    %1781 = vmatpush1.bf16.msra.mxu0 %v164
    %1782 = vmatprep.subr.bf16.mxu0 0
    %1783 = vmatpush1.bf16.msra.mxu0 0
    %1784 = vmatprep.subr.bf16.mxu0 0
    %1785 = vmatpush1.bf16.msra.mxu0 0
    %1786 = vmatprep.subr.bf16.mxu0 0
    %1787 = vmatpush1.bf16.msra.mxu0 0
    %1788 = vmatprep.subr.bf16.mxu0 0
    %1789 = vmatpush1.bf16.msra.mxu0 0
    %1790 = vmatprep.subr.bf16.mxu0 0
    %1791 = vmatpush1.bf16.msra.mxu0 0
    %1792 = vmatprep.subr.bf16.mxu0 0
    %1793 = vmatpush1.bf16.msra.mxu0 0
    %1794 = vmatprep.subr.bf16.mxu0 0
    %1795 = vmatpush1.bf16.msra.mxu0 0
    %1796 = vmatprep.subr.bf16.mxu0 0
    %1797 = vmatpush1.bf16.msra.mxu0 0
    %1798 = vmatprep.mubr.bf16.mxu0 0
    %1799 = vmatmul.mubr.bf16.gmra.mrb[0].mxu0 %v1765
    %v1800 = vpop.f32.mrb[0].mxu0
    %v1801 = vadd.f32 0.0, %v1800
    %v1802 = vpop.f32.mrb[0].mxu0
    %v1803 = vpop.f32.mrb[0].mxu0
    %v1804 = vpop.f32.mrb[0].mxu0
    %1805 = vdwg.mxu0
    %v1806 = vpack.c.bf16 %v1764, %v1764
    %1807 = vmatprep.subr.bf16.mxu0 %v350
    %1808 = vmatpush1.bf16.msra.mxu0 %v349
    %1809 = vmatprep.subr.bf16.mxu0 %v352
    %1810 = vmatpush1.bf16.msra.mxu0 %v351
    %1811 = vmatprep.subr.bf16.mxu0 %v354
    %1812 = vmatpush1.bf16.msra.mxu0 %v353
    %1813 = vmatprep.subr.bf16.mxu0 %v356
    %1814 = vmatpush1.bf16.msra.mxu0 %v355
    %1815 = vmatprep.subr.bf16.mxu0 %v358
    %1816 = vmatpush1.bf16.msra.mxu0 %v357
    %1817 = vmatprep.subr.bf16.mxu0 %v360
    %1818 = vmatpush1.bf16.msra.mxu0 %v359
    %1819 = vmatprep.subr.bf16.mxu0 %v362
    %1820 = vmatpush1.bf16.msra.mxu0 %v361
    %1821 = vmatprep.subr.bf16.mxu0 %v364
    %1822 = vmatpush1.bf16.msra.mxu0 %v363
    %1823 = vmatprep.subr.bf16.mxu0 0
    %1824 = vmatpush1.bf16.msra.mxu0 0
    %1825 = vmatprep.subr.bf16.mxu0 0
    %1826 = vmatpush1.bf16.msra.mxu0 0
    %1827 = vmatprep.subr.bf16.mxu0 0
    %1828 = vmatpush1.bf16.msra.mxu0 0
    %1829 = vmatprep.subr.bf16.mxu0 0
    %1830 = vmatpush1.bf16.msra.mxu0 0
    %1831 = vmatprep.subr.bf16.mxu0 0
    %1832 = vmatpush1.bf16.msra.mxu0 0
    %1833 = vmatprep.subr.bf16.mxu0 0
    %1834 = vmatpush1.bf16.msra.mxu0 0
    %1835 = vmatprep.subr.bf16.mxu0 0
    %1836 = vmatpush1.bf16.msra.mxu0 0
    %1837 = vmatprep.subr.bf16.mxu0 0
    %1838 = vmatpush1.bf16.msra.mxu0 0
    %1839 = vmatprep.mubr.bf16.mxu0 0
    %1840 = vmatmul.mubr.bf16.gmra.mrb[0].mxu0 %v1806
    %v1841 = vpop.f32.mrb[0].mxu0
    %v1842 = vadd.f32 0.0, %v1841
    %v1843 = vpop.f32.mrb[0].mxu0
    %v1844 = vadd.f32 0.0, %v1843
    %v1845 = vpop.f32.mrb[0].mxu0
    %v1846 = vpop.f32.mrb[0].mxu0
    %1847 = vdwg.mxu0
    %v1848 = vadd.f32 %v1842, %v114
    %v1849 = vsub.f32 %v1763, %v1848
    %v1850 = vmul.f32 %v76, %v1849
    %v1851 = vsub.f32 %v1801, %v1844
    %v1852 = vsub.f32 %v1851, %v121
    %v1853 = vmul.f32 %v1764, %v1764
    %v1854 = vsub.f32 1.0, %v1853
    %v1855 = vmul.f32 %v1852, %v1854
    %v1856 = vsub.f32 %v1855, %v1850
    %v1857 = vmul.f32 %v427, %v1856
    %v1858 = vadd.f32 %v1763, %v1857
    %v1859 = vtanh.pop %v1858
    %v1860 = vpack.c.bf16 %v1858, %v1858
    %1861 = vmatprep.subr.bf16.mxu0 0
    %1862 = vmatpush1.bf16.msra.mxu0 %v157
    %1863 = vmatprep.subr.bf16.mxu0 0
    %1864 = vmatpush1.bf16.msra.mxu0 %v158
    %1865 = vmatprep.subr.bf16.mxu0 0
    %1866 = vmatpush1.bf16.msra.mxu0 %v159
    %1867 = vmatprep.subr.bf16.mxu0 0
    %1868 = vmatpush1.bf16.msra.mxu0 %v160
    %1869 = vmatprep.subr.bf16.mxu0 0
    %1870 = vmatpush1.bf16.msra.mxu0 %v161
    %1871 = vmatprep.subr.bf16.mxu0 0
    %1872 = vmatpush1.bf16.msra.mxu0 %v162
    %1873 = vmatprep.subr.bf16.mxu0 0
    %1874 = vmatpush1.bf16.msra.mxu0 %v163
    %1875 = vmatprep.subr.bf16.mxu0 0
    %1876 = vmatpush1.bf16.msra.mxu0 %v164
    %1877 = vmatprep.subr.bf16.mxu0 0
    %1878 = vmatpush1.bf16.msra.mxu0 0
    %1879 = vmatprep.subr.bf16.mxu0 0
    %1880 = vmatpush1.bf16.msra.mxu0 0
    %1881 = vmatprep.subr.bf16.mxu0 0
    %1882 = vmatpush1.bf16.msra.mxu0 0
    %1883 = vmatprep.subr.bf16.mxu0 0
    %1884 = vmatpush1.bf16.msra.mxu0 0
    %1885 = vmatprep.subr.bf16.mxu0 0
    %1886 = vmatpush1.bf16.msra.mxu0 0
    %1887 = vmatprep.subr.bf16.mxu0 0
    %1888 = vmatpush1.bf16.msra.mxu0 0
    %1889 = vmatprep.subr.bf16.mxu0 0
    %1890 = vmatpush1.bf16.msra.mxu0 0
    %1891 = vmatprep.subr.bf16.mxu0 0
    %1892 = vmatpush1.bf16.msra.mxu0 0
    %1893 = vmatprep.mubr.bf16.mxu0 0
    %1894 = vmatmul.mubr.bf16.gmra.mrb[0].mxu0 %v1860
    %v1895 = vpop.f32.mrb[0].mxu0
    %v1896 = vadd.f32 0.0, %v1895
    %v1897 = vpop.f32.mrb[0].mxu0
    %v1898 = vpop.f32.mrb[0].mxu0
    %v1899 = vpop.f32.mrb[0].mxu0
    %1900 = vdwg.mxu0
    %v1901 = vpack.c.bf16 %v1859, %v1859
    %1902 = vmatprep.subr.bf16.mxu0 %v350
    %1903 = vmatpush1.bf16.msra.mxu0 %v349
    %1904 = vmatprep.subr.bf16.mxu0 %v352
    %1905 = vmatpush1.bf16.msra.mxu0 %v351
    %1906 = vmatprep.subr.bf16.mxu0 %v354
    %1907 = vmatpush1.bf16.msra.mxu0 %v353
    %1908 = vmatprep.subr.bf16.mxu0 %v356
    %1909 = vmatpush1.bf16.msra.mxu0 %v355
    %1910 = vmatprep.subr.bf16.mxu0 %v358
    %1911 = vmatpush1.bf16.msra.mxu0 %v357
    %1912 = vmatprep.subr.bf16.mxu0 %v360
    %1913 = vmatpush1.bf16.msra.mxu0 %v359
    %1914 = vmatprep.subr.bf16.mxu0 %v362
    %1915 = vmatpush1.bf16.msra.mxu0 %v361
    %1916 = vmatprep.subr.bf16.mxu0 %v364
    %1917 = vmatpush1.bf16.msra.mxu0 %v363
    %1918 = vmatprep.subr.bf16.mxu0 0
    %1919 = vmatpush1.bf16.msra.mxu0 0
    %1920 = vmatprep.subr.bf16.mxu0 0
    %1921 = vmatpush1.bf16.msra.mxu0 0
    %1922 = vmatprep.subr.bf16.mxu0 0
    %1923 = vmatpush1.bf16.msra.mxu0 0
    %1924 = vmatprep.subr.bf16.mxu0 0
    %1925 = vmatpush1.bf16.msra.mxu0 0
    %1926 = vmatprep.subr.bf16.mxu0 0
    %1927 = vmatpush1.bf16.msra.mxu0 0
    %1928 = vmatprep.subr.bf16.mxu0 0
    %1929 = vmatpush1.bf16.msra.mxu0 0
    %1930 = vmatprep.subr.bf16.mxu0 0
    %1931 = vmatpush1.bf16.msra.mxu0 0
    %1932 = vmatprep.subr.bf16.mxu0 0
    %1933 = vmatpush1.bf16.msra.mxu0 0
    %1934 = vmatprep.mubr.bf16.mxu0 0
    %1935 = vmatmul.mubr.bf16.gmra.mrb[0].mxu0 %v1901
    %v1936 = vpop.f32.mrb[0].mxu0
    %v1937 = vadd.f32 0.0, %v1936
    %v1938 = vpop.f32.mrb[0].mxu0
    %v1939 = vadd.f32 0.0, %v1938
    %v1940 = vpop.f32.mrb[0].mxu0
    %v1941 = vpop.f32.mrb[0].mxu0
    %1942 = vdwg.mxu0
    %v1943 = vadd.f32 %v1937, %v114
    %v1944 = vsub.f32 %v1858, %v1943
    %v1945 = vmul.f32 %v76, %v1944
    %v1946 = vsub.f32 %v1896, %v1939
    %v1947 = vsub.f32 %v1946, %v121
    %v1948 = vmul.f32 %v1859, %v1859
    %v1949 = vsub.f32 1.0, %v1948
    %v1950 = vmul.f32 %v1947, %v1949
    %v1951 = vsub.f32 %v1950, %v1945
    %v1952 = vmul.f32 %v427, %v1951
    %v1953 = vadd.f32 %v1858, %v1952
    %v1954 = vtanh.pop %v1953
    %v1955 = vpack.c.bf16 %v1953, %v1953
    %1956 = vmatprep.subr.bf16.mxu0 0
    %1957 = vmatpush1.bf16.msra.mxu0 %v157
    %1958 = vmatprep.subr.bf16.mxu0 0
    %1959 = vmatpush1.bf16.msra.mxu0 %v158
    %1960 = vmatprep.subr.bf16.mxu0 0
    %1961 = vmatpush1.bf16.msra.mxu0 %v159
    %1962 = vmatprep.subr.bf16.mxu0 0
    %1963 = vmatpush1.bf16.msra.mxu0 %v160
    %1964 = vmatprep.subr.bf16.mxu0 0
    %1965 = vmatpush1.bf16.msra.mxu0 %v161
    %1966 = vmatprep.subr.bf16.mxu0 0
    %1967 = vmatpush1.bf16.msra.mxu0 %v162
    %1968 = vmatprep.subr.bf16.mxu0 0
    %1969 = vmatpush1.bf16.msra.mxu0 %v163
    %1970 = vmatprep.subr.bf16.mxu0 0
    %1971 = vmatpush1.bf16.msra.mxu0 %v164
    %1972 = vmatprep.subr.bf16.mxu0 0
    %1973 = vmatpush1.bf16.msra.mxu0 0
    %1974 = vmatprep.subr.bf16.mxu0 0
    %1975 = vmatpush1.bf16.msra.mxu0 0
    %1976 = vmatprep.subr.bf16.mxu0 0
    %1977 = vmatpush1.bf16.msra.mxu0 0
    %1978 = vmatprep.subr.bf16.mxu0 0
    %1979 = vmatpush1.bf16.msra.mxu0 0
    %1980 = vmatprep.subr.bf16.mxu0 0
    %1981 = vmatpush1.bf16.msra.mxu0 0
    %1982 = vmatprep.subr.bf16.mxu0 0
    %1983 = vmatpush1.bf16.msra.mxu0 0
    %1984 = vmatprep.subr.bf16.mxu0 0
    %1985 = vmatpush1.bf16.msra.mxu0 0
    %1986 = vmatprep.subr.bf16.mxu0 0
    %1987 = vmatpush1.bf16.msra.mxu0 0
    %1988 = vmatprep.mubr.bf16.mxu0 0
    %1989 = vmatmul.mubr.bf16.gmra.mrb[0].mxu0 %v1955
    %v1990 = vpop.f32.mrb[0].mxu0
    %v1991 = vadd.f32 0.0, %v1990
    %v1992 = vpop.f32.mrb[0].mxu0
    %v1993 = vpop.f32.mrb[0].mxu0
    %v1994 = vpop.f32.mrb[0].mxu0
    %1995 = vdwg.mxu0
    %v1996 = vpack.c.bf16 %v1954, %v1954
    %1997 = vmatprep.subr.bf16.mxu0 %v350
    %1998 = vmatpush1.bf16.msra.mxu0 %v349
    %1999 = vmatprep.subr.bf16.mxu0 %v352
    %2000 = vmatpush1.bf16.msra.mxu0 %v351
    %2001 = vmatprep.subr.bf16.mxu0 %v354
    %2002 = vmatpush1.bf16.msra.mxu0 %v353
    %2003 = vmatprep.subr.bf16.mxu0 %v356
    %2004 = vmatpush1.bf16.msra.mxu0 %v355
    %2005 = vmatprep.subr.bf16.mxu0 %v358
    %2006 = vmatpush1.bf16.msra.mxu0 %v357
    %2007 = vmatprep.subr.bf16.mxu0 %v360
    %2008 = vmatpush1.bf16.msra.mxu0 %v359
    %2009 = vmatprep.subr.bf16.mxu0 %v362
    %2010 = vmatpush1.bf16.msra.mxu0 %v361
    %2011 = vmatprep.subr.bf16.mxu0 %v364
    %2012 = vmatpush1.bf16.msra.mxu0 %v363
    %2013 = vmatprep.subr.bf16.mxu0 0
    %2014 = vmatpush1.bf16.msra.mxu0 0
    %2015 = vmatprep.subr.bf16.mxu0 0
    %2016 = vmatpush1.bf16.msra.mxu0 0
    %2017 = vmatprep.subr.bf16.mxu0 0
    %2018 = vmatpush1.bf16.msra.mxu0 0
    %2019 = vmatprep.subr.bf16.mxu0 0
    %2020 = vmatpush1.bf16.msra.mxu0 0
    %2021 = vmatprep.subr.bf16.mxu0 0
    %2022 = vmatpush1.bf16.msra.mxu0 0
    %2023 = vmatprep.subr.bf16.mxu0 0
    %2024 = vmatpush1.bf16.msra.mxu0 0
    %2025 = vmatprep.subr.bf16.mxu0 0
    %2026 = vmatpush1.bf16.msra.mxu0 0
    %2027 = vmatprep.subr.bf16.mxu0 0
    %2028 = vmatpush1.bf16.msra.mxu0 0
    %2029 = vmatprep.mubr.bf16.mxu0 0
    %2030 = vmatmul.mubr.bf16.gmra.mrb[0].mxu0 %v1996
    %v2031 = vpop.f32.mrb[0].mxu0
    %v2032 = vadd.f32 0.0, %v2031
    %v2033 = vpop.f32.mrb[0].mxu0
    %v2034 = vadd.f32 0.0, %v2033
    %v2035 = vpop.f32.mrb[0].mxu0
    %v2036 = vpop.f32.mrb[0].mxu0
    %2037 = vdwg.mxu0
    %v2038 = vadd.f32 %v2032, %v114
    %v2039 = vsub.f32 %v1953, %v2038
    %v2040 = vmul.f32 %v76, %v2039
    %v2041 = vsub.f32 %v1991, %v2034
    %v2042 = vsub.f32 %v2041, %v121
    %v2043 = vmul.f32 %v1954, %v1954
    %v2044 = vsub.f32 1.0, %v2043
    %v2045 = vmul.f32 %v2042, %v2044
    %v2046 = vsub.f32 %v2045, %v2040
    %v2047 = vmul.f32 %v427, %v2046
    %v2048 = vadd.f32 %v1953, %v2047
    %v2049 = vtanh.pop %v2048
    %v2050 = vpack.c.bf16 %v2048, %v2048
    %2051 = vmatprep.subr.bf16.mxu0 0
    %2052 = vmatpush1.bf16.msra.mxu0 %v157
    %2053 = vmatprep.subr.bf16.mxu0 0
    %2054 = vmatpush1.bf16.msra.mxu0 %v158
    %2055 = vmatprep.subr.bf16.mxu0 0
    %2056 = vmatpush1.bf16.msra.mxu0 %v159
    %2057 = vmatprep.subr.bf16.mxu0 0
    %2058 = vmatpush1.bf16.msra.mxu0 %v160
    %2059 = vmatprep.subr.bf16.mxu0 0
    %2060 = vmatpush1.bf16.msra.mxu0 %v161
    %2061 = vmatprep.subr.bf16.mxu0 0
    %2062 = vmatpush1.bf16.msra.mxu0 %v162
    %2063 = vmatprep.subr.bf16.mxu0 0
    %2064 = vmatpush1.bf16.msra.mxu0 %v163
    %2065 = vmatprep.subr.bf16.mxu0 0
    %2066 = vmatpush1.bf16.msra.mxu0 %v164
    %2067 = vmatprep.subr.bf16.mxu0 0
    %2068 = vmatpush1.bf16.msra.mxu0 0
    %2069 = vmatprep.subr.bf16.mxu0 0
    %2070 = vmatpush1.bf16.msra.mxu0 0
    %2071 = vmatprep.subr.bf16.mxu0 0
    %2072 = vmatpush1.bf16.msra.mxu0 0
    %2073 = vmatprep.subr.bf16.mxu0 0
    %2074 = vmatpush1.bf16.msra.mxu0 0
    %2075 = vmatprep.subr.bf16.mxu0 0
    %2076 = vmatpush1.bf16.msra.mxu0 0
    %2077 = vmatprep.subr.bf16.mxu0 0
    %2078 = vmatpush1.bf16.msra.mxu0 0
    %2079 = vmatprep.subr.bf16.mxu0 0
    %2080 = vmatpush1.bf16.msra.mxu0 0
    %2081 = vmatprep.subr.bf16.mxu0 0
    %2082 = vmatpush1.bf16.msra.mxu0 0
    %2083 = vmatprep.mubr.bf16.mxu0 0
    %2084 = vmatmul.mubr.bf16.gmra.mrb[0].mxu0 %v2050
    %v2085 = vpop.f32.mrb[0].mxu0
    %v2086 = vadd.f32 0.0, %v2085
    %v2087 = vpop.f32.mrb[0].mxu0
    %v2088 = vpop.f32.mrb[0].mxu0
    %v2089 = vpop.f32.mrb[0].mxu0
    %2090 = vdwg.mxu0
    %v2091 = vpack.c.bf16 %v2049, %v2049
    %2092 = vmatprep.subr.bf16.mxu0 %v350
    %2093 = vmatpush1.bf16.msra.mxu0 %v349
    %2094 = vmatprep.subr.bf16.mxu0 %v352
    %2095 = vmatpush1.bf16.msra.mxu0 %v351
    %2096 = vmatprep.subr.bf16.mxu0 %v354
    %2097 = vmatpush1.bf16.msra.mxu0 %v353
    %2098 = vmatprep.subr.bf16.mxu0 %v356
    %2099 = vmatpush1.bf16.msra.mxu0 %v355
    %2100 = vmatprep.subr.bf16.mxu0 %v358
    %2101 = vmatpush1.bf16.msra.mxu0 %v357
    %2102 = vmatprep.subr.bf16.mxu0 %v360
    %2103 = vmatpush1.bf16.msra.mxu0 %v359
    %2104 = vmatprep.subr.bf16.mxu0 %v362
    %2105 = vmatpush1.bf16.msra.mxu0 %v361
    %2106 = vmatprep.subr.bf16.mxu0 %v364
    %2107 = vmatpush1.bf16.msra.mxu0 %v363
    %2108 = vmatprep.subr.bf16.mxu0 0
    %2109 = vmatpush1.bf16.msra.mxu0 0
    %2110 = vmatprep.subr.bf16.mxu0 0
    %2111 = vmatpush1.bf16.msra.mxu0 0
    %2112 = vmatprep.subr.bf16.mxu0 0
    %2113 = vmatpush1.bf16.msra.mxu0 0
    %2114 = vmatprep.subr.bf16.mxu0 0
    %2115 = vmatpush1.bf16.msra.mxu0 0
    %2116 = vmatprep.subr.bf16.mxu0 0
    %2117 = vmatpush1.bf16.msra.mxu0 0
    %2118 = vmatprep.subr.bf16.mxu0 0
    %2119 = vmatpush1.bf16.msra.mxu0 0
    %2120 = vmatprep.subr.bf16.mxu0 0
    %2121 = vmatpush1.bf16.msra.mxu0 0
    %2122 = vmatprep.subr.bf16.mxu0 0
    %2123 = vmatpush1.bf16.msra.mxu0 0
    %2124 = vmatprep.mubr.bf16.mxu0 0
    %2125 = vmatmul.mubr.bf16.gmra.mrb[0].mxu0 %v2091
    %v2126 = vpop.f32.mrb[0].mxu0
    %v2127 = vadd.f32 0.0, %v2126
    %v2128 = vpop.f32.mrb[0].mxu0
    %v2129 = vadd.f32 0.0, %v2128
    %v2130 = vpop.f32.mrb[0].mxu0
    %v2131 = vpop.f32.mrb[0].mxu0
    %2132 = vdwg.mxu0
    %v2133 = vadd.f32 %v2127, %v114
    %v2134 = vsub.f32 %v2048, %v2133
    %v2135 = vmul.f32 %v76, %v2134
    %v2136 = vsub.f32 %v2086, %v2129
    %v2137 = vsub.f32 %v2136, %v121
    %v2138 = vmul.f32 %v2049, %v2049
    %v2139 = vsub.f32 1.0, %v2138
    %v2140 = vmul.f32 %v2137, %v2139
    %v2141 = vsub.f32 %v2140, %v2135
    %v2142 = vmul.f32 %v427, %v2141
    %v2143 = vadd.f32 %v2048, %v2142
    %v2144 = vtanh.pop %v2143
    %v2145 = vpack.c.bf16 %v2144, %v2144
    %2146 = vmatprep.subr.bf16.mxu0 %v350
    %2147 = vmatpush1.bf16.msra.mxu0 %v349
    %2148 = vmatprep.subr.bf16.mxu0 %v352
    %2149 = vmatpush1.bf16.msra.mxu0 %v351
    %2150 = vmatprep.subr.bf16.mxu0 %v354
    %2151 = vmatpush1.bf16.msra.mxu0 %v353
    %2152 = vmatprep.subr.bf16.mxu0 %v356
    %2153 = vmatpush1.bf16.msra.mxu0 %v355
    %2154 = vmatprep.subr.bf16.mxu0 %v358
    %2155 = vmatpush1.bf16.msra.mxu0 %v357
    %2156 = vmatprep.subr.bf16.mxu0 %v360
    %2157 = vmatpush1.bf16.msra.mxu0 %v359
    %2158 = vmatprep.subr.bf16.mxu0 %v362
    %2159 = vmatpush1.bf16.msra.mxu0 %v361
    %2160 = vmatprep.subr.bf16.mxu0 %v364
    %2161 = vmatpush1.bf16.msra.mxu0 %v363
    %2162 = vmatprep.subr.bf16.mxu0 0
    %2163 = vmatpush1.bf16.msra.mxu0 0
    %2164 = vmatprep.subr.bf16.mxu0 0
    %2165 = vmatpush1.bf16.msra.mxu0 0
    %2166 = vmatprep.subr.bf16.mxu0 0
    %2167 = vmatpush1.bf16.msra.mxu0 0
    %2168 = vmatprep.subr.bf16.mxu0 0
    %2169 = vmatpush1.bf16.msra.mxu0 0
    %2170 = vmatprep.subr.bf16.mxu0 0
    %2171 = vmatpush1.bf16.msra.mxu0 0
    %2172 = vmatprep.subr.bf16.mxu0 0
    %2173 = vmatpush1.bf16.msra.mxu0 0
    %2174 = vmatprep.subr.bf16.mxu0 0
    %2175 = vmatpush1.bf16.msra.mxu0 0
    %2176 = vmatprep.subr.bf16.mxu0 0
    %2177 = vmatpush1.bf16.msra.mxu0 0
    %2178 = vmatprep.mubr.bf16.mxu0 0
    %2179 = vmatmul.mubr.bf16.gmra.mrb[0].mxu0 %v2145
    %v2180 = vpop.f32.mrb[0].mxu0
    %v2181 = vadd.f32 0.0, %v2180
    %v2182 = vpop.f32.mrb[0].mxu0
    %v2183 = vpop.f32.mrb[0].mxu0
    %v2184 = vpop.f32.mrb[0].mxu0
    %2185 = vdwg.mxu0
    %v2186 = vadd.f32 %v2181, %v114
    %v2187 = vsub.f32 %v2143, %v2186
    %v2188 = vmul.f32 %v76, %v2187
    %2189 = vst [vmem:[#allocation8] sm:$0xff] %v2143
    %2190 = vst [vmem:[#allocation9] sm:$0xff] %v2188
    // Predicated region
    $region34: #{tpu_custom_call.1} parent=1 // pred_check
      _
    $region35: #{tpu_custom_call.1} parent=1 // pred_check_branch
      %2192 = sbr.rel (0) target = $region37
    $region36: #{tpu_custom_call.1} parent=1 // pred_region
      %s2194 = ssub.s32 128, 128
      %2195 = vsyncadd [#allocation4], %s2194
      %s2197 = sshll.u32 [#allocation8], 4
      %s2198 = int_to_ptr.vmem [resolvable:$true] %s2197
      %2200 = dma.vmem_to_hbm [thread:$0]  %s2198, 128, %s5, [#allocation4]
    $region37: #{tpu_custom_call.1} parent=1 // pred_fallthru
      _
    // Predicated region
    $region38: #{tpu_custom_call.1} parent=1 // pred_check
      _
    $region39: #{tpu_custom_call.1} parent=1 // pred_check_branch
      %2202 = sbr.rel (0) target = $region41
    $region40: #{tpu_custom_call.1} parent=1 // pred_region
      %s2204 = ssub.s32 128, 128
      %2205 = vsyncadd [#allocation10], %s2204
      %s2207 = sshll.u32 [#allocation9], 4
      %s2208 = int_to_ptr.vmem [resolvable:$true] %s2207
      %2210 = dma.vmem_to_hbm [thread:$0]  %s2208, 128, %s6, [#allocation10]
    $region41: #{tpu_custom_call.1} parent=1 // pred_fallthru
      _
    // Predicated region
    $region42: #{tpu_custom_call.1} parent=1 // pred_check
      _
    $region43: #{tpu_custom_call.1} parent=1 // pred_check_branch
      %2212 = sbr.rel (0) target = $region45
    $region44: #{tpu_custom_call.1} parent=1 // pred_region
      %2213 = dma.done [#allocation4], 128
    $region45: #{tpu_custom_call.1} parent=1 // pred_fallthru
      _
    // Predicated region
    $region46: #{tpu_custom_call.1} parent=1 // pred_check
      _
    $region47: #{tpu_custom_call.1} parent=1 // pred_check_branch
      %2215 = sbr.rel (0) target = $region49
    $region48: #{tpu_custom_call.1} parent=1 // pred_region
      %2216 = dma.done [#allocation10], 128
    $region49: #{tpu_custom_call.1} parent=1 // pred_fallthru
      _
    %2217 = vsyncpa [#allocation3], 1
    %2218 = vsyncpa [#allocation6], 1
    %2219 = vsyncpa [#allocation4], 1
    %2220 = vsyncpa [#allocation10], 1

</llo_original>
